<compile_context>
chip_gen: v7x
topology: tpu7x:2x2x1
jax: 0.10.0
libtpu: 0.0.40
codegen_flags: <defaults>
</compile_context>

<pallas_src>
import math
import functools

import jax
import jax.numpy as jnp
from jax.experimental import pallas as pl
from jax.experimental.pallas import tpu as pltpu


def _aoa_refiner_kernel(x_ref,
                        wq_ref, bq_ref,
                        wk_ref, bk_ref,
                        wv_ref, bv_ref,
                        watt_a_ref, watt_b_ref,
                        wx_a_ref, wx_b_ref, ba_ref, bb_ref,
                        wout_ref, bout_ref,
                        gamma_ref, beta_ref,
                        o_ref,
                        *, batch_block, seq_len, num_heads, d_k, d_model, eps):
    f32 = jnp.float32
    x3 = x_ref[...]                                       # (Bb, S, D)
    n_rows = batch_block * seq_len
    x2 = x3.reshape(n_rows, d_model)                      # (Bb*S, D) — flat rows

    # Head-major replica of the input, z = b * H + h.  Only leading-dim ops
    # (expand / broadcast / merge) — no lane relayout.
    z = batch_block * num_heads
    xh = jnp.broadcast_to(x3[:, None],
                          (batch_block, num_heads, seq_len, d_model))
    xh = xh.reshape(z, seq_len, d_model)                  # (Z, S, D)

    # q / k / v projections, already per-(batch, head) via pre-split weights.
    q = jnp.einsum('zsd,zde->zse', xh, wq_ref[...],
                   preferred_element_type=f32) + bq_ref[...]
    k = jnp.einsum('zsd,zde->zse', xh, wk_ref[...],
                   preferred_element_type=f32) + bk_ref[...]
    v = jnp.einsum('zsd,zde->zse', xh, wv_ref[...],
                   preferred_element_type=f32) + bv_ref[...]

    # Scaled dot-product attention, batched over z = (batch, head).
    scale = 1.0 / math.sqrt(d_k)
    s = jnp.einsum('zqe,zke->zqk', q, k, preferred_element_type=f32) * scale
    s = s - jnp.max(s, axis=-1, keepdims=True)
    p = jnp.exp(s)
    p = p * pl.reciprocal(jnp.sum(p, axis=-1, keepdims=True), approx=True)
    att = jnp.einsum('zqk,zke->zqe', p, v, preferred_element_type=f32)  # (Z,S,dk)

    # AoA layer: Linear(2D -> 2D) + GLU, with no concat and no lane slice:
    #   a_half = attended @ Waoa[:D, :D] + x @ Waoa[D:, :D] + baoa[:D]
    #   b_half = attended @ Waoa[:D, D:] + x @ Waoa[D:, D:] + baoa[D:]
    # `attended @ W` is accumulated per head using row-split weights, so the
    # per-head outputs are never lane-concatenated.
    pa = jnp.einsum('zse,zef->zsf', att, watt_a_ref[...],
                    preferred_element_type=f32)           # (Z, S, D)
    pb = jnp.einsum('zse,zef->zsf', att, watt_b_ref[...],
                    preferred_element_type=f32)
    att_a = jnp.sum(pa.reshape(batch_block, num_heads, seq_len, d_model),
                    axis=1).reshape(n_rows, d_model)      # sum over heads (VPU)
    att_b = jnp.sum(pb.reshape(batch_block, num_heads, seq_len, d_model),
                    axis=1).reshape(n_rows, d_model)

    a_half = att_a + jnp.dot(x2, wx_a_ref[...],
                             preferred_element_type=f32) + ba_ref[...]
    b_half = att_b + jnp.dot(x2, wx_b_ref[...],
                             preferred_element_type=f32) + bb_ref[...]
    glu = a_half * jax.nn.sigmoid(b_half)                 # (Bb*S, D)

    # Output projection.
    att_feat = jnp.dot(glu, wout_ref[...],
                       preferred_element_type=f32) + bout_ref[...]

    # Residual + custom LayerNorm (unbiased std, divide by (std + eps)).
    mean = jnp.mean(att_feat, axis=-1, keepdims=True)
    centered = att_feat - mean
    var_unbiased = jnp.sum(centered * centered, axis=-1,
                           keepdims=True) * (1.0 / (d_model - 1))
    inv = pl.reciprocal(jnp.sqrt(var_unbiased) + eps, approx=True)
    normed = gamma_ref[...] * centered * inv + beta_ref[...]

    # TODO(synk): dropout (p=0.1, two sites) omitted -- eval-mode identity.
    o_ref[...] = x2 + normed


def aoa_refiner_layer(x, params, *, num_heads, num_batch_blocks=1):
    """x: (B, S, D) float32.  params: dict of pre-transposed (in, out) weights.

    num_batch_blocks: grid steps to split the batch over.  Use 1 on single-TC
    chips (v5e/v6e); 2 on v7x lets both TensorCores get work.
    """
    B, S, D = x.shape
    assert B % num_batch_blocks == 0
    bblk = B // num_batch_blocks              # batch rows per grid step
    H = num_heads
    dk = D // H
    Z = bblk * H
    N = B * S
    f32 = jnp.float32

    # ---- host-side weight pre-splitting (removes all in-kernel concats/slices)
    def per_head_w(w):                        # (D, D) -> (Z, D, dk), z = b*H + h
        wh = jnp.transpose(w.reshape(D, H, dk), (1, 0, 2))     # (H, D, dk)
        return jnp.tile(wh, (bblk, 1, 1))

    def per_head_b(b):                        # (1, D) -> (Z, 1, dk)
        return jnp.tile(b.reshape(H, 1, dk), (bblk, 1, 1))

    def per_head_rows(w):                     # (D, D) row-split -> (Z, dk, D)
        return jnp.tile(w.reshape(H, dk, D), (bblk, 1, 1))

    waoa, baoa = params["waoa"], params["baoa"]
    w_att, w_x = waoa[:D, :], waoa[D:, :]     # rows: attended-part, x-part
    watt_a = per_head_rows(w_att[:, :D])      # columns: GLU a / b halves
    watt_b = per_head_rows(w_att[:, D:])
    wx_a, wx_b = w_x[:, :D], w_x[:, D:]
    ba_aoa, bb_aoa = baoa[:, :D], baoa[:, D:]

    args = (
        x,
        per_head_w(params["wq"]), per_head_b(params["bq"]),
        per_head_w(params["wk"]), per_head_b(params["bk"]),
        per_head_w(params["wv"]), per_head_b(params["bv"]),
        watt_a, watt_b,
        wx_a, wx_b, ba_aoa, bb_aoa,
        params["wout"], params["bout"],
        params["gamma"], params["beta"],
    )

    kernel = functools.partial(
        _aoa_refiner_kernel,
        batch_block=bblk, seq_len=S, num_heads=H, d_k=dk, d_model=D, eps=1e-6)

    def const2(shape):
        return pl.BlockSpec(shape, lambda i: (0, 0))

    def const3(shape):
        return pl.BlockSpec(shape, lambda i: (0, 0, 0))

    grid_spec = pltpu.PrefetchScalarGridSpec(
        num_scalar_prefetch=0,
        grid=(num_batch_blocks,),
        in_specs=[
            pl.BlockSpec((bblk, S, D), lambda i: (i, 0, 0)),   # x
            const3((Z, D, dk)), const3((Z, 1, dk)),            # Wq (heads), bq
            const3((Z, D, dk)), const3((Z, 1, dk)),            # Wk (heads), bk
            const3((Z, D, dk)), const3((Z, 1, dk)),            # Wv (heads), bv
            const3((Z, dk, D)), const3((Z, dk, D)),            # Waoa att-rows a/b
            const2((D, D)), const2((D, D)),                    # Waoa x-rows a/b
            const2((1, D)), const2((1, D)),                    # baoa a/b halves
            const2((D, D)), const2((1, D)),                    # Wout, bout
            const2((1, D)), const2((1, D)),                    # gamma, beta
        ],
        out_specs=pl.BlockSpec((bblk * S, D), lambda i: (i, 0)),
    )

    out_flat = pl.pallas_call(
        kernel,
        out_shape=jax.ShapeDtypeStruct((N, D), f32),
        grid_spec=grid_spec,
        compiler_params=pltpu.CompilerParams(
            dimension_semantics=("parallel",)),
    )(*args)
    return out_flat.reshape(B, S, D)


def init_params(key, d_model):
    """Deterministic synthetic parameters.  Linear weights stored as (in, out)."""
    ks = jax.random.split(key, 10)

    def lin(k, fan_in, fan_out):
        scale = 1.0 / math.sqrt(fan_in)
        kw, kb = jax.random.split(k)
        w = jax.random.uniform(kw, (fan_in, fan_out), jnp.float32, -scale, scale)
        b = jax.random.uniform(kb, (1, fan_out), jnp.float32, -scale, scale)
        return w, b

    wq, bq = lin(ks[0], d_model, d_model)
    wk, bk = lin(ks[1], d_model, d_model)
    wv, bv = lin(ks[2], d_model, d_model)
    waoa, baoa = lin(ks[3], 2 * d_model, 2 * d_model)
    wout, bout = lin(ks[4], d_model, d_model)
    gamma = jnp.ones((1, d_model), jnp.float32)       # LayerNorm a_2
    beta = jnp.zeros((1, d_model), jnp.float32)       # LayerNorm b_2
    return dict(wq=wq, bq=bq, wk=wk, bk=bk, wv=wv, bv=bv,
                waoa=waoa, baoa=baoa, wout=wout, bout=bout,
                gamma=gamma, beta=beta)


def _reference(x, params, num_heads):
    """Pure-JAX f32 reference with the PyTorch module's exact semantics."""
    B, S, D = x.shape
    dk = D // num_heads
    x2 = x.reshape(B * S, D)
    q = x2 @ params["wq"] + params["bq"]
    k = x2 @ params["wk"] + params["bk"]
    v = x2 @ params["wv"] + params["bv"]

    def split(t):
        return t.reshape(B, S, num_heads, dk).transpose(0, 2, 1, 3)

    qh, kh, vh = split(q), split(k), split(v)
    s = jnp.einsum('bhqe,bhke->bhqk', qh, kh) / math.sqrt(dk)
    p = jax.nn.softmax(s, axis=-1)
    att = jnp.einsum('bhqk,bhke->bhqe', p, vh)
    att = att.transpose(0, 2, 1, 3).reshape(B * S, D)
    aoa = jnp.concatenate([att, x2], axis=-1) @ params["waoa"] + params["baoa"]
    glu = aoa[:, :D] * jax.nn.sigmoid(aoa[:, D:])
    feat = glu @ params["wout"] + params["bout"]
    mean = feat.mean(-1, keepdims=True)
    cen = feat - mean
    std = jnp.sqrt(jnp.sum(cen * cen, -1, keepdims=True) / (D - 1))
    normed = params["gamma"] * cen / (std + 1e-6) + params["beta"]
    return (x2 + normed).reshape(B, S, D)


if __name__ == "__main__":
    B, S, D, H = 2, 8, 32, 4                      # features_size=32, num_heads=4
    key = jax.random.PRNGKey(0)
    kx, kp = jax.random.split(key)
    x = jax.random.normal(kx, (B, S, D), jnp.float32)
    params = init_params(kp, D)

    out = aoa_refiner_layer(x, params, num_heads=H)
    jax.block_until_ready(out)
    assert out.shape == (B, S, D)

    ref = _reference(x, params, H)
    max_err = float(jnp.max(jnp.abs(out - ref)))
    assert max_err < 5e-2, f"max |err| = {max_err}"
    print("KERNEL_OK")
</pallas_src>

<mosaic_0001>
module attributes {stable_mosaic.version = 11 : i64} {
  func.func @_aoa_refiner_kernel(%arg0: i32, %arg1: memref<2x8x32xf32, #tpu.memory_space<vmem>>, %arg2: memref<8x32x8xf32, #tpu.memory_space<vmem>>, %arg3: memref<8x1x8xf32, #tpu.memory_space<vmem>>, %arg4: memref<8x32x8xf32, #tpu.memory_space<vmem>>, %arg5: memref<8x1x8xf32, #tpu.memory_space<vmem>>, %arg6: memref<8x32x8xf32, #tpu.memory_space<vmem>>, %arg7: memref<8x1x8xf32, #tpu.memory_space<vmem>>, %arg8: memref<8x8x32xf32, #tpu.memory_space<vmem>>, %arg9: memref<8x8x32xf32, #tpu.memory_space<vmem>>, %arg10: memref<32x32xf32, #tpu.memory_space<vmem>>, %arg11: memref<32x32xf32, #tpu.memory_space<vmem>>, %arg12: memref<1x32xf32, #tpu.memory_space<vmem>>, %arg13: memref<1x32xf32, #tpu.memory_space<vmem>>, %arg14: memref<32x32xf32, #tpu.memory_space<vmem>>, %arg15: memref<1x32xf32, #tpu.memory_space<vmem>>, %arg16: memref<1x32xf32, #tpu.memory_space<vmem>>, %arg17: memref<1x32xf32, #tpu.memory_space<vmem>>, %arg18: memref<16x32xf32, #tpu.memory_space<vmem>>) attributes {dimension_semantics = [#tpu.dimension_semantics<parallel>], iteration_bounds = array<i64: 1>, scalar_prefetch = 0 : i64, scratch_operands = 0 : i64, tpu.core_type = #tpu.core_type<tc>, window_params = [{transform_indices = @transform_0, window_bounds = array<i64: 2, 8, 32>}, {pipeline_mode = #tpu.pipeline_mode<synchronous>, transform_indices = @transform_1, window_bounds = array<i64: 8, 32, 8>}, {pipeline_mode = #tpu.pipeline_mode<synchronous>, transform_indices = @transform_2, window_bounds = array<i64: 8, 1, 8>}, {pipeline_mode = #tpu.pipeline_mode<synchronous>, transform_indices = @transform_3, window_bounds = array<i64: 8, 32, 8>}, {pipeline_mode = #tpu.pipeline_mode<synchronous>, transform_indices = @transform_4, window_bounds = array<i64: 8, 1, 8>}, {pipeline_mode = #tpu.pipeline_mode<synchronous>, transform_indices = @transform_5, window_bounds = array<i64: 8, 32, 8>}, {pipeline_mode = #tpu.pipeline_mode<synchronous>, transform_indices = @transform_6, window_bounds = array<i64: 8, 1, 8>}, {pipeline_mode = #tpu.pipeline_mode<synchronous>, transform_indices = @transform_7, window_bounds = array<i64: 8, 8, 32>}, {pipeline_mode = #tpu.pipeline_mode<synchronous>, transform_indices = @transform_8, window_bounds = array<i64: 8, 8, 32>}, {pipeline_mode = #tpu.pipeline_mode<synchronous>, transform_indices = @transform_9, window_bounds = array<i64: 32, 32>}, {pipeline_mode = #tpu.pipeline_mode<synchronous>, transform_indices = @transform_10, window_bounds = array<i64: 32, 32>}, {pipeline_mode = #tpu.pipeline_mode<synchronous>, transform_indices = @transform_11, window_bounds = array<i64: 1, 32>}, {pipeline_mode = #tpu.pipeline_mode<synchronous>, transform_indices = @transform_12, window_bounds = array<i64: 1, 32>}, {pipeline_mode = #tpu.pipeline_mode<synchronous>, transform_indices = @transform_13, window_bounds = array<i64: 32, 32>}, {pipeline_mode = #tpu.pipeline_mode<synchronous>, transform_indices = @transform_14, window_bounds = array<i64: 1, 32>}, {pipeline_mode = #tpu.pipeline_mode<synchronous>, transform_indices = @transform_15, window_bounds = array<i64: 1, 32>}, {pipeline_mode = #tpu.pipeline_mode<synchronous>, transform_indices = @transform_16, window_bounds = array<i64: 1, 32>}, {transform_indices = @transform_17, window_bounds = array<i64: 16, 32>}]} {
    %c0 = arith.constant 0 : index
    %c0_0 = arith.constant 0 : index
    %c0_1 = arith.constant 0 : index
    %0 = vector.load %arg1[%c0, %c0_0, %c0_1] : memref<2x8x32xf32, #tpu.memory_space<vmem>>, vector<2x8x32xf32>
    %1 = vector.shape_cast %0 : vector<2x8x32xf32> to vector<16x32xf32>
    %2 = vector.shape_cast %0 : vector<2x8x32xf32> to vector<2x1x8x32xf32>
    %3 = vector.shape_cast %2 : vector<2x1x8x32xf32> to vector<2x1x8x32xf32>
    %4 = vector.broadcast %3 : vector<2x1x8x32xf32> to vector<2x4x8x32xf32>
    %5 = vector.shape_cast %4 : vector<2x4x8x32xf32> to vector<8x8x32xf32>
    %c0_2 = arith.constant 0 : index
    %c0_3 = arith.constant 0 : index
    %c0_4 = arith.constant 0 : index
    %6 = vector.load %arg2[%c0_2, %c0_3, %c0_4] : memref<8x32x8xf32, #tpu.memory_space<vmem>>, vector<8x32x8xf32>
    "tpu.trace_start"() <{level = 10 : i32, message = "zsd,zde->zse"}> : () -> ()
    %cst = arith.constant dense<0.000000e+00> : vector<8x8x8xf32>
    %7 = tpu.matmul %5, %6, %cst {dimension_numbers = #tpu.dot_dimension_numbers<[2], [1], [1], [2], [0, 0, 0, 1, 1, 2], [0], [0]>} : vector<8x8x32xf32>, vector<8x32x8xf32>, vector<8x8x8xf32> -> vector<8x8x8xf32>
    "tpu.trace_stop"() : () -> ()
    %c0_5 = arith.constant 0 : index
    %c0_6 = arith.constant 0 : index
    %c0_7 = arith.constant 0 : index
    %8 = vector.load %arg3[%c0_5, %c0_6, %c0_7] : memref<8x1x8xf32, #tpu.memory_space<vmem>>, vector<8x1x8xf32>
    %9 = vector.broadcast %8 : vector<8x1x8xf32> to vector<8x8x8xf32>
    %10 = arith.addf %7, %9 : vector<8x8x8xf32>
    %c0_8 = arith.constant 0 : index
    %c0_9 = arith.constant 0 : index
    %c0_10 = arith.constant 0 : index
    %11 = vector.load %arg4[%c0_8, %c0_9, %c0_10] : memref<8x32x8xf32, #tpu.memory_space<vmem>>, vector<8x32x8xf32>
    "tpu.trace_start"() <{level = 10 : i32, message = "zsd,zde->zse"}> : () -> ()
    %cst_11 = arith.constant dense<0.000000e+00> : vector<8x8x8xf32>
    %12 = tpu.matmul %5, %11, %cst_11 {dimension_numbers = #tpu.dot_dimension_numbers<[2], [1], [1], [2], [0, 0, 0, 1, 1, 2], [0], [0]>} : vector<8x8x32xf32>, vector<8x32x8xf32>, vector<8x8x8xf32> -> vector<8x8x8xf32>
    "tpu.trace_stop"() : () -> ()
    %c0_12 = arith.constant 0 : index
    %c0_13 = arith.constant 0 : index
    %c0_14 = arith.constant 0 : index
    %13 = vector.load %arg5[%c0_12, %c0_13, %c0_14] : memref<8x1x8xf32, #tpu.memory_space<vmem>>, vector<8x1x8xf32>
    %14 = vector.broadcast %13 : vector<8x1x8xf32> to vector<8x8x8xf32>
    %15 = arith.addf %12, %14 : vector<8x8x8xf32>
    %c0_15 = arith.constant 0 : index
    %c0_16 = arith.constant 0 : index
    %c0_17 = arith.constant 0 : index
    %16 = vector.load %arg6[%c0_15, %c0_16, %c0_17] : memref<8x32x8xf32, #tpu.memory_space<vmem>>, vector<8x32x8xf32>
    "tpu.trace_start"() <{level = 10 : i32, message = "zsd,zde->zse"}> : () -> ()
    %cst_18 = arith.constant dense<0.000000e+00> : vector<8x8x8xf32>
    %17 = tpu.matmul %5, %16, %cst_18 {dimension_numbers = #tpu.dot_dimension_numbers<[2], [1], [1], [2], [0, 0, 0, 1, 1, 2], [0], [0]>} : vector<8x8x32xf32>, vector<8x32x8xf32>, vector<8x8x8xf32> -> vector<8x8x8xf32>
    "tpu.trace_stop"() : () -> ()
    %c0_19 = arith.constant 0 : index
    %c0_20 = arith.constant 0 : index
    %c0_21 = arith.constant 0 : index
    %18 = vector.load %arg7[%c0_19, %c0_20, %c0_21] : memref<8x1x8xf32, #tpu.memory_space<vmem>>, vector<8x1x8xf32>
    %19 = vector.broadcast %18 : vector<8x1x8xf32> to vector<8x8x8xf32>
    %20 = arith.addf %17, %19 : vector<8x8x8xf32>
    "tpu.trace_start"() <{level = 10 : i32, message = "zqe,zke->zqk"}> : () -> ()
    %cst_22 = arith.constant dense<0.000000e+00> : vector<8x8x8xf32>
    %21 = tpu.matmul %10, %15, %cst_22 {dimension_numbers = #tpu.dot_dimension_numbers<[2], [2], [1], [1], [0, 0, 0, 1, 1, 1], [0], [0]>} : vector<8x8x8xf32>, vector<8x8x8xf32>, vector<8x8x8xf32> -> vector<8x8x8xf32>
    "tpu.trace_stop"() : () -> ()
    %cst_23 = arith.constant 0.353553385 : f32
    %22 = vector.broadcast %cst_23 : f32 to vector<8x8x8xf32>
    %23 = arith.mulf %21, %22 : vector<8x8x8xf32>
    %cst_24 = arith.constant dense<0xFF800000> : vector<8x8xf32>
    %24 = vector.multi_reduction <maximumf>, %23, %cst_24 [2] : vector<8x8x8xf32> to vector<8x8xf32>
    %25 = vector.shape_cast %24 : vector<8x8xf32> to vector<8x8x1xf32>
    %26 = vector.broadcast %25 : vector<8x8x1xf32> to vector<8x8x8xf32>
    %27 = arith.subf %23, %26 : vector<8x8x8xf32>
    %28 = math.exp %27 : vector<8x8x8xf32>
    %cst_25 = arith.constant dense<0.000000e+00> : vector<8x8xf32>
    %29 = vector.multi_reduction <add>, %28, %cst_25 [2] : vector<8x8x8xf32> to vector<8x8xf32>
    %30 = vector.shape_cast %29 : vector<8x8xf32> to vector<8x8x1xf32>
    %31 = tpu.reciprocal %30 {approx = true} : vector<8x8x1xf32> -> vector<8x8x1xf32>
    %32 = vector.broadcast %31 : vector<8x8x1xf32> to vector<8x8x8xf32>
    %33 = arith.mulf %28, %32 : vector<8x8x8xf32>
    "tpu.trace_start"() <{level = 10 : i32, message = "zqk,zke->zqe"}> : () -> ()
    %cst_26 = arith.constant dense<0.000000e+00> : vector<8x8x8xf32>
    %34 = tpu.matmul %33, %20, %cst_26 {dimension_numbers = #tpu.dot_dimension_numbers<[2], [1], [1], [2], [0, 0, 0, 1, 1, 2], [0], [0]>} : vector<8x8x8xf32>, vector<8x8x8xf32>, vector<8x8x8xf32> -> vector<8x8x8xf32>
    "tpu.trace_stop"() : () -> ()
    %c0_27 = arith.constant 0 : index
    %c0_28 = arith.constant 0 : index
    %c0_29 = arith.constant 0 : index
    %35 = vector.load %arg8[%c0_27, %c0_28, %c0_29] : memref<8x8x32xf32, #tpu.memory_space<vmem>>, vector<8x8x32xf32>
    "tpu.trace_start"() <{level = 10 : i32, message = "zse,zef->zsf"}> : () -> ()
    %cst_30 = arith.constant dense<0.000000e+00> : vector<8x8x32xf32>
    %36 = tpu.matmul %34, %35, %cst_30 {dimension_numbers = #tpu.dot_dimension_numbers<[2], [1], [1], [2], [0, 0, 0, 1, 1, 2], [0], [0]>} : vector<8x8x8xf32>, vector<8x8x32xf32>, vector<8x8x32xf32> -> vector<8x8x32xf32>
    "tpu.trace_stop"() : () -> ()
    %c0_31 = arith.constant 0 : index
    %c0_32 = arith.constant 0 : index
    %c0_33 = arith.constant 0 : index
    %37 = vector.load %arg9[%c0_31, %c0_32, %c0_33] : memref<8x8x32xf32, #tpu.memory_space<vmem>>, vector<8x8x32xf32>
    "tpu.trace_start"() <{level = 10 : i32, message = "zse,zef->zsf"}> : () -> ()
    %cst_34 = arith.constant dense<0.000000e+00> : vector<8x8x32xf32>
    %38 = tpu.matmul %34, %37, %cst_34 {dimension_numbers = #tpu.dot_dimension_numbers<[2], [1], [1], [2], [0, 0, 0, 1, 1, 2], [0], [0]>} : vector<8x8x8xf32>, vector<8x8x32xf32>, vector<8x8x32xf32> -> vector<8x8x32xf32>
    "tpu.trace_stop"() : () -> ()
    %39 = vector.shape_cast %36 : vector<8x8x32xf32> to vector<2x4x8x32xf32>
    %cst_35 = arith.constant dense<0.000000e+00> : vector<2x8x32xf32>
    %40 = vector.multi_reduction <add>, %39, %cst_35 [1] : vector<2x4x8x32xf32> to vector<2x8x32xf32>
    %41 = vector.shape_cast %40 : vector<2x8x32xf32> to vector<16x32xf32>
    %42 = vector.shape_cast %38 : vector<8x8x32xf32> to vector<2x4x8x32xf32>
    %cst_36 = arith.constant dense<0.000000e+00> : vector<2x8x32xf32>
    %43 = vector.multi_reduction <add>, %42, %cst_36 [1] : vector<2x4x8x32xf32> to vector<2x8x32xf32>
    %44 = vector.shape_cast %43 : vector<2x8x32xf32> to vector<16x32xf32>
    %c0_37 = arith.constant 0 : index
    %c0_38 = arith.constant 0 : index
    %45 = vector.load %arg10[%c0_37, %c0_38] : memref<32x32xf32, #tpu.memory_space<vmem>>, vector<32x32xf32>
    %cst_39 = arith.constant dense<0.000000e+00> : vector<16x32xf32>
    %46 = tpu.matmul %1, %45, %cst_39 {dimension_numbers = #tpu.dot_dimension_numbers<[1], [0], [0], [1], [0, 0, 1, 1], [], []>} : vector<16x32xf32>, vector<32x32xf32>, vector<16x32xf32> -> vector<16x32xf32>
    %47 = arith.addf %41, %46 : vector<16x32xf32>
    %c0_40 = arith.constant 0 : index
    %c0_41 = arith.constant 0 : index
    %48 = vector.load %arg12[%c0_40, %c0_41] : memref<1x32xf32, #tpu.memory_space<vmem>>, vector<1x32xf32>
    %49 = vector.broadcast %48 : vector<1x32xf32> to vector<16x32xf32>
    %50 = arith.addf %47, %49 : vector<16x32xf32>
    %c0_42 = arith.constant 0 : index
    %c0_43 = arith.constant 0 : index
    %51 = vector.load %arg11[%c0_42, %c0_43] : memref<32x32xf32, #tpu.memory_space<vmem>>, vector<32x32xf32>
    %cst_44 = arith.constant dense<0.000000e+00> : vector<16x32xf32>
    %52 = tpu.matmul %1, %51, %cst_44 {dimension_numbers = #tpu.dot_dimension_numbers<[1], [0], [0], [1], [0, 0, 1, 1], [], []>} : vector<16x32xf32>, vector<32x32xf32>, vector<16x32xf32> -> vector<16x32xf32>
    %53 = arith.addf %44, %52 : vector<16x32xf32>
    %c0_45 = arith.constant 0 : index
    %c0_46 = arith.constant 0 : index
    %54 = vector.load %arg13[%c0_45, %c0_46] : memref<1x32xf32, #tpu.memory_space<vmem>>, vector<1x32xf32>
    %55 = vector.broadcast %54 : vector<1x32xf32> to vector<16x32xf32>
    %56 = arith.addf %53, %55 : vector<16x32xf32>
    %57 = arith.negf %56 : vector<16x32xf32>
    %58 = math.exp %57 : vector<16x32xf32>
    %cst_47 = arith.constant 1.000000e+00 : f32
    %59 = vector.broadcast %cst_47 : f32 to vector<16x32xf32>
    %60 = arith.addf %59, %58 : vector<16x32xf32>
    %61 = arith.divf %59, %60 : vector<16x32xf32>
    %62 = arith.mulf %50, %61 : vector<16x32xf32>
    %c0_48 = arith.constant 0 : index
    %c0_49 = arith.constant 0 : index
    %63 = vector.load %arg14[%c0_48, %c0_49] : memref<32x32xf32, #tpu.memory_space<vmem>>, vector<32x32xf32>
    %cst_50 = arith.constant dense<0.000000e+00> : vector<16x32xf32>
    %64 = tpu.matmul %62, %63, %cst_50 {dimension_numbers = #tpu.dot_dimension_numbers<[1], [0], [0], [1], [0, 0, 1, 1], [], []>} : vector<16x32xf32>, vector<32x32xf32>, vector<16x32xf32> -> vector<16x32xf32>
    %c0_51 = arith.constant 0 : index
    %c0_52 = arith.constant 0 : index
    %65 = vector.load %arg15[%c0_51, %c0_52] : memref<1x32xf32, #tpu.memory_space<vmem>>, vector<1x32xf32>
    %66 = vector.broadcast %65 : vector<1x32xf32> to vector<16x32xf32>
    %67 = arith.addf %64, %66 : vector<16x32xf32>
    %cst_53 = arith.constant dense<0.000000e+00> : vector<16xf32>
    %68 = vector.multi_reduction <add>, %67, %cst_53 [1] : vector<16x32xf32> to vector<16xf32>
    %69 = vector.shape_cast %68 : vector<16xf32> to vector<16x1xf32>
    %cst_54 = arith.constant 3.200000e+01 : f32
    %70 = vector.broadcast %cst_54 : f32 to vector<16x1xf32>
    %71 = arith.divf %69, %70 : vector<16x1xf32>
    %72 = vector.broadcast %71 : vector<16x1xf32> to vector<16x32xf32>
    %73 = arith.subf %67, %72 : vector<16x32xf32>
    %74 = arith.mulf %73, %73 : vector<16x32xf32>
    %cst_55 = arith.constant dense<0.000000e+00> : vector<16xf32>
    %75 = vector.multi_reduction <add>, %74, %cst_55 [1] : vector<16x32xf32> to vector<16xf32>
    %76 = vector.shape_cast %75 : vector<16xf32> to vector<16x1xf32>
    %cst_56 = arith.constant 0.0322580636 : f32
    %77 = vector.broadcast %cst_56 : f32 to vector<16x1xf32>
    %78 = arith.mulf %76, %77 : vector<16x1xf32>
    %79 = math.sqrt %78 : vector<16x1xf32>
    %cst_57 = arith.constant 9.99999997E-7 : f32
    %80 = vector.broadcast %cst_57 : f32 to vector<16x1xf32>
    %81 = arith.addf %79, %80 : vector<16x1xf32>
    %82 = tpu.reciprocal %81 {approx = true} : vector<16x1xf32> -> vector<16x1xf32>
    %c0_58 = arith.constant 0 : index
    %c0_59 = arith.constant 0 : index
    %83 = vector.load %arg16[%c0_58, %c0_59] : memref<1x32xf32, #tpu.memory_space<vmem>>, vector<1x32xf32>
    %84 = vector.broadcast %83 : vector<1x32xf32> to vector<16x32xf32>
    %85 = arith.mulf %84, %73 : vector<16x32xf32>
    %86 = vector.broadcast %82 : vector<16x1xf32> to vector<16x32xf32>
    %87 = arith.mulf %85, %86 : vector<16x32xf32>
    %c0_60 = arith.constant 0 : index
    %c0_61 = arith.constant 0 : index
    %88 = vector.load %arg17[%c0_60, %c0_61] : memref<1x32xf32, #tpu.memory_space<vmem>>, vector<1x32xf32>
    %89 = vector.broadcast %88 : vector<1x32xf32> to vector<16x32xf32>
    %90 = arith.addf %87, %89 : vector<16x32xf32>
    %91 = arith.addf %1, %90 : vector<16x32xf32>
    %c0_62 = arith.constant 0 : index
    %c0_63 = arith.constant 0 : index
    %92 = vector.load %arg18[%c0_62, %c0_63] : memref<16x32xf32, #tpu.memory_space<vmem>>, vector<16x32xf32>
    tpu.vector_store %arg18[%c0_62, %c0_63], %91 {strides = array<i32>} : memref<16x32xf32, #tpu.memory_space<vmem>>, vector<16x32xf32>,
    return
  }
  func.func @transform_0(%arg0: i32) -> (i32, i32, i32) {
    %c0_i32 = arith.constant 0 : i32
    %c0_i32_0 = arith.constant 0 : i32
    %c0_i32_1 = arith.constant 0 : i32
    return %arg0, %c0_i32, %c0_i32_0 : i32, i32, i32
  }
  func.func @transform_1(%arg0: i32) -> (i32, i32, i32) {
    %c0_i32 = arith.constant 0 : i32
    %c0_i32_0 = arith.constant 0 : i32
    %c0_i32_1 = arith.constant 0 : i32
    %c0_i32_2 = arith.constant 0 : i32
    return %c0_i32, %c0_i32_0, %c0_i32_1 : i32, i32, i32
  }
  func.func @transform_2(%arg0: i32) -> (i32, i32, i32) {
    %c0_i32 = arith.constant 0 : i32
    %c0_i32_0 = arith.constant 0 : i32
    %c0_i32_1 = arith.constant 0 : i32
    %c0_i32_2 = arith.constant 0 : i32
    return %c0_i32, %c0_i32_0, %c0_i32_1 : i32, i32, i32
  }
  func.func @transform_3(%arg0: i32) -> (i32, i32, i32) {
    %c0_i32 = arith.constant 0 : i32
    %c0_i32_0 = arith.constant 0 : i32
    %c0_i32_1 = arith.constant 0 : i32
    %c0_i32_2 = arith.constant 0 : i32
    return %c0_i32, %c0_i32_0, %c0_i32_1 : i32, i32, i32
  }
  func.func @transform_4(%arg0: i32) -> (i32, i32, i32) {
    %c0_i32 = arith.constant 0 : i32
    %c0_i32_0 = arith.constant 0 : i32
    %c0_i32_1 = arith.constant 0 : i32
    %c0_i32_2 = arith.constant 0 : i32
    return %c0_i32, %c0_i32_0, %c0_i32_1 : i32, i32, i32
  }
  func.func @transform_5(%arg0: i32) -> (i32, i32, i32) {
    %c0_i32 = arith.constant 0 : i32
    %c0_i32_0 = arith.constant 0 : i32
    %c0_i32_1 = arith.constant 0 : i32
    %c0_i32_2 = arith.constant 0 : i32
    return %c0_i32, %c0_i32_0, %c0_i32_1 : i32, i32, i32
  }
  func.func @transform_6(%arg0: i32) -> (i32, i32, i32) {
    %c0_i32 = arith.constant 0 : i32
    %c0_i32_0 = arith.constant 0 : i32
    %c0_i32_1 = arith.constant 0 : i32
    %c0_i32_2 = arith.constant 0 : i32
    return %c0_i32, %c0_i32_0, %c0_i32_1 : i32, i32, i32
  }
  func.func @transform_7(%arg0: i32) -> (i32, i32, i32) {
    %c0_i32 = arith.constant 0 : i32
    %c0_i32_0 = arith.constant 0 : i32
    %c0_i32_1 = arith.constant 0 : i32
    %c0_i32_2 = arith.constant 0 : i32
    return %c0_i32, %c0_i32_0, %c0_i32_1 : i32, i32, i32
  }
  func.func @transform_8(%arg0: i32) -> (i32, i32, i32) {
    %c0_i32 = arith.constant 0 : i32
    %c0_i32_0 = arith.constant 0 : i32
    %c0_i32_1 = arith.constant 0 : i32
    %c0_i32_2 = arith.constant 0 : i32
    return %c0_i32, %c0_i32_0, %c0_i32_1 : i32, i32, i32
  }
  func.func @transform_9(%arg0: i32) -> (i32, i32) {
    %c0_i32 = arith.constant 0 : i32
    %c0_i32_0 = arith.constant 0 : i32
    %c0_i32_1 = arith.constant 0 : i32
    return %c0_i32, %c0_i32_0 : i32, i32
  }
  func.func @transform_10(%arg0: i32) -> (i32, i32) {
    %c0_i32 = arith.constant 0 : i32
    %c0_i32_0 = arith.constant 0 : i32
    %c0_i32_1 = arith.constant 0 : i32
    return %c0_i32, %c0_i32_0 : i32, i32
  }
  func.func @transform_11(%arg0: i32) -> (i32, i32) {
    %c0_i32 = arith.constant 0 : i32
    %c0_i32_0 = arith.constant 0 : i32
    %c0_i32_1 = arith.constant 0 : i32
    return %c0_i32, %c0_i32_0 : i32, i32
  }
  func.func @transform_12(%arg0: i32) -> (i32, i32) {
    %c0_i32 = arith.constant 0 : i32
    %c0_i32_0 = arith.constant 0 : i32
    %c0_i32_1 = arith.constant 0 : i32
    return %c0_i32, %c0_i32_0 : i32, i32
  }
  func.func @transform_13(%arg0: i32) -> (i32, i32) {
    %c0_i32 = arith.constant 0 : i32
    %c0_i32_0 = arith.constant 0 : i32
    %c0_i32_1 = arith.constant 0 : i32
    return %c0_i32, %c0_i32_0 : i32, i32
  }
  func.func @transform_14(%arg0: i32) -> (i32, i32) {
    %c0_i32 = arith.constant 0 : i32
    %c0_i32_0 = arith.constant 0 : i32
    %c0_i32_1 = arith.constant 0 : i32
    return %c0_i32, %c0_i32_0 : i32, i32
  }
  func.func @transform_15(%arg0: i32) -> (i32, i32) {
    %c0_i32 = arith.constant 0 : i32
    %c0_i32_0 = arith.constant 0 : i32
    %c0_i32_1 = arith.constant 0 : i32
    return %c0_i32, %c0_i32_0 : i32, i32
  }
  func.func @transform_16(%arg0: i32) -> (i32, i32) {
    %c0_i32 = arith.constant 0 : i32
    %c0_i32_0 = arith.constant 0 : i32
    %c0_i32_1 = arith.constant 0 : i32
    return %c0_i32, %c0_i32_0 : i32, i32
  }
  func.func @transform_17(%arg0: i32) -> (i32, i32) {
    %c0_i32 = arith.constant 0 : i32
    %c0_i32_0 = arith.constant 0 : i32
    return %arg0, %c0_i32 : i32, i32
  }
}

</mosaic_0001>

<llo_original>
// kernel: tpu_custom_call.1
$region0: #{tpu_custom_call.1}
  #allocation0 [shape = 'u32[]', space=smem, size = 0x4, offset = 0x4, fixed_abs, tag = 'smem constant byte address 0x4 - core index']
  #allocation1 [shape = 'u32[144,128]{1,0:T(1,128)}', space=vmem, size = 0x12000, scoped, tag = 'internal scratch']
  %s0 = inlined_call_operand.vmem [shape: f32[2,8,32], index: 0, kind: input, shape index: {}]
  %s1 = inlined_call_operand.vmem [shape: f32[8,32,8], index: 1, kind: input, shape index: {}]
  %s2 = inlined_call_operand.vmem [shape: f32[8,1,8], index: 2, kind: input, shape index: {}]
  %s3 = inlined_call_operand.vmem [shape: f32[8,32,8], index: 3, kind: input, shape index: {}]
  %s4 = inlined_call_operand.vmem [shape: f32[8,1,8], index: 4, kind: input, shape index: {}]
  %s5 = inlined_call_operand.vmem [shape: f32[8,32,8], index: 5, kind: input, shape index: {}]
  %s6 = inlined_call_operand.vmem [shape: f32[8,1,8], index: 6, kind: input, shape index: {}]
  %s7 = inlined_call_operand.vmem [shape: f32[8,8,32], index: 7, kind: input, shape index: {}]
  %s8 = inlined_call_operand.vmem [shape: f32[8,8,32], index: 8, kind: input, shape index: {}]
  %s9 = inlined_call_operand.vmem [shape: f32[32,32], index: 9, kind: input, shape index: {}]
  %s10 = inlined_call_operand.vmem [shape: f32[32,32], index: 10, kind: input, shape index: {}]
  %s11 = inlined_call_operand.vmem [shape: f32[1,32], index: 11, kind: input, shape index: {}]
  %s12 = inlined_call_operand.vmem [shape: f32[1,32], index: 12, kind: input, shape index: {}]
  %s13 = inlined_call_operand.vmem [shape: f32[32,32], index: 13, kind: input, shape index: {}]
  %s14 = inlined_call_operand.vmem [shape: f32[1,32], index: 14, kind: input, shape index: {}]
  %s15 = inlined_call_operand.vmem [shape: f32[1,32], index: 15, kind: input, shape index: {}]
  %s16 = inlined_call_operand.vmem [shape: f32[1,32], index: 16, kind: input, shape index: {}]
  %s17 = inlined_call_operand.hbm [shape: f32[16,32], index: 17, kind: output, shape index: {}]
  %s18 = sld [smem:[#allocation0]]
  $region78: #{tpu_custom_call.1} parent=0
    _
  %s20 = ssub.s32 1, %s18
  %s21 = scalar_select 0, %s20, %s18
  $region1: #{tpu_custom_call.1} parent=0
    #allocation2 [shape = 'u8[8192]{0}', space=vmem, size = 0x2000, scoped, tag = 'output window, operand 0, single buffered']
    #allocation3 [shape = 's32[1]{0}', space=sflag, size = 0x4, scoped, tag = 'scoped memory for tpu_custom_call.1']
    %22 = vsyncpa [#allocation3], 0
    // Predicated region
    $region2: #{tpu_custom_call.1} parent=1 // pred_check
      _
    $region3: #{tpu_custom_call.1} parent=1 // pred_check_branch
      %24 = sbr.rel (0) target = $region5
    $region4: #{tpu_custom_call.1} parent=1 // pred_region
      _
    $region5: #{tpu_custom_call.1} parent=1 // pred_fallthru
      _
    // Predicated region
    $region6: #{tpu_custom_call.1} parent=1 // pred_check
      _
    $region7: #{tpu_custom_call.1} parent=1 // pred_check_branch
      %26 = sbr.rel (0) target = $region9
    $region8: #{tpu_custom_call.1} parent=1 // pred_region
      _
    $region9: #{tpu_custom_call.1} parent=1 // pred_fallthru
      _
    // Predicated region
    $region10: #{tpu_custom_call.1} parent=1 // pred_check
      _
    $region11: #{tpu_custom_call.1} parent=1 // pred_check_branch
      %28 = sbr.rel (0) target = $region13
    $region12: #{tpu_custom_call.1} parent=1 // pred_region
      _
    $region13: #{tpu_custom_call.1} parent=1 // pred_fallthru
      _
    // Predicated region
    $region14: #{tpu_custom_call.1} parent=1 // pred_check
      _
    $region15: #{tpu_custom_call.1} parent=1 // pred_check_branch
      %30 = sbr.rel (0) target = $region17
    $region16: #{tpu_custom_call.1} parent=1 // pred_region
      _
    $region17: #{tpu_custom_call.1} parent=1 // pred_fallthru
      _
    // Predicated region
    $region18: #{tpu_custom_call.1} parent=1 // pred_check
      _
    $region19: #{tpu_custom_call.1} parent=1 // pred_check_branch
      %32 = sbr.rel (0) target = $region21
    $region20: #{tpu_custom_call.1} parent=1 // pred_region
      _
    $region21: #{tpu_custom_call.1} parent=1 // pred_fallthru
      _
    // Predicated region
    $region22: #{tpu_custom_call.1} parent=1 // pred_check
      _
    $region23: #{tpu_custom_call.1} parent=1 // pred_check_branch
      %34 = sbr.rel (0) target = $region25
    $region24: #{tpu_custom_call.1} parent=1 // pred_region
      _
    $region25: #{tpu_custom_call.1} parent=1 // pred_fallthru
      _
    // Predicated region
    $region26: #{tpu_custom_call.1} parent=1 // pred_check
      _
    $region27: #{tpu_custom_call.1} parent=1 // pred_check_branch
      %36 = sbr.rel (0) target = $region29
    $region28: #{tpu_custom_call.1} parent=1 // pred_region
      _
    $region29: #{tpu_custom_call.1} parent=1 // pred_fallthru
      _
    // Predicated region
    $region30: #{tpu_custom_call.1} parent=1 // pred_check
      _
    $region31: #{tpu_custom_call.1} parent=1 // pred_check_branch
      %38 = sbr.rel (0) target = $region33
    $region32: #{tpu_custom_call.1} parent=1 // pred_region
      _
    $region33: #{tpu_custom_call.1} parent=1 // pred_fallthru
      _
    // Predicated region
    $region34: #{tpu_custom_call.1} parent=1 // pred_check
      _
    $region35: #{tpu_custom_call.1} parent=1 // pred_check_branch
      %40 = sbr.rel (0) target = $region37
    $region36: #{tpu_custom_call.1} parent=1 // pred_region
      _
    $region37: #{tpu_custom_call.1} parent=1 // pred_fallthru
      _
    // Predicated region
    $region38: #{tpu_custom_call.1} parent=1 // pred_check
      _
    $region39: #{tpu_custom_call.1} parent=1 // pred_check_branch
      %42 = sbr.rel (0) target = $region41
    $region40: #{tpu_custom_call.1} parent=1 // pred_region
      _
    $region41: #{tpu_custom_call.1} parent=1 // pred_fallthru
      _
    // Predicated region
    $region42: #{tpu_custom_call.1} parent=1 // pred_check
      _
    $region43: #{tpu_custom_call.1} parent=1 // pred_check_branch
      %44 = sbr.rel (0) target = $region45
    $region44: #{tpu_custom_call.1} parent=1 // pred_region
      _
    $region45: #{tpu_custom_call.1} parent=1 // pred_fallthru
      _
    // Predicated region
    $region46: #{tpu_custom_call.1} parent=1 // pred_check
      _
    $region47: #{tpu_custom_call.1} parent=1 // pred_check_branch
      %46 = sbr.rel (0) target = $region49
    $region48: #{tpu_custom_call.1} parent=1 // pred_region
      _
    $region49: #{tpu_custom_call.1} parent=1 // pred_fallthru
      _
    // Predicated region
    $region50: #{tpu_custom_call.1} parent=1 // pred_check
      _
    $region51: #{tpu_custom_call.1} parent=1 // pred_check_branch
      %48 = sbr.rel (0) target = $region53
    $region52: #{tpu_custom_call.1} parent=1 // pred_region
      _
    $region53: #{tpu_custom_call.1} parent=1 // pred_fallthru
      _
    // Predicated region
    $region54: #{tpu_custom_call.1} parent=1 // pred_check
      _
    $region55: #{tpu_custom_call.1} parent=1 // pred_check_branch
      %50 = sbr.rel (0) target = $region57
    $region56: #{tpu_custom_call.1} parent=1 // pred_region
      _
    $region57: #{tpu_custom_call.1} parent=1 // pred_fallthru
      _
    // Predicated region
    $region58: #{tpu_custom_call.1} parent=1 // pred_check
      _
    $region59: #{tpu_custom_call.1} parent=1 // pred_check_branch
      %52 = sbr.rel (0) target = $region61
    $region60: #{tpu_custom_call.1} parent=1 // pred_region
      _
    $region61: #{tpu_custom_call.1} parent=1 // pred_fallthru
      _
    // Predicated region
    $region62: #{tpu_custom_call.1} parent=1 // pred_check
      _
    $region63: #{tpu_custom_call.1} parent=1 // pred_check_branch
      %54 = sbr.rel (0) target = $region65
    $region64: #{tpu_custom_call.1} parent=1 // pred_region
      _
    $region65: #{tpu_custom_call.1} parent=1 // pred_fallthru
      _
    // Predicated region
    $region66: #{tpu_custom_call.1} parent=1 // pred_check
      _
    $region67: #{tpu_custom_call.1} parent=1 // pred_check_branch
      %56 = sbr.rel (0) target = $region69
    $region68: #{tpu_custom_call.1} parent=1 // pred_region
      _
    $region69: #{tpu_custom_call.1} parent=1 // pred_fallthru
      _
    %v57 = vld [vmem:[%s0] sm:$0xff]
    %v58 = vld [vmem:[%s0 + $0x8] sm:$0xff]
    %v59 = vld [vmem:[%s1] sm:$0xff]
    %v60 = vld [vmem:[%s1 + $0x8] sm:$0xff]
    %v61 = vld [vmem:[%s1 + $0x10] sm:$0xff]
    %v62 = vld [vmem:[%s1 + $0x18] sm:$0xff]
    %v63 = vld [vmem:[%s1 + $0x20] sm:$0xff]
    %v64 = vld [vmem:[%s1 + $0x28] sm:$0xff]
    %v65 = vld [vmem:[%s1 + $0x30] sm:$0xff]
    %v66 = vld [vmem:[%s1 + $0x38] sm:$0xff]
    %v67 = vld [vmem:[%s1 + $0x40] sm:$0xff]
    %v68 = vld [vmem:[%s1 + $0x48] sm:$0xff]
    %v69 = vld [vmem:[%s1 + $0x50] sm:$0xff]
    %v70 = vld [vmem:[%s1 + $0x58] sm:$0xff]
    %v71 = vld [vmem:[%s1 + $0x60] sm:$0xff]
    %v72 = vld [vmem:[%s1 + $0x68] sm:$0xff]
    %v73 = vld [vmem:[%s1 + $0x70] sm:$0xff]
    %v74 = vld [vmem:[%s1 + $0x78] sm:$0xff]
    %v75 = vld [vmem:[%s1 + $0x80] sm:$0xff]
    %v76 = vld [vmem:[%s1 + $0x88] sm:$0xff]
    %v77 = vld [vmem:[%s1 + $0x90] sm:$0xff]
    %v78 = vld [vmem:[%s1 + $0x98] sm:$0xff]
    %v79 = vld [vmem:[%s1 + $0xa0] sm:$0xff]
    %v80 = vld [vmem:[%s1 + $0xa8] sm:$0xff]
    %v81 = vld [vmem:[%s1 + $0xb0] sm:$0xff]
    %v82 = vld [vmem:[%s1 + $0xb8] sm:$0xff]
    %v83 = vld [vmem:[%s1 + $0xc0] sm:$0xff]
    %v84 = vld [vmem:[%s1 + $0xc8] sm:$0xff]
    %v85 = vld [vmem:[%s1 + $0xd0] sm:$0xff]
    %v86 = vld [vmem:[%s1 + $0xd8] sm:$0xff]
    %v87 = vld [vmem:[%s1 + $0xe0] sm:$0xff]
    %v88 = vld [vmem:[%s1 + $0xe8] sm:$0xff]
    %v89 = vld [vmem:[%s1 + $0xf0] sm:$0xff]
    %v90 = vld [vmem:[%s1 + $0xf8] sm:$0xff]
    %v91 = vld [vmem:[%s2] sm:$0x1]
    %v92 = vld [vmem:[%s2 + $0x1] sm:$0x1]
    %v93 = vld [vmem:[%s2 + $0x2] sm:$0x1]
    %v94 = vld [vmem:[%s2 + $0x3] sm:$0x1]
    %v95 = vld [vmem:[%s2 + $0x4] sm:$0x1]
    %v96 = vld [vmem:[%s2 + $0x5] sm:$0x1]
    %v97 = vld [vmem:[%s2 + $0x6] sm:$0x1]
    %v98 = vld [vmem:[%s2 + $0x7] sm:$0x1]
    %v107 = vlaneseq
    %v108 = vshrl.u32 %v107, 7
    %v109 = vsub.s32 0, %v108
    %v110 = vrot.slane %v91, %v109
    %v111 = vlaneseq
    %v112 = vshrl.u32 %v111, 7
    %v113 = vsub.s32 0, %v112
    %v114 = vrot.slane %v92, %v113
    %v115 = vlaneseq
    %v116 = vshrl.u32 %v115, 7
    %v117 = vsub.s32 0, %v116
    %v118 = vrot.slane %v93, %v117
    %v119 = vlaneseq
    %v120 = vshrl.u32 %v119, 7
    %v121 = vsub.s32 0, %v120
    %v122 = vrot.slane %v94, %v121
    %v123 = vlaneseq
    %v124 = vshrl.u32 %v123, 7
    %v125 = vsub.s32 0, %v124
    %v126 = vrot.slane %v95, %v125
    %v127 = vlaneseq
    %v128 = vshrl.u32 %v127, 7
    %v129 = vsub.s32 0, %v128
    %v130 = vrot.slane %v96, %v129
    %v131 = vlaneseq
    %v132 = vshrl.u32 %v131, 7
    %v133 = vsub.s32 0, %v132
    %v134 = vrot.slane %v97, %v133
    %v135 = vlaneseq
    %v136 = vshrl.u32 %v135, 7
    %v137 = vsub.s32 0, %v136
    %v138 = vrot.slane %v98, %v137
    %vm147 = vcmask 261120
    %v149 = vsel %vm147, %v57, 0
    %151 = vmatprep.subr.mxu0 0.0
    %152 = vmatpush1.msra.mxu0 %v59
    %153 = vmatprep.subr.mxu0 0.0
    %154 = vmatpush1.msra.mxu0 %v60
    %155 = vmatprep.subr.mxu0 0.0
    %156 = vmatpush1.msra.mxu0 %v61
    %157 = vmatprep.subr.mxu0 0.0
    %158 = vmatpush1.msra.mxu0 %v62
    %159 = vmatprep.subr.mxu0 0.0
    %160 = vmatpush1.msra.mxu0 0.0
    %161 = vmatprep.subr.mxu0 0.0
    %162 = vmatpush1.msra.mxu0 0.0
    %163 = vmatprep.subr.mxu0 0.0
    %164 = vmatpush1.msra.mxu0 0.0
    %165 = vmatprep.subr.mxu0 0.0
    %166 = vmatpush1.msra.mxu0 0.0
    %167 = vmatprep.subr.mxu0 0.0
    %168 = vmatpush1.msra.mxu0 0.0
    %169 = vmatprep.subr.mxu0 0.0
    %170 = vmatpush1.msra.mxu0 0.0
    %171 = vmatprep.subr.mxu0 0.0
    %172 = vmatpush1.msra.mxu0 0.0
    %173 = vmatprep.subr.mxu0 0.0
    %174 = vmatpush1.msra.mxu0 0.0
    %175 = vmatprep.subr.mxu0 0.0
    %176 = vmatpush1.msra.mxu0 0.0
    %177 = vmatprep.subr.mxu0 0.0
    %178 = vmatpush1.msra.mxu0 0.0
    %179 = vmatprep.subr.mxu0 0.0
    %180 = vmatpush1.msra.mxu0 0.0
    %181 = vmatprep.subr.mxu0 0.0
    %182 = vmatpush1.msra.mxu0 0.0
    %183 = vmatprep.subr.mxu0 0.0
    %184 = vmatpush1.msra.mxu0 0.0
    %185 = vmatprep.subr.mxu0 0.0
    %186 = vmatpush1.msra.mxu0 0.0
    %187 = vmatprep.subr.mxu0 0.0
    %188 = vmatpush1.msra.mxu0 0.0
    %189 = vmatprep.subr.mxu0 0.0
    %190 = vmatpush1.msra.mxu0 0.0
    %191 = vmatprep.subr.mxu0 0.0
    %192 = vmatpush1.msra.mxu0 0.0
    %193 = vmatprep.subr.mxu0 0.0
    %194 = vmatpush1.msra.mxu0 0.0
    %195 = vmatprep.subr.mxu0 0.0
    %196 = vmatpush1.msra.mxu0 0.0
    %197 = vmatprep.subr.mxu0 0.0
    %198 = vmatpush1.msra.mxu0 0.0
    %199 = vmatprep.subr.mxu0 0.0
    %200 = vmatpush1.msra.mxu0 0.0
    %201 = vmatprep.subr.mxu0 0.0
    %202 = vmatpush1.msra.mxu0 0.0
    %203 = vmatprep.subr.mxu0 0.0
    %204 = vmatpush1.msra.mxu0 0.0
    %205 = vmatprep.subr.mxu0 0.0
    %206 = vmatpush1.msra.mxu0 0.0
    %207 = vmatprep.subr.mxu0 0.0
    %208 = vmatpush1.msra.mxu0 0.0
    %209 = vmatprep.subr.mxu0 0.0
    %210 = vmatpush1.msra.mxu0 0.0
    %211 = vmatprep.subr.mxu0 0.0
    %212 = vmatpush1.msra.mxu0 0.0
    %213 = vmatprep.subr.mxu0 0.0
    %214 = vmatpush1.msra.mxu0 0.0
    %215 = vmatprep.mubr.f32.mxu0 0.0
    %216 = vmatmul.mubr.f32.gmra.mrb[0].mxu0 %v149
    %v217 = vpop.f32.mrb[0].mxu0
    %v218 = vadd.f32 %v110, %v217
    %v219 = vpop.f32.mrb[0].mxu0
    %220 = vdwg.mxu0
    %221 = vmatprep.subr.mxu0 0.0
    %222 = vmatpush1.msra.mxu0 %v63
    %223 = vmatprep.subr.mxu0 0.0
    %224 = vmatpush1.msra.mxu0 %v64
    %225 = vmatprep.subr.mxu0 0.0
    %226 = vmatpush1.msra.mxu0 %v65
    %227 = vmatprep.subr.mxu0 0.0
    %228 = vmatpush1.msra.mxu0 %v66
    %229 = vmatprep.subr.mxu0 0.0
    %230 = vmatpush1.msra.mxu0 0.0
    %231 = vmatprep.subr.mxu0 0.0
    %232 = vmatpush1.msra.mxu0 0.0
    %233 = vmatprep.subr.mxu0 0.0
    %234 = vmatpush1.msra.mxu0 0.0
    %235 = vmatprep.subr.mxu0 0.0
    %236 = vmatpush1.msra.mxu0 0.0
    %237 = vmatprep.subr.mxu0 0.0
    %238 = vmatpush1.msra.mxu0 0.0
    %239 = vmatprep.subr.mxu0 0.0
    %240 = vmatpush1.msra.mxu0 0.0
    %241 = vmatprep.subr.mxu0 0.0
    %242 = vmatpush1.msra.mxu0 0.0
    %243 = vmatprep.subr.mxu0 0.0
    %244 = vmatpush1.msra.mxu0 0.0
    %245 = vmatprep.subr.mxu0 0.0
    %246 = vmatpush1.msra.mxu0 0.0
    %247 = vmatprep.subr.mxu0 0.0
    %248 = vmatpush1.msra.mxu0 0.0
    %249 = vmatprep.subr.mxu0 0.0
    %250 = vmatpush1.msra.mxu0 0.0
    %251 = vmatprep.subr.mxu0 0.0
    %252 = vmatpush1.msra.mxu0 0.0
    %253 = vmatprep.subr.mxu0 0.0
    %254 = vmatpush1.msra.mxu0 0.0
    %255 = vmatprep.subr.mxu0 0.0
    %256 = vmatpush1.msra.mxu0 0.0
    %257 = vmatprep.subr.mxu0 0.0
    %258 = vmatpush1.msra.mxu0 0.0
    %259 = vmatprep.subr.mxu0 0.0
    %260 = vmatpush1.msra.mxu0 0.0
    %261 = vmatprep.subr.mxu0 0.0
    %262 = vmatpush1.msra.mxu0 0.0
    %263 = vmatprep.subr.mxu0 0.0
    %264 = vmatpush1.msra.mxu0 0.0
    %265 = vmatprep.subr.mxu0 0.0
    %266 = vmatpush1.msra.mxu0 0.0
    %267 = vmatprep.subr.mxu0 0.0
    %268 = vmatpush1.msra.mxu0 0.0
    %269 = vmatprep.subr.mxu0 0.0
    %270 = vmatpush1.msra.mxu0 0.0
    %271 = vmatprep.subr.mxu0 0.0
    %272 = vmatpush1.msra.mxu0 0.0
    %273 = vmatprep.subr.mxu0 0.0
    %274 = vmatpush1.msra.mxu0 0.0
    %275 = vmatprep.subr.mxu0 0.0
    %276 = vmatpush1.msra.mxu0 0.0
    %277 = vmatprep.subr.mxu0 0.0
    %278 = vmatpush1.msra.mxu0 0.0
    %279 = vmatprep.subr.mxu0 0.0
    %280 = vmatpush1.msra.mxu0 0.0
    %281 = vmatprep.subr.mxu0 0.0
    %282 = vmatpush1.msra.mxu0 0.0
    %283 = vmatprep.subr.mxu0 0.0
    %284 = vmatpush1.msra.mxu0 0.0
    %285 = vmatprep.mubr.f32.mxu0 0.0
    %286 = vmatmul.mubr.f32.gmra.mrb[0].mxu0 %v149
    %v287 = vpop.f32.mrb[0].mxu0
    %v288 = vadd.f32 %v114, %v287
    %v289 = vpop.f32.mrb[0].mxu0
    %290 = vdwg.mxu0
    %291 = vmatprep.subr.mxu0 0.0
    %292 = vmatpush1.msra.mxu0 %v67
    %293 = vmatprep.subr.mxu0 0.0
    %294 = vmatpush1.msra.mxu0 %v68
    %295 = vmatprep.subr.mxu0 0.0
    %296 = vmatpush1.msra.mxu0 %v69
    %297 = vmatprep.subr.mxu0 0.0
    %298 = vmatpush1.msra.mxu0 %v70
    %299 = vmatprep.subr.mxu0 0.0
    %300 = vmatpush1.msra.mxu0 0.0
    %301 = vmatprep.subr.mxu0 0.0
    %302 = vmatpush1.msra.mxu0 0.0
    %303 = vmatprep.subr.mxu0 0.0
    %304 = vmatpush1.msra.mxu0 0.0
    %305 = vmatprep.subr.mxu0 0.0
    %306 = vmatpush1.msra.mxu0 0.0
    %307 = vmatprep.subr.mxu0 0.0
    %308 = vmatpush1.msra.mxu0 0.0
    %309 = vmatprep.subr.mxu0 0.0
    %310 = vmatpush1.msra.mxu0 0.0
    %311 = vmatprep.subr.mxu0 0.0
    %312 = vmatpush1.msra.mxu0 0.0
    %313 = vmatprep.subr.mxu0 0.0
    %314 = vmatpush1.msra.mxu0 0.0
    %315 = vmatprep.subr.mxu0 0.0
    %316 = vmatpush1.msra.mxu0 0.0
    %317 = vmatprep.subr.mxu0 0.0
    %318 = vmatpush1.msra.mxu0 0.0
    %319 = vmatprep.subr.mxu0 0.0
    %320 = vmatpush1.msra.mxu0 0.0
    %321 = vmatprep.subr.mxu0 0.0
    %322 = vmatpush1.msra.mxu0 0.0
    %323 = vmatprep.subr.mxu0 0.0
    %324 = vmatpush1.msra.mxu0 0.0
    %325 = vmatprep.subr.mxu0 0.0
    %326 = vmatpush1.msra.mxu0 0.0
    %327 = vmatprep.subr.mxu0 0.0
    %328 = vmatpush1.msra.mxu0 0.0
    %329 = vmatprep.subr.mxu0 0.0
    %330 = vmatpush1.msra.mxu0 0.0
    %331 = vmatprep.subr.mxu0 0.0
    %332 = vmatpush1.msra.mxu0 0.0
    %333 = vmatprep.subr.mxu0 0.0
    %334 = vmatpush1.msra.mxu0 0.0
    %335 = vmatprep.subr.mxu0 0.0
    %336 = vmatpush1.msra.mxu0 0.0
    %337 = vmatprep.subr.mxu0 0.0
    %338 = vmatpush1.msra.mxu0 0.0
    %339 = vmatprep.subr.mxu0 0.0
    %340 = vmatpush1.msra.mxu0 0.0
    %341 = vmatprep.subr.mxu0 0.0
    %342 = vmatpush1.msra.mxu0 0.0
    %343 = vmatprep.subr.mxu0 0.0
    %344 = vmatpush1.msra.mxu0 0.0
    %345 = vmatprep.subr.mxu0 0.0
    %346 = vmatpush1.msra.mxu0 0.0
    %347 = vmatprep.subr.mxu0 0.0
    %348 = vmatpush1.msra.mxu0 0.0
    %349 = vmatprep.subr.mxu0 0.0
    %350 = vmatpush1.msra.mxu0 0.0
    %351 = vmatprep.subr.mxu0 0.0
    %352 = vmatpush1.msra.mxu0 0.0
    %353 = vmatprep.subr.mxu0 0.0
    %354 = vmatpush1.msra.mxu0 0.0
    %355 = vmatprep.mubr.f32.mxu0 0.0
    %356 = vmatmul.mubr.f32.gmra.mrb[0].mxu0 %v149
    %v357 = vpop.f32.mrb[0].mxu0
    %v358 = vadd.f32 %v118, %v357
    %v359 = vpop.f32.mrb[0].mxu0
    %360 = vdwg.mxu0
    %361 = vmatprep.subr.mxu0 0.0
    %362 = vmatpush1.msra.mxu0 %v71
    %363 = vmatprep.subr.mxu0 0.0
    %364 = vmatpush1.msra.mxu0 %v72
    %365 = vmatprep.subr.mxu0 0.0
    %366 = vmatpush1.msra.mxu0 %v73
    %367 = vmatprep.subr.mxu0 0.0
    %368 = vmatpush1.msra.mxu0 %v74
    %369 = vmatprep.subr.mxu0 0.0
    %370 = vmatpush1.msra.mxu0 0.0
    %371 = vmatprep.subr.mxu0 0.0
    %372 = vmatpush1.msra.mxu0 0.0
    %373 = vmatprep.subr.mxu0 0.0
    %374 = vmatpush1.msra.mxu0 0.0
    %375 = vmatprep.subr.mxu0 0.0
    %376 = vmatpush1.msra.mxu0 0.0
    %377 = vmatprep.subr.mxu0 0.0
    %378 = vmatpush1.msra.mxu0 0.0
    %379 = vmatprep.subr.mxu0 0.0
    %380 = vmatpush1.msra.mxu0 0.0
    %381 = vmatprep.subr.mxu0 0.0
    %382 = vmatpush1.msra.mxu0 0.0
    %383 = vmatprep.subr.mxu0 0.0
    %384 = vmatpush1.msra.mxu0 0.0
    %385 = vmatprep.subr.mxu0 0.0
    %386 = vmatpush1.msra.mxu0 0.0
    %387 = vmatprep.subr.mxu0 0.0
    %388 = vmatpush1.msra.mxu0 0.0
    %389 = vmatprep.subr.mxu0 0.0
    %390 = vmatpush1.msra.mxu0 0.0
    %391 = vmatprep.subr.mxu0 0.0
    %392 = vmatpush1.msra.mxu0 0.0
    %393 = vmatprep.subr.mxu0 0.0
    %394 = vmatpush1.msra.mxu0 0.0
    %395 = vmatprep.subr.mxu0 0.0
    %396 = vmatpush1.msra.mxu0 0.0
    %397 = vmatprep.subr.mxu0 0.0
    %398 = vmatpush1.msra.mxu0 0.0
    %399 = vmatprep.subr.mxu0 0.0
    %400 = vmatpush1.msra.mxu0 0.0
    %401 = vmatprep.subr.mxu0 0.0
    %402 = vmatpush1.msra.mxu0 0.0
    %403 = vmatprep.subr.mxu0 0.0
    %404 = vmatpush1.msra.mxu0 0.0
    %405 = vmatprep.subr.mxu0 0.0
    %406 = vmatpush1.msra.mxu0 0.0
    %407 = vmatprep.subr.mxu0 0.0
    %408 = vmatpush1.msra.mxu0 0.0
    %409 = vmatprep.subr.mxu0 0.0
    %410 = vmatpush1.msra.mxu0 0.0
    %411 = vmatprep.subr.mxu0 0.0
    %412 = vmatpush1.msra.mxu0 0.0
    %413 = vmatprep.subr.mxu0 0.0
    %414 = vmatpush1.msra.mxu0 0.0
    %415 = vmatprep.subr.mxu0 0.0
    %416 = vmatpush1.msra.mxu0 0.0
    %417 = vmatprep.subr.mxu0 0.0
    %418 = vmatpush1.msra.mxu0 0.0
    %419 = vmatprep.subr.mxu0 0.0
    %420 = vmatpush1.msra.mxu0 0.0
    %421 = vmatprep.subr.mxu0 0.0
    %422 = vmatpush1.msra.mxu0 0.0
    %423 = vmatprep.subr.mxu0 0.0
    %424 = vmatpush1.msra.mxu0 0.0
    %425 = vmatprep.mubr.f32.mxu0 0.0
    %426 = vmatmul.mubr.f32.gmra.mrb[0].mxu0 %v149
    %v427 = vpop.f32.mrb[0].mxu0
    %v428 = vadd.f32 %v122, %v427
    %v429 = vpop.f32.mrb[0].mxu0
    %430 = vdwg.mxu0
    %v432 = vsel %vm147, %v58, 0
    %434 = vmatprep.subr.mxu0 0.0
    %435 = vmatpush1.msra.mxu0 %v75
    %436 = vmatprep.subr.mxu0 0.0
    %437 = vmatpush1.msra.mxu0 %v76
    %438 = vmatprep.subr.mxu0 0.0
    %439 = vmatpush1.msra.mxu0 %v77
    %440 = vmatprep.subr.mxu0 0.0
    %441 = vmatpush1.msra.mxu0 %v78
    %442 = vmatprep.subr.mxu0 0.0
    %443 = vmatpush1.msra.mxu0 0.0
    %444 = vmatprep.subr.mxu0 0.0
    %445 = vmatpush1.msra.mxu0 0.0
    %446 = vmatprep.subr.mxu0 0.0
    %447 = vmatpush1.msra.mxu0 0.0
    %448 = vmatprep.subr.mxu0 0.0
    %449 = vmatpush1.msra.mxu0 0.0
    %450 = vmatprep.subr.mxu0 0.0
    %451 = vmatpush1.msra.mxu0 0.0
    %452 = vmatprep.subr.mxu0 0.0
    %453 = vmatpush1.msra.mxu0 0.0
    %454 = vmatprep.subr.mxu0 0.0
    %455 = vmatpush1.msra.mxu0 0.0
    %456 = vmatprep.subr.mxu0 0.0
    %457 = vmatpush1.msra.mxu0 0.0
    %458 = vmatprep.subr.mxu0 0.0
    %459 = vmatpush1.msra.mxu0 0.0
    %460 = vmatprep.subr.mxu0 0.0
    %461 = vmatpush1.msra.mxu0 0.0
    %462 = vmatprep.subr.mxu0 0.0
    %463 = vmatpush1.msra.mxu0 0.0
    %464 = vmatprep.subr.mxu0 0.0
    %465 = vmatpush1.msra.mxu0 0.0
    %466 = vmatprep.subr.mxu0 0.0
    %467 = vmatpush1.msra.mxu0 0.0
    %468 = vmatprep.subr.mxu0 0.0
    %469 = vmatpush1.msra.mxu0 0.0
    %470 = vmatprep.subr.mxu0 0.0
    %471 = vmatpush1.msra.mxu0 0.0
    %472 = vmatprep.subr.mxu0 0.0
    %473 = vmatpush1.msra.mxu0 0.0
    %474 = vmatprep.subr.mxu0 0.0
    %475 = vmatpush1.msra.mxu0 0.0
    %476 = vmatprep.subr.mxu0 0.0
    %477 = vmatpush1.msra.mxu0 0.0
    %478 = vmatprep.subr.mxu0 0.0
    %479 = vmatpush1.msra.mxu0 0.0
    %480 = vmatprep.subr.mxu0 0.0
    %481 = vmatpush1.msra.mxu0 0.0
    %482 = vmatprep.subr.mxu0 0.0
    %483 = vmatpush1.msra.mxu0 0.0
    %484 = vmatprep.subr.mxu0 0.0
    %485 = vmatpush1.msra.mxu0 0.0
    %486 = vmatprep.subr.mxu0 0.0
    %487 = vmatpush1.msra.mxu0 0.0
    %488 = vmatprep.subr.mxu0 0.0
    %489 = vmatpush1.msra.mxu0 0.0
    %490 = vmatprep.subr.mxu0 0.0
    %491 = vmatpush1.msra.mxu0 0.0
    %492 = vmatprep.subr.mxu0 0.0
    %493 = vmatpush1.msra.mxu0 0.0
    %494 = vmatprep.subr.mxu0 0.0
    %495 = vmatpush1.msra.mxu0 0.0
    %496 = vmatprep.subr.mxu0 0.0
    %497 = vmatpush1.msra.mxu0 0.0
    %498 = vmatprep.mubr.f32.mxu0 0.0
    %499 = vmatmul.mubr.f32.gmra.mrb[0].mxu0 %v432
    %v500 = vpop.f32.mrb[0].mxu0
    %v501 = vadd.f32 %v126, %v500
    %v502 = vpop.f32.mrb[0].mxu0
    %503 = vdwg.mxu0
    %504 = vmatprep.subr.mxu0 0.0
    %505 = vmatpush1.msra.mxu0 %v79
    %506 = vmatprep.subr.mxu0 0.0
    %507 = vmatpush1.msra.mxu0 %v80
    %508 = vmatprep.subr.mxu0 0.0
    %509 = vmatpush1.msra.mxu0 %v81
    %510 = vmatprep.subr.mxu0 0.0
    %511 = vmatpush1.msra.mxu0 %v82
    %512 = vmatprep.subr.mxu0 0.0
    %513 = vmatpush1.msra.mxu0 0.0
    %514 = vmatprep.subr.mxu0 0.0
    %515 = vmatpush1.msra.mxu0 0.0
    %516 = vmatprep.subr.mxu0 0.0
    %517 = vmatpush1.msra.mxu0 0.0
    %518 = vmatprep.subr.mxu0 0.0
    %519 = vmatpush1.msra.mxu0 0.0
    %520 = vmatprep.subr.mxu0 0.0
    %521 = vmatpush1.msra.mxu0 0.0
    %522 = vmatprep.subr.mxu0 0.0
    %523 = vmatpush1.msra.mxu0 0.0
    %524 = vmatprep.subr.mxu0 0.0
    %525 = vmatpush1.msra.mxu0 0.0
    %526 = vmatprep.subr.mxu0 0.0
    %527 = vmatpush1.msra.mxu0 0.0
    %528 = vmatprep.subr.mxu0 0.0
    %529 = vmatpush1.msra.mxu0 0.0
    %530 = vmatprep.subr.mxu0 0.0
    %531 = vmatpush1.msra.mxu0 0.0
    %532 = vmatprep.subr.mxu0 0.0
    %533 = vmatpush1.msra.mxu0 0.0
    %534 = vmatprep.subr.mxu0 0.0
    %535 = vmatpush1.msra.mxu0 0.0
    %536 = vmatprep.subr.mxu0 0.0
    %537 = vmatpush1.msra.mxu0 0.0
    %538 = vmatprep.subr.mxu0 0.0
    %539 = vmatpush1.msra.mxu0 0.0
    %540 = vmatprep.subr.mxu0 0.0
    %541 = vmatpush1.msra.mxu0 0.0
    %542 = vmatprep.subr.mxu0 0.0
    %543 = vmatpush1.msra.mxu0 0.0
    %544 = vmatprep.subr.mxu0 0.0
    %545 = vmatpush1.msra.mxu0 0.0
    %546 = vmatprep.subr.mxu0 0.0
    %547 = vmatpush1.msra.mxu0 0.0
    %548 = vmatprep.subr.mxu0 0.0
    %549 = vmatpush1.msra.mxu0 0.0
    %550 = vmatprep.subr.mxu0 0.0
    %551 = vmatpush1.msra.mxu0 0.0
    %552 = vmatprep.subr.mxu0 0.0
    %553 = vmatpush1.msra.mxu0 0.0
    %554 = vmatprep.subr.mxu0 0.0
    %555 = vmatpush1.msra.mxu0 0.0
    %556 = vmatprep.subr.mxu0 0.0
    %557 = vmatpush1.msra.mxu0 0.0
    %558 = vmatprep.subr.mxu0 0.0
    %559 = vmatpush1.msra.mxu0 0.0
    %560 = vmatprep.subr.mxu0 0.0
    %561 = vmatpush1.msra.mxu0 0.0
    %562 = vmatprep.subr.mxu0 0.0
    %563 = vmatpush1.msra.mxu0 0.0
    %564 = vmatprep.subr.mxu0 0.0
    %565 = vmatpush1.msra.mxu0 0.0
    %566 = vmatprep.subr.mxu0 0.0
    %567 = vmatpush1.msra.mxu0 0.0
    %568 = vmatprep.mubr.f32.mxu0 0.0
    %569 = vmatmul.mubr.f32.gmra.mrb[0].mxu0 %v432
    %v570 = vpop.f32.mrb[0].mxu0
    %v571 = vadd.f32 %v130, %v570
    %v572 = vpop.f32.mrb[0].mxu0
    %573 = vdwg.mxu0
    %574 = vmatprep.subr.mxu0 0.0
    %575 = vmatpush1.msra.mxu0 %v83
    %576 = vmatprep.subr.mxu0 0.0
    %577 = vmatpush1.msra.mxu0 %v84
    %578 = vmatprep.subr.mxu0 0.0
    %579 = vmatpush1.msra.mxu0 %v85
    %580 = vmatprep.subr.mxu0 0.0
    %581 = vmatpush1.msra.mxu0 %v86
    %582 = vmatprep.subr.mxu0 0.0
    %583 = vmatpush1.msra.mxu0 0.0
    %584 = vmatprep.subr.mxu0 0.0
    %585 = vmatpush1.msra.mxu0 0.0
    %586 = vmatprep.subr.mxu0 0.0
    %587 = vmatpush1.msra.mxu0 0.0
    %588 = vmatprep.subr.mxu0 0.0
    %589 = vmatpush1.msra.mxu0 0.0
    %590 = vmatprep.subr.mxu0 0.0
    %591 = vmatpush1.msra.mxu0 0.0
    %592 = vmatprep.subr.mxu0 0.0
    %593 = vmatpush1.msra.mxu0 0.0
    %594 = vmatprep.subr.mxu0 0.0
    %595 = vmatpush1.msra.mxu0 0.0
    %596 = vmatprep.subr.mxu0 0.0
    %597 = vmatpush1.msra.mxu0 0.0
    %598 = vmatprep.subr.mxu0 0.0
    %599 = vmatpush1.msra.mxu0 0.0
    %600 = vmatprep.subr.mxu0 0.0
    %601 = vmatpush1.msra.mxu0 0.0
    %602 = vmatprep.subr.mxu0 0.0
    %603 = vmatpush1.msra.mxu0 0.0
    %604 = vmatprep.subr.mxu0 0.0
    %605 = vmatpush1.msra.mxu0 0.0
    %606 = vmatprep.subr.mxu0 0.0
    %607 = vmatpush1.msra.mxu0 0.0
    %608 = vmatprep.subr.mxu0 0.0
    %609 = vmatpush1.msra.mxu0 0.0
    %610 = vmatprep.subr.mxu0 0.0
    %611 = vmatpush1.msra.mxu0 0.0
    %612 = vmatprep.subr.mxu0 0.0
    %613 = vmatpush1.msra.mxu0 0.0
    %614 = vmatprep.subr.mxu0 0.0
    %615 = vmatpush1.msra.mxu0 0.0
    %616 = vmatprep.subr.mxu0 0.0
    %617 = vmatpush1.msra.mxu0 0.0
    %618 = vmatprep.subr.mxu0 0.0
    %619 = vmatpush1.msra.mxu0 0.0
    %620 = vmatprep.subr.mxu0 0.0
    %621 = vmatpush1.msra.mxu0 0.0
    %622 = vmatprep.subr.mxu0 0.0
    %623 = vmatpush1.msra.mxu0 0.0
    %624 = vmatprep.subr.mxu0 0.0
    %625 = vmatpush1.msra.mxu0 0.0
    %626 = vmatprep.subr.mxu0 0.0
    %627 = vmatpush1.msra.mxu0 0.0
    %628 = vmatprep.subr.mxu0 0.0
    %629 = vmatpush1.msra.mxu0 0.0
    %630 = vmatprep.subr.mxu0 0.0
    %631 = vmatpush1.msra.mxu0 0.0
    %632 = vmatprep.subr.mxu0 0.0
    %633 = vmatpush1.msra.mxu0 0.0
    %634 = vmatprep.subr.mxu0 0.0
    %635 = vmatpush1.msra.mxu0 0.0
    %636 = vmatprep.subr.mxu0 0.0
    %637 = vmatpush1.msra.mxu0 0.0
    %638 = vmatprep.mubr.f32.mxu0 0.0
    %639 = vmatmul.mubr.f32.gmra.mrb[0].mxu0 %v432
    %v640 = vpop.f32.mrb[0].mxu0
    %v641 = vadd.f32 %v134, %v640
    %v642 = vpop.f32.mrb[0].mxu0
    %643 = vdwg.mxu0
    %644 = vmatprep.subr.mxu0 0.0
    %645 = vmatpush1.msra.mxu0 %v87
    %646 = vmatprep.subr.mxu0 0.0
    %647 = vmatpush1.msra.mxu0 %v88
    %648 = vmatprep.subr.mxu0 0.0
    %649 = vmatpush1.msra.mxu0 %v89
    %650 = vmatprep.subr.mxu0 0.0
    %651 = vmatpush1.msra.mxu0 %v90
    %652 = vmatprep.subr.mxu0 0.0
    %653 = vmatpush1.msra.mxu0 0.0
    %654 = vmatprep.subr.mxu0 0.0
    %655 = vmatpush1.msra.mxu0 0.0
    %656 = vmatprep.subr.mxu0 0.0
    %657 = vmatpush1.msra.mxu0 0.0
    %658 = vmatprep.subr.mxu0 0.0
    %659 = vmatpush1.msra.mxu0 0.0
    %660 = vmatprep.subr.mxu0 0.0
    %661 = vmatpush1.msra.mxu0 0.0
    %662 = vmatprep.subr.mxu0 0.0
    %663 = vmatpush1.msra.mxu0 0.0
    %664 = vmatprep.subr.mxu0 0.0
    %665 = vmatpush1.msra.mxu0 0.0
    %666 = vmatprep.subr.mxu0 0.0
    %667 = vmatpush1.msra.mxu0 0.0
    %668 = vmatprep.subr.mxu0 0.0
    %669 = vmatpush1.msra.mxu0 0.0
    %670 = vmatprep.subr.mxu0 0.0
    %671 = vmatpush1.msra.mxu0 0.0
    %672 = vmatprep.subr.mxu0 0.0
    %673 = vmatpush1.msra.mxu0 0.0
    %674 = vmatprep.subr.mxu0 0.0
    %675 = vmatpush1.msra.mxu0 0.0
    %676 = vmatprep.subr.mxu0 0.0
    %677 = vmatpush1.msra.mxu0 0.0
    %678 = vmatprep.subr.mxu0 0.0
    %679 = vmatpush1.msra.mxu0 0.0
    %680 = vmatprep.subr.mxu0 0.0
    %681 = vmatpush1.msra.mxu0 0.0
    %682 = vmatprep.subr.mxu0 0.0
    %683 = vmatpush1.msra.mxu0 0.0
    %684 = vmatprep.subr.mxu0 0.0
    %685 = vmatpush1.msra.mxu0 0.0
    %686 = vmatprep.subr.mxu0 0.0
    %687 = vmatpush1.msra.mxu0 0.0
    %688 = vmatprep.subr.mxu0 0.0
    %689 = vmatpush1.msra.mxu0 0.0
    %690 = vmatprep.subr.mxu0 0.0
    %691 = vmatpush1.msra.mxu0 0.0
    %692 = vmatprep.subr.mxu0 0.0
    %693 = vmatpush1.msra.mxu0 0.0
    %694 = vmatprep.subr.mxu0 0.0
    %695 = vmatpush1.msra.mxu0 0.0
    %696 = vmatprep.subr.mxu0 0.0
    %697 = vmatpush1.msra.mxu0 0.0
    %698 = vmatprep.subr.mxu0 0.0
    %699 = vmatpush1.msra.mxu0 0.0
    %700 = vmatprep.subr.mxu0 0.0
    %701 = vmatpush1.msra.mxu0 0.0
    %702 = vmatprep.subr.mxu0 0.0
    %703 = vmatpush1.msra.mxu0 0.0
    %704 = vmatprep.subr.mxu0 0.0
    %705 = vmatpush1.msra.mxu0 0.0
    %706 = vmatprep.subr.mxu0 0.0
    %707 = vmatpush1.msra.mxu0 0.0
    %708 = vmatprep.mubr.f32.mxu0 0.0
    %709 = vmatmul.mubr.f32.gmra.mrb[0].mxu0 %v432
    %v710 = vpop.f32.mrb[0].mxu0
    %v711 = vadd.f32 %v138, %v710
    %v712 = vpop.f32.mrb[0].mxu0
    %713 = vdwg.mxu0
    %v714 = vld [vmem:[%s3] sm:$0xff]
    %v715 = vld [vmem:[%s3 + $0x8] sm:$0xff]
    %v716 = vld [vmem:[%s3 + $0x10] sm:$0xff]
    %v717 = vld [vmem:[%s3 + $0x18] sm:$0xff]
    %v718 = vld [vmem:[%s3 + $0x20] sm:$0xff]
    %v719 = vld [vmem:[%s3 + $0x28] sm:$0xff]
    %v720 = vld [vmem:[%s3 + $0x30] sm:$0xff]
    %v721 = vld [vmem:[%s3 + $0x38] sm:$0xff]
    %v722 = vld [vmem:[%s3 + $0x40] sm:$0xff]
    %v723 = vld [vmem:[%s3 + $0x48] sm:$0xff]
    %v724 = vld [vmem:[%s3 + $0x50] sm:$0xff]
    %v725 = vld [vmem:[%s3 + $0x58] sm:$0xff]
    %v726 = vld [vmem:[%s3 + $0x60] sm:$0xff]
    %v727 = vld [vmem:[%s3 + $0x68] sm:$0xff]
    %v728 = vld [vmem:[%s3 + $0x70] sm:$0xff]
    %v729 = vld [vmem:[%s3 + $0x78] sm:$0xff]
    %v730 = vld [vmem:[%s3 + $0x80] sm:$0xff]
    %v731 = vld [vmem:[%s3 + $0x88] sm:$0xff]
    %v732 = vld [vmem:[%s3 + $0x90] sm:$0xff]
    %v733 = vld [vmem:[%s3 + $0x98] sm:$0xff]
    %v734 = vld [vmem:[%s3 + $0xa0] sm:$0xff]
    %v735 = vld [vmem:[%s3 + $0xa8] sm:$0xff]
    %v736 = vld [vmem:[%s3 + $0xb0] sm:$0xff]
    %v737 = vld [vmem:[%s3 + $0xb8] sm:$0xff]
    %v738 = vld [vmem:[%s3 + $0xc0] sm:$0xff]
    %v739 = vld [vmem:[%s3 + $0xc8] sm:$0xff]
    %v740 = vld [vmem:[%s3 + $0xd0] sm:$0xff]
    %v741 = vld [vmem:[%s3 + $0xd8] sm:$0xff]
    %v742 = vld [vmem:[%s3 + $0xe0] sm:$0xff]
    %v743 = vld [vmem:[%s3 + $0xe8] sm:$0xff]
    %v744 = vld [vmem:[%s3 + $0xf0] sm:$0xff]
    %v745 = vld [vmem:[%s3 + $0xf8] sm:$0xff]
    %v746 = vld [vmem:[%s4] sm:$0x1]
    %v747 = vld [vmem:[%s4 + $0x1] sm:$0x1]
    %v748 = vld [vmem:[%s4 + $0x2] sm:$0x1]
    %v749 = vld [vmem:[%s4 + $0x3] sm:$0x1]
    %v750 = vld [vmem:[%s4 + $0x4] sm:$0x1]
    %v751 = vld [vmem:[%s4 + $0x5] sm:$0x1]
    %v752 = vld [vmem:[%s4 + $0x6] sm:$0x1]
    %v753 = vld [vmem:[%s4 + $0x7] sm:$0x1]
    %v762 = vlaneseq
    %v763 = vshrl.u32 %v762, 7
    %v764 = vsub.s32 0, %v763
    %v765 = vrot.slane %v746, %v764
    %v766 = vlaneseq
    %v767 = vshrl.u32 %v766, 7
    %v768 = vsub.s32 0, %v767
    %v769 = vrot.slane %v747, %v768
    %v770 = vlaneseq
    %v771 = vshrl.u32 %v770, 7
    %v772 = vsub.s32 0, %v771
    %v773 = vrot.slane %v748, %v772
    %v774 = vlaneseq
    %v775 = vshrl.u32 %v774, 7
    %v776 = vsub.s32 0, %v775
    %v777 = vrot.slane %v749, %v776
    %v778 = vlaneseq
    %v779 = vshrl.u32 %v778, 7
    %v780 = vsub.s32 0, %v779
    %v781 = vrot.slane %v750, %v780
    %v782 = vlaneseq
    %v783 = vshrl.u32 %v782, 7
    %v784 = vsub.s32 0, %v783
    %v785 = vrot.slane %v751, %v784
    %v786 = vlaneseq
    %v787 = vshrl.u32 %v786, 7
    %v788 = vsub.s32 0, %v787
    %v789 = vrot.slane %v752, %v788
    %v790 = vlaneseq
    %v791 = vshrl.u32 %v790, 7
    %v792 = vsub.s32 0, %v791
    %v793 = vrot.slane %v753, %v792
    %802 = vmatprep.subr.mxu0 0.0
    %803 = vmatpush1.msra.mxu0 %v714
    %804 = vmatprep.subr.mxu0 0.0
    %805 = vmatpush1.msra.mxu0 %v715
    %806 = vmatprep.subr.mxu0 0.0
    %807 = vmatpush1.msra.mxu0 %v716
    %808 = vmatprep.subr.mxu0 0.0
    %809 = vmatpush1.msra.mxu0 %v717
    %810 = vmatprep.subr.mxu0 0.0
    %811 = vmatpush1.msra.mxu0 0.0
    %812 = vmatprep.subr.mxu0 0.0
    %813 = vmatpush1.msra.mxu0 0.0
    %814 = vmatprep.subr.mxu0 0.0
    %815 = vmatpush1.msra.mxu0 0.0
    %816 = vmatprep.subr.mxu0 0.0
    %817 = vmatpush1.msra.mxu0 0.0
    %818 = vmatprep.subr.mxu0 0.0
    %819 = vmatpush1.msra.mxu0 0.0
    %820 = vmatprep.subr.mxu0 0.0
    %821 = vmatpush1.msra.mxu0 0.0
    %822 = vmatprep.subr.mxu0 0.0
    %823 = vmatpush1.msra.mxu0 0.0
    %824 = vmatprep.subr.mxu0 0.0
    %825 = vmatpush1.msra.mxu0 0.0
    %826 = vmatprep.subr.mxu0 0.0
    %827 = vmatpush1.msra.mxu0 0.0
    %828 = vmatprep.subr.mxu0 0.0
    %829 = vmatpush1.msra.mxu0 0.0
    %830 = vmatprep.subr.mxu0 0.0
    %831 = vmatpush1.msra.mxu0 0.0
    %832 = vmatprep.subr.mxu0 0.0
    %833 = vmatpush1.msra.mxu0 0.0
    %834 = vmatprep.subr.mxu0 0.0
    %835 = vmatpush1.msra.mxu0 0.0
    %836 = vmatprep.subr.mxu0 0.0
    %837 = vmatpush1.msra.mxu0 0.0
    %838 = vmatprep.subr.mxu0 0.0
    %839 = vmatpush1.msra.mxu0 0.0
    %840 = vmatprep.subr.mxu0 0.0
    %841 = vmatpush1.msra.mxu0 0.0
    %842 = vmatprep.subr.mxu0 0.0
    %843 = vmatpush1.msra.mxu0 0.0
    %844 = vmatprep.subr.mxu0 0.0
    %845 = vmatpush1.msra.mxu0 0.0
    %846 = vmatprep.subr.mxu0 0.0
    %847 = vmatpush1.msra.mxu0 0.0
    %848 = vmatprep.subr.mxu0 0.0
    %849 = vmatpush1.msra.mxu0 0.0
    %850 = vmatprep.subr.mxu0 0.0
    %851 = vmatpush1.msra.mxu0 0.0
    %852 = vmatprep.subr.mxu0 0.0
    %853 = vmatpush1.msra.mxu0 0.0
    %854 = vmatprep.subr.mxu0 0.0
    %855 = vmatpush1.msra.mxu0 0.0
    %856 = vmatprep.subr.mxu0 0.0
    %857 = vmatpush1.msra.mxu0 0.0
    %858 = vmatprep.subr.mxu0 0.0
    %859 = vmatpush1.msra.mxu0 0.0
    %860 = vmatprep.subr.mxu0 0.0
    %861 = vmatpush1.msra.mxu0 0.0
    %862 = vmatprep.subr.mxu0 0.0
    %863 = vmatpush1.msra.mxu0 0.0
    %864 = vmatprep.subr.mxu0 0.0
    %865 = vmatpush1.msra.mxu0 0.0
    %866 = vmatprep.mubr.f32.mxu0 0.0
    %867 = vmatmul.mubr.f32.gmra.mrb[0].mxu0 %v149
    %v868 = vpop.f32.mrb[0].mxu0
    %v869 = vadd.f32 %v765, %v868
    %v870 = vpop.f32.mrb[0].mxu0
    %871 = vdwg.mxu0
    %872 = vmatprep.subr.mxu0 0.0
    %873 = vmatpush1.msra.mxu0 %v718
    %874 = vmatprep.subr.mxu0 0.0
    %875 = vmatpush1.msra.mxu0 %v719
    %876 = vmatprep.subr.mxu0 0.0
    %877 = vmatpush1.msra.mxu0 %v720
    %878 = vmatprep.subr.mxu0 0.0
    %879 = vmatpush1.msra.mxu0 %v721
    %880 = vmatprep.subr.mxu0 0.0
    %881 = vmatpush1.msra.mxu0 0.0
    %882 = vmatprep.subr.mxu0 0.0
    %883 = vmatpush1.msra.mxu0 0.0
    %884 = vmatprep.subr.mxu0 0.0
    %885 = vmatpush1.msra.mxu0 0.0
    %886 = vmatprep.subr.mxu0 0.0
    %887 = vmatpush1.msra.mxu0 0.0
    %888 = vmatprep.subr.mxu0 0.0
    %889 = vmatpush1.msra.mxu0 0.0
    %890 = vmatprep.subr.mxu0 0.0
    %891 = vmatpush1.msra.mxu0 0.0
    %892 = vmatprep.subr.mxu0 0.0
    %893 = vmatpush1.msra.mxu0 0.0
    %894 = vmatprep.subr.mxu0 0.0
    %895 = vmatpush1.msra.mxu0 0.0
    %896 = vmatprep.subr.mxu0 0.0
    %897 = vmatpush1.msra.mxu0 0.0
    %898 = vmatprep.subr.mxu0 0.0
    %899 = vmatpush1.msra.mxu0 0.0
    %900 = vmatprep.subr.mxu0 0.0
    %901 = vmatpush1.msra.mxu0 0.0
    %902 = vmatprep.subr.mxu0 0.0
    %903 = vmatpush1.msra.mxu0 0.0
    %904 = vmatprep.subr.mxu0 0.0
    %905 = vmatpush1.msra.mxu0 0.0
    %906 = vmatprep.subr.mxu0 0.0
    %907 = vmatpush1.msra.mxu0 0.0
    %908 = vmatprep.subr.mxu0 0.0
    %909 = vmatpush1.msra.mxu0 0.0
    %910 = vmatprep.subr.mxu0 0.0
    %911 = vmatpush1.msra.mxu0 0.0
    %912 = vmatprep.subr.mxu0 0.0
    %913 = vmatpush1.msra.mxu0 0.0
    %914 = vmatprep.subr.mxu0 0.0
    %915 = vmatpush1.msra.mxu0 0.0
    %916 = vmatprep.subr.mxu0 0.0
    %917 = vmatpush1.msra.mxu0 0.0
    %918 = vmatprep.subr.mxu0 0.0
    %919 = vmatpush1.msra.mxu0 0.0
    %920 = vmatprep.subr.mxu0 0.0
    %921 = vmatpush1.msra.mxu0 0.0
    %922 = vmatprep.subr.mxu0 0.0
    %923 = vmatpush1.msra.mxu0 0.0
    %924 = vmatprep.subr.mxu0 0.0
    %925 = vmatpush1.msra.mxu0 0.0
    %926 = vmatprep.subr.mxu0 0.0
    %927 = vmatpush1.msra.mxu0 0.0
    %928 = vmatprep.subr.mxu0 0.0
    %929 = vmatpush1.msra.mxu0 0.0
    %930 = vmatprep.subr.mxu0 0.0
    %931 = vmatpush1.msra.mxu0 0.0
    %932 = vmatprep.subr.mxu0 0.0
    %933 = vmatpush1.msra.mxu0 0.0
    %934 = vmatprep.subr.mxu0 0.0
    %935 = vmatpush1.msra.mxu0 0.0
    %936 = vmatprep.mubr.f32.mxu0 0.0
    %937 = vmatmul.mubr.f32.gmra.mrb[0].mxu0 %v149
    %v938 = vpop.f32.mrb[0].mxu0
    %v939 = vadd.f32 %v769, %v938
    %v940 = vpop.f32.mrb[0].mxu0
    %941 = vdwg.mxu0
    %942 = vmatprep.subr.mxu0 0.0
    %943 = vmatpush1.msra.mxu0 %v722
    %944 = vmatprep.subr.mxu0 0.0
    %945 = vmatpush1.msra.mxu0 %v723
    %946 = vmatprep.subr.mxu0 0.0
    %947 = vmatpush1.msra.mxu0 %v724
    %948 = vmatprep.subr.mxu0 0.0
    %949 = vmatpush1.msra.mxu0 %v725
    %950 = vmatprep.subr.mxu0 0.0
    %951 = vmatpush1.msra.mxu0 0.0
    %952 = vmatprep.subr.mxu0 0.0
    %953 = vmatpush1.msra.mxu0 0.0
    %954 = vmatprep.subr.mxu0 0.0
    %955 = vmatpush1.msra.mxu0 0.0
    %956 = vmatprep.subr.mxu0 0.0
    %957 = vmatpush1.msra.mxu0 0.0
    %958 = vmatprep.subr.mxu0 0.0
    %959 = vmatpush1.msra.mxu0 0.0
    %960 = vmatprep.subr.mxu0 0.0
    %961 = vmatpush1.msra.mxu0 0.0
    %962 = vmatprep.subr.mxu0 0.0
    %963 = vmatpush1.msra.mxu0 0.0
    %964 = vmatprep.subr.mxu0 0.0
    %965 = vmatpush1.msra.mxu0 0.0
    %966 = vmatprep.subr.mxu0 0.0
    %967 = vmatpush1.msra.mxu0 0.0
    %968 = vmatprep.subr.mxu0 0.0
    %969 = vmatpush1.msra.mxu0 0.0
    %970 = vmatprep.subr.mxu0 0.0
    %971 = vmatpush1.msra.mxu0 0.0
    %972 = vmatprep.subr.mxu0 0.0
    %973 = vmatpush1.msra.mxu0 0.0
    %974 = vmatprep.subr.mxu0 0.0
    %975 = vmatpush1.msra.mxu0 0.0
    %976 = vmatprep.subr.mxu0 0.0
    %977 = vmatpush1.msra.mxu0 0.0
    %978 = vmatprep.subr.mxu0 0.0
    %979 = vmatpush1.msra.mxu0 0.0
    %980 = vmatprep.subr.mxu0 0.0
    %981 = vmatpush1.msra.mxu0 0.0
    %982 = vmatprep.subr.mxu0 0.0
    %983 = vmatpush1.msra.mxu0 0.0
    %984 = vmatprep.subr.mxu0 0.0
    %985 = vmatpush1.msra.mxu0 0.0
    %986 = vmatprep.subr.mxu0 0.0
    %987 = vmatpush1.msra.mxu0 0.0
    %988 = vmatprep.subr.mxu0 0.0
    %989 = vmatpush1.msra.mxu0 0.0
    %990 = vmatprep.subr.mxu0 0.0
    %991 = vmatpush1.msra.mxu0 0.0
    %992 = vmatprep.subr.mxu0 0.0
    %993 = vmatpush1.msra.mxu0 0.0
    %994 = vmatprep.subr.mxu0 0.0
    %995 = vmatpush1.msra.mxu0 0.0
    %996 = vmatprep.subr.mxu0 0.0
    %997 = vmatpush1.msra.mxu0 0.0
    %998 = vmatprep.subr.mxu0 0.0
    %999 = vmatpush1.msra.mxu0 0.0
    %1000 = vmatprep.subr.mxu0 0.0
    %1001 = vmatpush1.msra.mxu0 0.0
    %1002 = vmatprep.subr.mxu0 0.0
    %1003 = vmatpush1.msra.mxu0 0.0
    %1004 = vmatprep.subr.mxu0 0.0
    %1005 = vmatpush1.msra.mxu0 0.0
    %1006 = vmatprep.mubr.f32.mxu0 0.0
    %1007 = vmatmul.mubr.f32.gmra.mrb[0].mxu0 %v149
    %v1008 = vpop.f32.mrb[0].mxu0
    %v1009 = vadd.f32 %v773, %v1008
    %v1010 = vpop.f32.mrb[0].mxu0
    %1011 = vdwg.mxu0
    %1012 = vmatprep.subr.mxu0 0.0
    %1013 = vmatpush1.msra.mxu0 %v726
    %1014 = vmatprep.subr.mxu0 0.0
    %1015 = vmatpush1.msra.mxu0 %v727
    %1016 = vmatprep.subr.mxu0 0.0
    %1017 = vmatpush1.msra.mxu0 %v728
    %1018 = vmatprep.subr.mxu0 0.0
    %1019 = vmatpush1.msra.mxu0 %v729
    %1020 = vmatprep.subr.mxu0 0.0
    %1021 = vmatpush1.msra.mxu0 0.0
    %1022 = vmatprep.subr.mxu0 0.0
    %1023 = vmatpush1.msra.mxu0 0.0
    %1024 = vmatprep.subr.mxu0 0.0
    %1025 = vmatpush1.msra.mxu0 0.0
    %1026 = vmatprep.subr.mxu0 0.0
    %1027 = vmatpush1.msra.mxu0 0.0
    %1028 = vmatprep.subr.mxu0 0.0
    %1029 = vmatpush1.msra.mxu0 0.0
    %1030 = vmatprep.subr.mxu0 0.0
    %1031 = vmatpush1.msra.mxu0 0.0
    %1032 = vmatprep.subr.mxu0 0.0
    %1033 = vmatpush1.msra.mxu0 0.0
    %1034 = vmatprep.subr.mxu0 0.0
    %1035 = vmatpush1.msra.mxu0 0.0
    %1036 = vmatprep.subr.mxu0 0.0
    %1037 = vmatpush1.msra.mxu0 0.0
    %1038 = vmatprep.subr.mxu0 0.0
    %1039 = vmatpush1.msra.mxu0 0.0
    %1040 = vmatprep.subr.mxu0 0.0
    %1041 = vmatpush1.msra.mxu0 0.0
    %1042 = vmatprep.subr.mxu0 0.0
    %1043 = vmatpush1.msra.mxu0 0.0
    %1044 = vmatprep.subr.mxu0 0.0
    %1045 = vmatpush1.msra.mxu0 0.0
    %1046 = vmatprep.subr.mxu0 0.0
    %1047 = vmatpush1.msra.mxu0 0.0
    %1048 = vmatprep.subr.mxu0 0.0
    %1049 = vmatpush1.msra.mxu0 0.0
    %1050 = vmatprep.subr.mxu0 0.0
    %1051 = vmatpush1.msra.mxu0 0.0
    %1052 = vmatprep.subr.mxu0 0.0
    %1053 = vmatpush1.msra.mxu0 0.0
    %1054 = vmatprep.subr.mxu0 0.0
    %1055 = vmatpush1.msra.mxu0 0.0
    %1056 = vmatprep.subr.mxu0 0.0
    %1057 = vmatpush1.msra.mxu0 0.0
    %1058 = vmatprep.subr.mxu0 0.0
    %1059 = vmatpush1.msra.mxu0 0.0
    %1060 = vmatprep.subr.mxu0 0.0
    %1061 = vmatpush1.msra.mxu0 0.0
    %1062 = vmatprep.subr.mxu0 0.0
    %1063 = vmatpush1.msra.mxu0 0.0
    %1064 = vmatprep.subr.mxu0 0.0
    %1065 = vmatpush1.msra.mxu0 0.0
    %1066 = vmatprep.subr.mxu0 0.0
    %1067 = vmatpush1.msra.mxu0 0.0
    %1068 = vmatprep.subr.mxu0 0.0
    %1069 = vmatpush1.msra.mxu0 0.0
    %1070 = vmatprep.subr.mxu0 0.0
    %1071 = vmatpush1.msra.mxu0 0.0
    %1072 = vmatprep.subr.mxu0 0.0
    %1073 = vmatpush1.msra.mxu0 0.0
    %1074 = vmatprep.subr.mxu0 0.0
    %1075 = vmatpush1.msra.mxu0 0.0
    %1076 = vmatprep.mubr.f32.mxu0 0.0
    %1077 = vmatmul.mubr.f32.gmra.mrb[0].mxu0 %v149
    %v1078 = vpop.f32.mrb[0].mxu0
    %v1079 = vadd.f32 %v777, %v1078
    %v1080 = vpop.f32.mrb[0].mxu0
    %1081 = vdwg.mxu0
    %1082 = vmatprep.subr.mxu0 0.0
    %1083 = vmatpush1.msra.mxu0 %v730
    %1084 = vmatprep.subr.mxu0 0.0
    %1085 = vmatpush1.msra.mxu0 %v731
    %1086 = vmatprep.subr.mxu0 0.0
    %1087 = vmatpush1.msra.mxu0 %v732
    %1088 = vmatprep.subr.mxu0 0.0
    %1089 = vmatpush1.msra.mxu0 %v733
    %1090 = vmatprep.subr.mxu0 0.0
    %1091 = vmatpush1.msra.mxu0 0.0
    %1092 = vmatprep.subr.mxu0 0.0
    %1093 = vmatpush1.msra.mxu0 0.0
    %1094 = vmatprep.subr.mxu0 0.0
    %1095 = vmatpush1.msra.mxu0 0.0
    %1096 = vmatprep.subr.mxu0 0.0
    %1097 = vmatpush1.msra.mxu0 0.0
    %1098 = vmatprep.subr.mxu0 0.0
    %1099 = vmatpush1.msra.mxu0 0.0
    %1100 = vmatprep.subr.mxu0 0.0
    %1101 = vmatpush1.msra.mxu0 0.0
    %1102 = vmatprep.subr.mxu0 0.0
    %1103 = vmatpush1.msra.mxu0 0.0
    %1104 = vmatprep.subr.mxu0 0.0
    %1105 = vmatpush1.msra.mxu0 0.0
    %1106 = vmatprep.subr.mxu0 0.0
    %1107 = vmatpush1.msra.mxu0 0.0
    %1108 = vmatprep.subr.mxu0 0.0
    %1109 = vmatpush1.msra.mxu0 0.0
    %1110 = vmatprep.subr.mxu0 0.0
    %1111 = vmatpush1.msra.mxu0 0.0
    %1112 = vmatprep.subr.mxu0 0.0
    %1113 = vmatpush1.msra.mxu0 0.0
    %1114 = vmatprep.subr.mxu0 0.0
    %1115 = vmatpush1.msra.mxu0 0.0
    %1116 = vmatprep.subr.mxu0 0.0
    %1117 = vmatpush1.msra.mxu0 0.0
    %1118 = vmatprep.subr.mxu0 0.0
    %1119 = vmatpush1.msra.mxu0 0.0
    %1120 = vmatprep.subr.mxu0 0.0
    %1121 = vmatpush1.msra.mxu0 0.0
    %1122 = vmatprep.subr.mxu0 0.0
    %1123 = vmatpush1.msra.mxu0 0.0
    %1124 = vmatprep.subr.mxu0 0.0
    %1125 = vmatpush1.msra.mxu0 0.0
    %1126 = vmatprep.subr.mxu0 0.0
    %1127 = vmatpush1.msra.mxu0 0.0
    %1128 = vmatprep.subr.mxu0 0.0
    %1129 = vmatpush1.msra.mxu0 0.0
    %1130 = vmatprep.subr.mxu0 0.0
    %1131 = vmatpush1.msra.mxu0 0.0
    %1132 = vmatprep.subr.mxu0 0.0
    %1133 = vmatpush1.msra.mxu0 0.0
    %1134 = vmatprep.subr.mxu0 0.0
    %1135 = vmatpush1.msra.mxu0 0.0
    %1136 = vmatprep.subr.mxu0 0.0
    %1137 = vmatpush1.msra.mxu0 0.0
    %1138 = vmatprep.subr.mxu0 0.0
    %1139 = vmatpush1.msra.mxu0 0.0
    %1140 = vmatprep.subr.mxu0 0.0
    %1141 = vmatpush1.msra.mxu0 0.0
    %1142 = vmatprep.subr.mxu0 0.0
    %1143 = vmatpush1.msra.mxu0 0.0
    %1144 = vmatprep.subr.mxu0 0.0
    %1145 = vmatpush1.msra.mxu0 0.0
    %1146 = vmatprep.mubr.f32.mxu0 0.0
    %1147 = vmatmul.mubr.f32.gmra.mrb[0].mxu0 %v432
    %v1148 = vpop.f32.mrb[0].mxu0
    %v1149 = vadd.f32 %v781, %v1148
    %v1150 = vpop.f32.mrb[0].mxu0
    %1151 = vdwg.mxu0
    %1152 = vmatprep.subr.mxu0 0.0
    %1153 = vmatpush1.msra.mxu0 %v734
    %1154 = vmatprep.subr.mxu0 0.0
    %1155 = vmatpush1.msra.mxu0 %v735
    %1156 = vmatprep.subr.mxu0 0.0
    %1157 = vmatpush1.msra.mxu0 %v736
    %1158 = vmatprep.subr.mxu0 0.0
    %1159 = vmatpush1.msra.mxu0 %v737
    %1160 = vmatprep.subr.mxu0 0.0
    %1161 = vmatpush1.msra.mxu0 0.0
    %1162 = vmatprep.subr.mxu0 0.0
    %1163 = vmatpush1.msra.mxu0 0.0
    %1164 = vmatprep.subr.mxu0 0.0
    %1165 = vmatpush1.msra.mxu0 0.0
    %1166 = vmatprep.subr.mxu0 0.0
    %1167 = vmatpush1.msra.mxu0 0.0
    %1168 = vmatprep.subr.mxu0 0.0
    %1169 = vmatpush1.msra.mxu0 0.0
    %1170 = vmatprep.subr.mxu0 0.0
    %1171 = vmatpush1.msra.mxu0 0.0
    %1172 = vmatprep.subr.mxu0 0.0
    %1173 = vmatpush1.msra.mxu0 0.0
    %1174 = vmatprep.subr.mxu0 0.0
    %1175 = vmatpush1.msra.mxu0 0.0
    %1176 = vmatprep.subr.mxu0 0.0
    %1177 = vmatpush1.msra.mxu0 0.0
    %1178 = vmatprep.subr.mxu0 0.0
    %1179 = vmatpush1.msra.mxu0 0.0
    %1180 = vmatprep.subr.mxu0 0.0
    %1181 = vmatpush1.msra.mxu0 0.0
    %1182 = vmatprep.subr.mxu0 0.0
    %1183 = vmatpush1.msra.mxu0 0.0
    %1184 = vmatprep.subr.mxu0 0.0
    %1185 = vmatpush1.msra.mxu0 0.0
    %1186 = vmatprep.subr.mxu0 0.0
    %1187 = vmatpush1.msra.mxu0 0.0
    %1188 = vmatprep.subr.mxu0 0.0
    %1189 = vmatpush1.msra.mxu0 0.0
    %1190 = vmatprep.subr.mxu0 0.0
    %1191 = vmatpush1.msra.mxu0 0.0
    %1192 = vmatprep.subr.mxu0 0.0
    %1193 = vmatpush1.msra.mxu0 0.0
    %1194 = vmatprep.subr.mxu0 0.0
    %1195 = vmatpush1.msra.mxu0 0.0
    %1196 = vmatprep.subr.mxu0 0.0
    %1197 = vmatpush1.msra.mxu0 0.0
    %1198 = vmatprep.subr.mxu0 0.0
    %1199 = vmatpush1.msra.mxu0 0.0
    %1200 = vmatprep.subr.mxu0 0.0
    %1201 = vmatpush1.msra.mxu0 0.0
    %1202 = vmatprep.subr.mxu0 0.0
    %1203 = vmatpush1.msra.mxu0 0.0
    %1204 = vmatprep.subr.mxu0 0.0
    %1205 = vmatpush1.msra.mxu0 0.0
    %1206 = vmatprep.subr.mxu0 0.0
    %1207 = vmatpush1.msra.mxu0 0.0
    %1208 = vmatprep.subr.mxu0 0.0
    %1209 = vmatpush1.msra.mxu0 0.0
    %1210 = vmatprep.subr.mxu0 0.0
    %1211 = vmatpush1.msra.mxu0 0.0
    %1212 = vmatprep.subr.mxu0 0.0
    %1213 = vmatpush1.msra.mxu0 0.0
    %1214 = vmatprep.subr.mxu0 0.0
    %1215 = vmatpush1.msra.mxu0 0.0
    %1216 = vmatprep.mubr.f32.mxu0 0.0
    %1217 = vmatmul.mubr.f32.gmra.mrb[0].mxu0 %v432
    %v1218 = vpop.f32.mrb[0].mxu0
    %v1219 = vadd.f32 %v785, %v1218
    %v1220 = vpop.f32.mrb[0].mxu0
    %1221 = vdwg.mxu0
    %1222 = vmatprep.subr.mxu0 0.0
    %1223 = vmatpush1.msra.mxu0 %v738
    %1224 = vmatprep.subr.mxu0 0.0
    %1225 = vmatpush1.msra.mxu0 %v739
    %1226 = vmatprep.subr.mxu0 0.0
    %1227 = vmatpush1.msra.mxu0 %v740
    %1228 = vmatprep.subr.mxu0 0.0
    %1229 = vmatpush1.msra.mxu0 %v741
    %1230 = vmatprep.subr.mxu0 0.0
    %1231 = vmatpush1.msra.mxu0 0.0
    %1232 = vmatprep.subr.mxu0 0.0
    %1233 = vmatpush1.msra.mxu0 0.0
    %1234 = vmatprep.subr.mxu0 0.0
    %1235 = vmatpush1.msra.mxu0 0.0
    %1236 = vmatprep.subr.mxu0 0.0
    %1237 = vmatpush1.msra.mxu0 0.0
    %1238 = vmatprep.subr.mxu0 0.0
    %1239 = vmatpush1.msra.mxu0 0.0
    %1240 = vmatprep.subr.mxu0 0.0
    %1241 = vmatpush1.msra.mxu0 0.0
    %1242 = vmatprep.subr.mxu0 0.0
    %1243 = vmatpush1.msra.mxu0 0.0
    %1244 = vmatprep.subr.mxu0 0.0
    %1245 = vmatpush1.msra.mxu0 0.0
    %1246 = vmatprep.subr.mxu0 0.0
    %1247 = vmatpush1.msra.mxu0 0.0
    %1248 = vmatprep.subr.mxu0 0.0
    %1249 = vmatpush1.msra.mxu0 0.0
    %1250 = vmatprep.subr.mxu0 0.0
    %1251 = vmatpush1.msra.mxu0 0.0
    %1252 = vmatprep.subr.mxu0 0.0
    %1253 = vmatpush1.msra.mxu0 0.0
    %1254 = vmatprep.subr.mxu0 0.0
    %1255 = vmatpush1.msra.mxu0 0.0
    %1256 = vmatprep.subr.mxu0 0.0
    %1257 = vmatpush1.msra.mxu0 0.0
    %1258 = vmatprep.subr.mxu0 0.0
    %1259 = vmatpush1.msra.mxu0 0.0
    %1260 = vmatprep.subr.mxu0 0.0
    %1261 = vmatpush1.msra.mxu0 0.0
    %1262 = vmatprep.subr.mxu0 0.0
    %1263 = vmatpush1.msra.mxu0 0.0
    %1264 = vmatprep.subr.mxu0 0.0
    %1265 = vmatpush1.msra.mxu0 0.0
    %1266 = vmatprep.subr.mxu0 0.0
    %1267 = vmatpush1.msra.mxu0 0.0
    %1268 = vmatprep.subr.mxu0 0.0
    %1269 = vmatpush1.msra.mxu0 0.0
    %1270 = vmatprep.subr.mxu0 0.0
    %1271 = vmatpush1.msra.mxu0 0.0
    %1272 = vmatprep.subr.mxu0 0.0
    %1273 = vmatpush1.msra.mxu0 0.0
    %1274 = vmatprep.subr.mxu0 0.0
    %1275 = vmatpush1.msra.mxu0 0.0
    %1276 = vmatprep.subr.mxu0 0.0
    %1277 = vmatpush1.msra.mxu0 0.0
    %1278 = vmatprep.subr.mxu0 0.0
    %1279 = vmatpush1.msra.mxu0 0.0
    %1280 = vmatprep.subr.mxu0 0.0
    %1281 = vmatpush1.msra.mxu0 0.0
    %1282 = vmatprep.subr.mxu0 0.0
    %1283 = vmatpush1.msra.mxu0 0.0
    %1284 = vmatprep.subr.mxu0 0.0
    %1285 = vmatpush1.msra.mxu0 0.0
    %1286 = vmatprep.mubr.f32.mxu0 0.0
    %1287 = vmatmul.mubr.f32.gmra.mrb[0].mxu0 %v432
    %v1288 = vpop.f32.mrb[0].mxu0
    %v1289 = vadd.f32 %v789, %v1288
    %v1290 = vpop.f32.mrb[0].mxu0
    %1291 = vdwg.mxu0
    %1292 = vmatprep.subr.mxu0 0.0
    %1293 = vmatpush1.msra.mxu0 %v742
    %1294 = vmatprep.subr.mxu0 0.0
    %1295 = vmatpush1.msra.mxu0 %v743
    %1296 = vmatprep.subr.mxu0 0.0
    %1297 = vmatpush1.msra.mxu0 %v744
    %1298 = vmatprep.subr.mxu0 0.0
    %1299 = vmatpush1.msra.mxu0 %v745
    %1300 = vmatprep.subr.mxu0 0.0
    %1301 = vmatpush1.msra.mxu0 0.0
    %1302 = vmatprep.subr.mxu0 0.0
    %1303 = vmatpush1.msra.mxu0 0.0
    %1304 = vmatprep.subr.mxu0 0.0
    %1305 = vmatpush1.msra.mxu0 0.0
    %1306 = vmatprep.subr.mxu0 0.0
    %1307 = vmatpush1.msra.mxu0 0.0
    %1308 = vmatprep.subr.mxu0 0.0
    %1309 = vmatpush1.msra.mxu0 0.0
    %1310 = vmatprep.subr.mxu0 0.0
    %1311 = vmatpush1.msra.mxu0 0.0
    %1312 = vmatprep.subr.mxu0 0.0
    %1313 = vmatpush1.msra.mxu0 0.0
    %1314 = vmatprep.subr.mxu0 0.0
    %1315 = vmatpush1.msra.mxu0 0.0
    %1316 = vmatprep.subr.mxu0 0.0
    %1317 = vmatpush1.msra.mxu0 0.0
    %1318 = vmatprep.subr.mxu0 0.0
    %1319 = vmatpush1.msra.mxu0 0.0
    %1320 = vmatprep.subr.mxu0 0.0
    %1321 = vmatpush1.msra.mxu0 0.0
    %1322 = vmatprep.subr.mxu0 0.0
    %1323 = vmatpush1.msra.mxu0 0.0
    %1324 = vmatprep.subr.mxu0 0.0
    %1325 = vmatpush1.msra.mxu0 0.0
    %1326 = vmatprep.subr.mxu0 0.0
    %1327 = vmatpush1.msra.mxu0 0.0
    %1328 = vmatprep.subr.mxu0 0.0
    %1329 = vmatpush1.msra.mxu0 0.0
    %1330 = vmatprep.subr.mxu0 0.0
    %1331 = vmatpush1.msra.mxu0 0.0
    %1332 = vmatprep.subr.mxu0 0.0
    %1333 = vmatpush1.msra.mxu0 0.0
    %1334 = vmatprep.subr.mxu0 0.0
    %1335 = vmatpush1.msra.mxu0 0.0
    %1336 = vmatprep.subr.mxu0 0.0
    %1337 = vmatpush1.msra.mxu0 0.0
    %1338 = vmatprep.subr.mxu0 0.0
    %1339 = vmatpush1.msra.mxu0 0.0
    %1340 = vmatprep.subr.mxu0 0.0
    %1341 = vmatpush1.msra.mxu0 0.0
    %1342 = vmatprep.subr.mxu0 0.0
    %1343 = vmatpush1.msra.mxu0 0.0
    %1344 = vmatprep.subr.mxu0 0.0
    %1345 = vmatpush1.msra.mxu0 0.0
    %1346 = vmatprep.subr.mxu0 0.0
    %1347 = vmatpush1.msra.mxu0 0.0
    %1348 = vmatprep.subr.mxu0 0.0
    %1349 = vmatpush1.msra.mxu0 0.0
    %1350 = vmatprep.subr.mxu0 0.0
    %1351 = vmatpush1.msra.mxu0 0.0
    %1352 = vmatprep.subr.mxu0 0.0
    %1353 = vmatpush1.msra.mxu0 0.0
    %1354 = vmatprep.subr.mxu0 0.0
    %1355 = vmatpush1.msra.mxu0 0.0
    %1356 = vmatprep.mubr.f32.mxu0 0.0
    %1357 = vmatmul.mubr.f32.gmra.mrb[0].mxu0 %v432
    %v1358 = vpop.f32.mrb[0].mxu0
    %v1359 = vadd.f32 %v793, %v1358
    %v1360 = vpop.f32.mrb[0].mxu0
    %1361 = vdwg.mxu0
    %v1362 = vld [vmem:[%s5] sm:$0xff]
    %v1363 = vld [vmem:[%s5 + $0x8] sm:$0xff]
    %v1364 = vld [vmem:[%s5 + $0x10] sm:$0xff]
    %v1365 = vld [vmem:[%s5 + $0x18] sm:$0xff]
    %v1366 = vld [vmem:[%s5 + $0x20] sm:$0xff]
    %v1367 = vld [vmem:[%s5 + $0x28] sm:$0xff]
    %v1368 = vld [vmem:[%s5 + $0x30] sm:$0xff]
    %v1369 = vld [vmem:[%s5 + $0x38] sm:$0xff]
    %v1370 = vld [vmem:[%s5 + $0x40] sm:$0xff]
    %v1371 = vld [vmem:[%s5 + $0x48] sm:$0xff]
    %v1372 = vld [vmem:[%s5 + $0x50] sm:$0xff]
    %v1373 = vld [vmem:[%s5 + $0x58] sm:$0xff]
    %v1374 = vld [vmem:[%s5 + $0x60] sm:$0xff]
    %v1375 = vld [vmem:[%s5 + $0x68] sm:$0xff]
    %v1376 = vld [vmem:[%s5 + $0x70] sm:$0xff]
    %v1377 = vld [vmem:[%s5 + $0x78] sm:$0xff]
    %v1378 = vld [vmem:[%s5 + $0x80] sm:$0xff]
    %v1379 = vld [vmem:[%s5 + $0x88] sm:$0xff]
    %v1380 = vld [vmem:[%s5 + $0x90] sm:$0xff]
    %v1381 = vld [vmem:[%s5 + $0x98] sm:$0xff]
    %v1382 = vld [vmem:[%s5 + $0xa0] sm:$0xff]
    %v1383 = vld [vmem:[%s5 + $0xa8] sm:$0xff]
    %v1384 = vld [vmem:[%s5 + $0xb0] sm:$0xff]
    %v1385 = vld [vmem:[%s5 + $0xb8] sm:$0xff]
    %v1386 = vld [vmem:[%s5 + $0xc0] sm:$0xff]
    %v1387 = vld [vmem:[%s5 + $0xc8] sm:$0xff]
    %v1388 = vld [vmem:[%s5 + $0xd0] sm:$0xff]
    %v1389 = vld [vmem:[%s5 + $0xd8] sm:$0xff]
    %v1390 = vld [vmem:[%s5 + $0xe0] sm:$0xff]
    %v1391 = vld [vmem:[%s5 + $0xe8] sm:$0xff]
    %v1392 = vld [vmem:[%s5 + $0xf0] sm:$0xff]
    %v1393 = vld [vmem:[%s5 + $0xf8] sm:$0xff]
    %v1394 = vld [vmem:[%s6] sm:$0x1]
    %v1395 = vld [vmem:[%s6 + $0x1] sm:$0x1]
    %v1396 = vld [vmem:[%s6 + $0x2] sm:$0x1]
    %v1397 = vld [vmem:[%s6 + $0x3] sm:$0x1]
    %v1398 = vld [vmem:[%s6 + $0x4] sm:$0x1]
    %v1399 = vld [vmem:[%s6 + $0x5] sm:$0x1]
    %v1400 = vld [vmem:[%s6 + $0x6] sm:$0x1]
    %v1401 = vld [vmem:[%s6 + $0x7] sm:$0x1]
    %v1410 = vlaneseq
    %v1411 = vshrl.u32 %v1410, 7
    %v1412 = vsub.s32 0, %v1411
    %v1413 = vrot.slane %v1394, %v1412
    %v1414 = vlaneseq
    %v1415 = vshrl.u32 %v1414, 7
    %v1416 = vsub.s32 0, %v1415
    %v1417 = vrot.slane %v1395, %v1416
    %v1418 = vlaneseq
    %v1419 = vshrl.u32 %v1418, 7
    %v1420 = vsub.s32 0, %v1419
    %v1421 = vrot.slane %v1396, %v1420
    %v1422 = vlaneseq
    %v1423 = vshrl.u32 %v1422, 7
    %v1424 = vsub.s32 0, %v1423
    %v1425 = vrot.slane %v1397, %v1424
    %v1426 = vlaneseq
    %v1427 = vshrl.u32 %v1426, 7
    %v1428 = vsub.s32 0, %v1427
    %v1429 = vrot.slane %v1398, %v1428
    %v1430 = vlaneseq
    %v1431 = vshrl.u32 %v1430, 7
    %v1432 = vsub.s32 0, %v1431
    %v1433 = vrot.slane %v1399, %v1432
    %v1434 = vlaneseq
    %v1435 = vshrl.u32 %v1434, 7
    %v1436 = vsub.s32 0, %v1435
    %v1437 = vrot.slane %v1400, %v1436
    %v1438 = vlaneseq
    %v1439 = vshrl.u32 %v1438, 7
    %v1440 = vsub.s32 0, %v1439
    %v1441 = vrot.slane %v1401, %v1440
    %1450 = vmatprep.subr.mxu0 0.0
    %1451 = vmatpush1.msra.mxu0 %v1362
    %1452 = vmatprep.subr.mxu0 0.0
    %1453 = vmatpush1.msra.mxu0 %v1363
    %1454 = vmatprep.subr.mxu0 0.0
    %1455 = vmatpush1.msra.mxu0 %v1364
    %1456 = vmatprep.subr.mxu0 0.0
    %1457 = vmatpush1.msra.mxu0 %v1365
    %1458 = vmatprep.subr.mxu0 0.0
    %1459 = vmatpush1.msra.mxu0 0.0
    %1460 = vmatprep.subr.mxu0 0.0
    %1461 = vmatpush1.msra.mxu0 0.0
    %1462 = vmatprep.subr.mxu0 0.0
    %1463 = vmatpush1.msra.mxu0 0.0
    %1464 = vmatprep.subr.mxu0 0.0
    %1465 = vmatpush1.msra.mxu0 0.0
    %1466 = vmatprep.subr.mxu0 0.0
    %1467 = vmatpush1.msra.mxu0 0.0
    %1468 = vmatprep.subr.mxu0 0.0
    %1469 = vmatpush1.msra.mxu0 0.0
    %1470 = vmatprep.subr.mxu0 0.0
    %1471 = vmatpush1.msra.mxu0 0.0
    %1472 = vmatprep.subr.mxu0 0.0
    %1473 = vmatpush1.msra.mxu0 0.0
    %1474 = vmatprep.subr.mxu0 0.0
    %1475 = vmatpush1.msra.mxu0 0.0
    %1476 = vmatprep.subr.mxu0 0.0
    %1477 = vmatpush1.msra.mxu0 0.0
    %1478 = vmatprep.subr.mxu0 0.0
    %1479 = vmatpush1.msra.mxu0 0.0
    %1480 = vmatprep.subr.mxu0 0.0
    %1481 = vmatpush1.msra.mxu0 0.0
    %1482 = vmatprep.subr.mxu0 0.0
    %1483 = vmatpush1.msra.mxu0 0.0
    %1484 = vmatprep.subr.mxu0 0.0
    %1485 = vmatpush1.msra.mxu0 0.0
    %1486 = vmatprep.subr.mxu0 0.0
    %1487 = vmatpush1.msra.mxu0 0.0
    %1488 = vmatprep.subr.mxu0 0.0
    %1489 = vmatpush1.msra.mxu0 0.0
    %1490 = vmatprep.subr.mxu0 0.0
    %1491 = vmatpush1.msra.mxu0 0.0
    %1492 = vmatprep.subr.mxu0 0.0
    %1493 = vmatpush1.msra.mxu0 0.0
    %1494 = vmatprep.subr.mxu0 0.0
    %1495 = vmatpush1.msra.mxu0 0.0
    %1496 = vmatprep.subr.mxu0 0.0
    %1497 = vmatpush1.msra.mxu0 0.0
    %1498 = vmatprep.subr.mxu0 0.0
    %1499 = vmatpush1.msra.mxu0 0.0
    %1500 = vmatprep.subr.mxu0 0.0
    %1501 = vmatpush1.msra.mxu0 0.0
    %1502 = vmatprep.subr.mxu0 0.0
    %1503 = vmatpush1.msra.mxu0 0.0
    %1504 = vmatprep.subr.mxu0 0.0
    %1505 = vmatpush1.msra.mxu0 0.0
    %1506 = vmatprep.subr.mxu0 0.0
    %1507 = vmatpush1.msra.mxu0 0.0
    %1508 = vmatprep.subr.mxu0 0.0
    %1509 = vmatpush1.msra.mxu0 0.0
    %1510 = vmatprep.subr.mxu0 0.0
    %1511 = vmatpush1.msra.mxu0 0.0
    %1512 = vmatprep.subr.mxu0 0.0
    %1513 = vmatpush1.msra.mxu0 0.0
    %1514 = vmatprep.mubr.f32.mxu0 0.0
    %1515 = vmatmul.mubr.f32.gmra.mrb[0].mxu0 %v149
    %v1516 = vpop.f32.mrb[0].mxu0
    %v1517 = vadd.f32 %v1413, %v1516
    %v1518 = vpop.f32.mrb[0].mxu0
    %1519 = vdwg.mxu0
    %1520 = vmatprep.subr.mxu0 0.0
    %1521 = vmatpush1.msra.mxu0 %v1366
    %1522 = vmatprep.subr.mxu0 0.0
    %1523 = vmatpush1.msra.mxu0 %v1367
    %1524 = vmatprep.subr.mxu0 0.0
    %1525 = vmatpush1.msra.mxu0 %v1368
    %1526 = vmatprep.subr.mxu0 0.0
    %1527 = vmatpush1.msra.mxu0 %v1369
    %1528 = vmatprep.subr.mxu0 0.0
    %1529 = vmatpush1.msra.mxu0 0.0
    %1530 = vmatprep.subr.mxu0 0.0
    %1531 = vmatpush1.msra.mxu0 0.0
    %1532 = vmatprep.subr.mxu0 0.0
    %1533 = vmatpush1.msra.mxu0 0.0
    %1534 = vmatprep.subr.mxu0 0.0
    %1535 = vmatpush1.msra.mxu0 0.0
    %1536 = vmatprep.subr.mxu0 0.0
    %1537 = vmatpush1.msra.mxu0 0.0
    %1538 = vmatprep.subr.mxu0 0.0
    %1539 = vmatpush1.msra.mxu0 0.0
    %1540 = vmatprep.subr.mxu0 0.0
    %1541 = vmatpush1.msra.mxu0 0.0
    %1542 = vmatprep.subr.mxu0 0.0
    %1543 = vmatpush1.msra.mxu0 0.0
    %1544 = vmatprep.subr.mxu0 0.0
    %1545 = vmatpush1.msra.mxu0 0.0
    %1546 = vmatprep.subr.mxu0 0.0
    %1547 = vmatpush1.msra.mxu0 0.0
    %1548 = vmatprep.subr.mxu0 0.0
    %1549 = vmatpush1.msra.mxu0 0.0
    %1550 = vmatprep.subr.mxu0 0.0
    %1551 = vmatpush1.msra.mxu0 0.0
    %1552 = vmatprep.subr.mxu0 0.0
    %1553 = vmatpush1.msra.mxu0 0.0
    %1554 = vmatprep.subr.mxu0 0.0
    %1555 = vmatpush1.msra.mxu0 0.0
    %1556 = vmatprep.subr.mxu0 0.0
    %1557 = vmatpush1.msra.mxu0 0.0
    %1558 = vmatprep.subr.mxu0 0.0
    %1559 = vmatpush1.msra.mxu0 0.0
    %1560 = vmatprep.subr.mxu0 0.0
    %1561 = vmatpush1.msra.mxu0 0.0
    %1562 = vmatprep.subr.mxu0 0.0
    %1563 = vmatpush1.msra.mxu0 0.0
    %1564 = vmatprep.subr.mxu0 0.0
    %1565 = vmatpush1.msra.mxu0 0.0
    %1566 = vmatprep.subr.mxu0 0.0
    %1567 = vmatpush1.msra.mxu0 0.0
    %1568 = vmatprep.subr.mxu0 0.0
    %1569 = vmatpush1.msra.mxu0 0.0
    %1570 = vmatprep.subr.mxu0 0.0
    %1571 = vmatpush1.msra.mxu0 0.0
    %1572 = vmatprep.subr.mxu0 0.0
    %1573 = vmatpush1.msra.mxu0 0.0
    %1574 = vmatprep.subr.mxu0 0.0
    %1575 = vmatpush1.msra.mxu0 0.0
    %1576 = vmatprep.subr.mxu0 0.0
    %1577 = vmatpush1.msra.mxu0 0.0
    %1578 = vmatprep.subr.mxu0 0.0
    %1579 = vmatpush1.msra.mxu0 0.0
    %1580 = vmatprep.subr.mxu0 0.0
    %1581 = vmatpush1.msra.mxu0 0.0
    %1582 = vmatprep.subr.mxu0 0.0
    %1583 = vmatpush1.msra.mxu0 0.0
    %1584 = vmatprep.mubr.f32.mxu0 0.0
    %1585 = vmatmul.mubr.f32.gmra.mrb[0].mxu0 %v149
    %v1586 = vpop.f32.mrb[0].mxu0
    %v1587 = vadd.f32 %v1417, %v1586
    %v1588 = vpop.f32.mrb[0].mxu0
    %1589 = vdwg.mxu0
    %1590 = vmatprep.subr.mxu0 0.0
    %1591 = vmatpush1.msra.mxu0 %v1370
    %1592 = vmatprep.subr.mxu0 0.0
    %1593 = vmatpush1.msra.mxu0 %v1371
    %1594 = vmatprep.subr.mxu0 0.0
    %1595 = vmatpush1.msra.mxu0 %v1372
    %1596 = vmatprep.subr.mxu0 0.0
    %1597 = vmatpush1.msra.mxu0 %v1373
    %1598 = vmatprep.subr.mxu0 0.0
    %1599 = vmatpush1.msra.mxu0 0.0
    %1600 = vmatprep.subr.mxu0 0.0
    %1601 = vmatpush1.msra.mxu0 0.0
    %1602 = vmatprep.subr.mxu0 0.0
    %1603 = vmatpush1.msra.mxu0 0.0
    %1604 = vmatprep.subr.mxu0 0.0
    %1605 = vmatpush1.msra.mxu0 0.0
    %1606 = vmatprep.subr.mxu0 0.0
    %1607 = vmatpush1.msra.mxu0 0.0
    %1608 = vmatprep.subr.mxu0 0.0
    %1609 = vmatpush1.msra.mxu0 0.0
    %1610 = vmatprep.subr.mxu0 0.0
    %1611 = vmatpush1.msra.mxu0 0.0
    %1612 = vmatprep.subr.mxu0 0.0
    %1613 = vmatpush1.msra.mxu0 0.0
    %1614 = vmatprep.subr.mxu0 0.0
    %1615 = vmatpush1.msra.mxu0 0.0
    %1616 = vmatprep.subr.mxu0 0.0
    %1617 = vmatpush1.msra.mxu0 0.0
    %1618 = vmatprep.subr.mxu0 0.0
    %1619 = vmatpush1.msra.mxu0 0.0
    %1620 = vmatprep.subr.mxu0 0.0
    %1621 = vmatpush1.msra.mxu0 0.0
    %1622 = vmatprep.subr.mxu0 0.0
    %1623 = vmatpush1.msra.mxu0 0.0
    %1624 = vmatprep.subr.mxu0 0.0
    %1625 = vmatpush1.msra.mxu0 0.0
    %1626 = vmatprep.subr.mxu0 0.0
    %1627 = vmatpush1.msra.mxu0 0.0
    %1628 = vmatprep.subr.mxu0 0.0
    %1629 = vmatpush1.msra.mxu0 0.0
    %1630 = vmatprep.subr.mxu0 0.0
    %1631 = vmatpush1.msra.mxu0 0.0
    %1632 = vmatprep.subr.mxu0 0.0
    %1633 = vmatpush1.msra.mxu0 0.0
    %1634 = vmatprep.subr.mxu0 0.0
    %1635 = vmatpush1.msra.mxu0 0.0
    %1636 = vmatprep.subr.mxu0 0.0
    %1637 = vmatpush1.msra.mxu0 0.0
    %1638 = vmatprep.subr.mxu0 0.0
    %1639 = vmatpush1.msra.mxu0 0.0
    %1640 = vmatprep.subr.mxu0 0.0
    %1641 = vmatpush1.msra.mxu0 0.0
    %1642 = vmatprep.subr.mxu0 0.0
    %1643 = vmatpush1.msra.mxu0 0.0
    %1644 = vmatprep.subr.mxu0 0.0
    %1645 = vmatpush1.msra.mxu0 0.0
    %1646 = vmatprep.subr.mxu0 0.0
    %1647 = vmatpush1.msra.mxu0 0.0
    %1648 = vmatprep.subr.mxu0 0.0
    %1649 = vmatpush1.msra.mxu0 0.0
    %1650 = vmatprep.subr.mxu0 0.0
    %1651 = vmatpush1.msra.mxu0 0.0
    %1652 = vmatprep.subr.mxu0 0.0
    %1653 = vmatpush1.msra.mxu0 0.0
    %1654 = vmatprep.mubr.f32.mxu0 0.0
    %1655 = vmatmul.mubr.f32.gmra.mrb[0].mxu0 %v149
    %v1656 = vpop.f32.mrb[0].mxu0
    %v1657 = vadd.f32 %v1421, %v1656
    %v1658 = vpop.f32.mrb[0].mxu0
    %1659 = vdwg.mxu0
    %1660 = vmatprep.subr.mxu0 0.0
    %1661 = vmatpush1.msra.mxu0 %v1374
    %1662 = vmatprep.subr.mxu0 0.0
    %1663 = vmatpush1.msra.mxu0 %v1375
    %1664 = vmatprep.subr.mxu0 0.0
    %1665 = vmatpush1.msra.mxu0 %v1376
    %1666 = vmatprep.subr.mxu0 0.0
    %1667 = vmatpush1.msra.mxu0 %v1377
    %1668 = vmatprep.subr.mxu0 0.0
    %1669 = vmatpush1.msra.mxu0 0.0
    %1670 = vmatprep.subr.mxu0 0.0
    %1671 = vmatpush1.msra.mxu0 0.0
    %1672 = vmatprep.subr.mxu0 0.0
    %1673 = vmatpush1.msra.mxu0 0.0
    %1674 = vmatprep.subr.mxu0 0.0
    %1675 = vmatpush1.msra.mxu0 0.0
    %1676 = vmatprep.subr.mxu0 0.0
    %1677 = vmatpush1.msra.mxu0 0.0
    %1678 = vmatprep.subr.mxu0 0.0
    %1679 = vmatpush1.msra.mxu0 0.0
    %1680 = vmatprep.subr.mxu0 0.0
    %1681 = vmatpush1.msra.mxu0 0.0
    %1682 = vmatprep.subr.mxu0 0.0
    %1683 = vmatpush1.msra.mxu0 0.0
    %1684 = vmatprep.subr.mxu0 0.0
    %1685 = vmatpush1.msra.mxu0 0.0
    %1686 = vmatprep.subr.mxu0 0.0
    %1687 = vmatpush1.msra.mxu0 0.0
    %1688 = vmatprep.subr.mxu0 0.0
    %1689 = vmatpush1.msra.mxu0 0.0
    %1690 = vmatprep.subr.mxu0 0.0
    %1691 = vmatpush1.msra.mxu0 0.0
    %1692 = vmatprep.subr.mxu0 0.0
    %1693 = vmatpush1.msra.mxu0 0.0
    %1694 = vmatprep.subr.mxu0 0.0
    %1695 = vmatpush1.msra.mxu0 0.0
    %1696 = vmatprep.subr.mxu0 0.0
    %1697 = vmatpush1.msra.mxu0 0.0
    %1698 = vmatprep.subr.mxu0 0.0
    %1699 = vmatpush1.msra.mxu0 0.0
    %1700 = vmatprep.subr.mxu0 0.0
    %1701 = vmatpush1.msra.mxu0 0.0
    %1702 = vmatprep.subr.mxu0 0.0
    %1703 = vmatpush1.msra.mxu0 0.0
    %1704 = vmatprep.subr.mxu0 0.0
    %1705 = vmatpush1.msra.mxu0 0.0
    %1706 = vmatprep.subr.mxu0 0.0
    %1707 = vmatpush1.msra.mxu0 0.0
    %1708 = vmatprep.subr.mxu0 0.0
    %1709 = vmatpush1.msra.mxu0 0.0
    %1710 = vmatprep.subr.mxu0 0.0
    %1711 = vmatpush1.msra.mxu0 0.0
    %1712 = vmatprep.subr.mxu0 0.0
    %1713 = vmatpush1.msra.mxu0 0.0
    %1714 = vmatprep.subr.mxu0 0.0
    %1715 = vmatpush1.msra.mxu0 0.0
    %1716 = vmatprep.subr.mxu0 0.0
    %1717 = vmatpush1.msra.mxu0 0.0
    %1718 = vmatprep.subr.mxu0 0.0
    %1719 = vmatpush1.msra.mxu0 0.0
    %1720 = vmatprep.subr.mxu0 0.0
    %1721 = vmatpush1.msra.mxu0 0.0
    %1722 = vmatprep.subr.mxu0 0.0
    %1723 = vmatpush1.msra.mxu0 0.0
    %1724 = vmatprep.mubr.f32.mxu0 0.0
    %1725 = vmatmul.mubr.f32.gmra.mrb[0].mxu0 %v149
    %v1726 = vpop.f32.mrb[0].mxu0
    %v1727 = vadd.f32 %v1425, %v1726
    %v1728 = vpop.f32.mrb[0].mxu0
    %1729 = vdwg.mxu0
    %1730 = vmatprep.subr.mxu0 0.0
    %1731 = vmatpush1.msra.mxu0 %v1378
    %1732 = vmatprep.subr.mxu0 0.0
    %1733 = vmatpush1.msra.mxu0 %v1379
    %1734 = vmatprep.subr.mxu0 0.0
    %1735 = vmatpush1.msra.mxu0 %v1380
    %1736 = vmatprep.subr.mxu0 0.0
    %1737 = vmatpush1.msra.mxu0 %v1381
    %1738 = vmatprep.subr.mxu0 0.0
    %1739 = vmatpush1.msra.mxu0 0.0
    %1740 = vmatprep.subr.mxu0 0.0
    %1741 = vmatpush1.msra.mxu0 0.0
    %1742 = vmatprep.subr.mxu0 0.0
    %1743 = vmatpush1.msra.mxu0 0.0
    %1744 = vmatprep.subr.mxu0 0.0
    %1745 = vmatpush1.msra.mxu0 0.0
    %1746 = vmatprep.subr.mxu0 0.0
    %1747 = vmatpush1.msra.mxu0 0.0
    %1748 = vmatprep.subr.mxu0 0.0
    %1749 = vmatpush1.msra.mxu0 0.0
    %1750 = vmatprep.subr.mxu0 0.0
    %1751 = vmatpush1.msra.mxu0 0.0
    %1752 = vmatprep.subr.mxu0 0.0
    %1753 = vmatpush1.msra.mxu0 0.0
    %1754 = vmatprep.subr.mxu0 0.0
    %1755 = vmatpush1.msra.mxu0 0.0
    %1756 = vmatprep.subr.mxu0 0.0
    %1757 = vmatpush1.msra.mxu0 0.0
    %1758 = vmatprep.subr.mxu0 0.0
    %1759 = vmatpush1.msra.mxu0 0.0
    %1760 = vmatprep.subr.mxu0 0.0
    %1761 = vmatpush1.msra.mxu0 0.0
    %1762 = vmatprep.subr.mxu0 0.0
    %1763 = vmatpush1.msra.mxu0 0.0
    %1764 = vmatprep.subr.mxu0 0.0
    %1765 = vmatpush1.msra.mxu0 0.0
    %1766 = vmatprep.subr.mxu0 0.0
    %1767 = vmatpush1.msra.mxu0 0.0
    %1768 = vmatprep.subr.mxu0 0.0
    %1769 = vmatpush1.msra.mxu0 0.0
    %1770 = vmatprep.subr.mxu0 0.0
    %1771 = vmatpush1.msra.mxu0 0.0
    %1772 = vmatprep.subr.mxu0 0.0
    %1773 = vmatpush1.msra.mxu0 0.0
    %1774 = vmatprep.subr.mxu0 0.0
    %1775 = vmatpush1.msra.mxu0 0.0
    %1776 = vmatprep.subr.mxu0 0.0
    %1777 = vmatpush1.msra.mxu0 0.0
    %1778 = vmatprep.subr.mxu0 0.0
    %1779 = vmatpush1.msra.mxu0 0.0
    %1780 = vmatprep.subr.mxu0 0.0
    %1781 = vmatpush1.msra.mxu0 0.0
    %1782 = vmatprep.subr.mxu0 0.0
    %1783 = vmatpush1.msra.mxu0 0.0
    %1784 = vmatprep.subr.mxu0 0.0
    %1785 = vmatpush1.msra.mxu0 0.0
    %1786 = vmatprep.subr.mxu0 0.0
    %1787 = vmatpush1.msra.mxu0 0.0
    %1788 = vmatprep.subr.mxu0 0.0
    %1789 = vmatpush1.msra.mxu0 0.0
    %1790 = vmatprep.subr.mxu0 0.0
    %1791 = vmatpush1.msra.mxu0 0.0
    %1792 = vmatprep.subr.mxu0 0.0
    %1793 = vmatpush1.msra.mxu0 0.0
    %1794 = vmatprep.mubr.f32.mxu0 0.0
    %1795 = vmatmul.mubr.f32.gmra.mrb[0].mxu0 %v432
    %v1796 = vpop.f32.mrb[0].mxu0
    %v1797 = vadd.f32 %v1429, %v1796
    %v1798 = vpop.f32.mrb[0].mxu0
    %1799 = vdwg.mxu0
    %1800 = vmatprep.subr.mxu0 0.0
    %1801 = vmatpush1.msra.mxu0 %v1382
    %1802 = vmatprep.subr.mxu0 0.0
    %1803 = vmatpush1.msra.mxu0 %v1383
    %1804 = vmatprep.subr.mxu0 0.0
    %1805 = vmatpush1.msra.mxu0 %v1384
    %1806 = vmatprep.subr.mxu0 0.0
    %1807 = vmatpush1.msra.mxu0 %v1385
    %1808 = vmatprep.subr.mxu0 0.0
    %1809 = vmatpush1.msra.mxu0 0.0
    %1810 = vmatprep.subr.mxu0 0.0
    %1811 = vmatpush1.msra.mxu0 0.0
    %1812 = vmatprep.subr.mxu0 0.0
    %1813 = vmatpush1.msra.mxu0 0.0
    %1814 = vmatprep.subr.mxu0 0.0
    %1815 = vmatpush1.msra.mxu0 0.0
    %1816 = vmatprep.subr.mxu0 0.0
    %1817 = vmatpush1.msra.mxu0 0.0
    %1818 = vmatprep.subr.mxu0 0.0
    %1819 = vmatpush1.msra.mxu0 0.0
    %1820 = vmatprep.subr.mxu0 0.0
    %1821 = vmatpush1.msra.mxu0 0.0
    %1822 = vmatprep.subr.mxu0 0.0
    %1823 = vmatpush1.msra.mxu0 0.0
    %1824 = vmatprep.subr.mxu0 0.0
    %1825 = vmatpush1.msra.mxu0 0.0
    %1826 = vmatprep.subr.mxu0 0.0
    %1827 = vmatpush1.msra.mxu0 0.0
    %1828 = vmatprep.subr.mxu0 0.0
    %1829 = vmatpush1.msra.mxu0 0.0
    %1830 = vmatprep.subr.mxu0 0.0
    %1831 = vmatpush1.msra.mxu0 0.0
    %1832 = vmatprep.subr.mxu0 0.0
    %1833 = vmatpush1.msra.mxu0 0.0
    %1834 = vmatprep.subr.mxu0 0.0
    %1835 = vmatpush1.msra.mxu0 0.0
    %1836 = vmatprep.subr.mxu0 0.0
    %1837 = vmatpush1.msra.mxu0 0.0
    %1838 = vmatprep.subr.mxu0 0.0
    %1839 = vmatpush1.msra.mxu0 0.0
    %1840 = vmatprep.subr.mxu0 0.0
    %1841 = vmatpush1.msra.mxu0 0.0
    %1842 = vmatprep.subr.mxu0 0.0
    %1843 = vmatpush1.msra.mxu0 0.0
    %1844 = vmatprep.subr.mxu0 0.0
    %1845 = vmatpush1.msra.mxu0 0.0
    %1846 = vmatprep.subr.mxu0 0.0
    %1847 = vmatpush1.msra.mxu0 0.0
    %1848 = vmatprep.subr.mxu0 0.0
    %1849 = vmatpush1.msra.mxu0 0.0
    %1850 = vmatprep.subr.mxu0 0.0
    %1851 = vmatpush1.msra.mxu0 0.0
    %1852 = vmatprep.subr.mxu0 0.0
    %1853 = vmatpush1.msra.mxu0 0.0
    %1854 = vmatprep.subr.mxu0 0.0
    %1855 = vmatpush1.msra.mxu0 0.0
    %1856 = vmatprep.subr.mxu0 0.0
    %1857 = vmatpush1.msra.mxu0 0.0
    %1858 = vmatprep.subr.mxu0 0.0
    %1859 = vmatpush1.msra.mxu0 0.0
    %1860 = vmatprep.subr.mxu0 0.0
    %1861 = vmatpush1.msra.mxu0 0.0
    %1862 = vmatprep.subr.mxu0 0.0
    %1863 = vmatpush1.msra.mxu0 0.0
    %1864 = vmatprep.mubr.f32.mxu0 0.0
    %1865 = vmatmul.mubr.f32.gmra.mrb[0].mxu0 %v432
    %v1866 = vpop.f32.mrb[0].mxu0
    %v1867 = vadd.f32 %v1433, %v1866
    %v1868 = vpop.f32.mrb[0].mxu0
    %1869 = vdwg.mxu0
    %1870 = vmatprep.subr.mxu0 0.0
    %1871 = vmatpush1.msra.mxu0 %v1386
    %1872 = vmatprep.subr.mxu0 0.0
    %1873 = vmatpush1.msra.mxu0 %v1387
    %1874 = vmatprep.subr.mxu0 0.0
    %1875 = vmatpush1.msra.mxu0 %v1388
    %1876 = vmatprep.subr.mxu0 0.0
    %1877 = vmatpush1.msra.mxu0 %v1389
    %1878 = vmatprep.subr.mxu0 0.0
    %1879 = vmatpush1.msra.mxu0 0.0
    %1880 = vmatprep.subr.mxu0 0.0
    %1881 = vmatpush1.msra.mxu0 0.0
    %1882 = vmatprep.subr.mxu0 0.0
    %1883 = vmatpush1.msra.mxu0 0.0
    %1884 = vmatprep.subr.mxu0 0.0
    %1885 = vmatpush1.msra.mxu0 0.0
    %1886 = vmatprep.subr.mxu0 0.0
    %1887 = vmatpush1.msra.mxu0 0.0
    %1888 = vmatprep.subr.mxu0 0.0
    %1889 = vmatpush1.msra.mxu0 0.0
    %1890 = vmatprep.subr.mxu0 0.0
    %1891 = vmatpush1.msra.mxu0 0.0
    %1892 = vmatprep.subr.mxu0 0.0
    %1893 = vmatpush1.msra.mxu0 0.0
    %1894 = vmatprep.subr.mxu0 0.0
    %1895 = vmatpush1.msra.mxu0 0.0
    %1896 = vmatprep.subr.mxu0 0.0
    %1897 = vmatpush1.msra.mxu0 0.0
    %1898 = vmatprep.subr.mxu0 0.0
    %1899 = vmatpush1.msra.mxu0 0.0
    %1900 = vmatprep.subr.mxu0 0.0
    %1901 = vmatpush1.msra.mxu0 0.0
    %1902 = vmatprep.subr.mxu0 0.0
    %1903 = vmatpush1.msra.mxu0 0.0
    %1904 = vmatprep.subr.mxu0 0.0
    %1905 = vmatpush1.msra.mxu0 0.0
    %1906 = vmatprep.subr.mxu0 0.0
    %1907 = vmatpush1.msra.mxu0 0.0
    %1908 = vmatprep.subr.mxu0 0.0
    %1909 = vmatpush1.msra.mxu0 0.0
    %1910 = vmatprep.subr.mxu0 0.0
    %1911 = vmatpush1.msra.mxu0 0.0
    %1912 = vmatprep.subr.mxu0 0.0
    %1913 = vmatpush1.msra.mxu0 0.0
    %1914 = vmatprep.subr.mxu0 0.0
    %1915 = vmatpush1.msra.mxu0 0.0
    %1916 = vmatprep.subr.mxu0 0.0
    %1917 = vmatpush1.msra.mxu0 0.0
    %1918 = vmatprep.subr.mxu0 0.0
    %1919 = vmatpush1.msra.mxu0 0.0
    %1920 = vmatprep.subr.mxu0 0.0
    %1921 = vmatpush1.msra.mxu0 0.0
    %1922 = vmatprep.subr.mxu0 0.0
    %1923 = vmatpush1.msra.mxu0 0.0
    %1924 = vmatprep.subr.mxu0 0.0
    %1925 = vmatpush1.msra.mxu0 0.0
    %1926 = vmatprep.subr.mxu0 0.0
    %1927 = vmatpush1.msra.mxu0 0.0
    %1928 = vmatprep.subr.mxu0 0.0
    %1929 = vmatpush1.msra.mxu0 0.0
    %1930 = vmatprep.subr.mxu0 0.0
    %1931 = vmatpush1.msra.mxu0 0.0
    %1932 = vmatprep.subr.mxu0 0.0
    %1933 = vmatpush1.msra.mxu0 0.0
    %1934 = vmatprep.mubr.f32.mxu0 0.0
    %1935 = vmatmul.mubr.f32.gmra.mrb[0].mxu0 %v432
    %v1936 = vpop.f32.mrb[0].mxu0
    %v1937 = vadd.f32 %v1437, %v1936
    %v1938 = vpop.f32.mrb[0].mxu0
    %1939 = vdwg.mxu0
    %1940 = vmatprep.subr.mxu0 0.0
    %1941 = vmatpush1.msra.mxu0 %v1390
    %1942 = vmatprep.subr.mxu0 0.0
    %1943 = vmatpush1.msra.mxu0 %v1391
    %1944 = vmatprep.subr.mxu0 0.0
    %1945 = vmatpush1.msra.mxu0 %v1392
    %1946 = vmatprep.subr.mxu0 0.0
    %1947 = vmatpush1.msra.mxu0 %v1393
    %1948 = vmatprep.subr.mxu0 0.0
    %1949 = vmatpush1.msra.mxu0 0.0
    %1950 = vmatprep.subr.mxu0 0.0
    %1951 = vmatpush1.msra.mxu0 0.0
    %1952 = vmatprep.subr.mxu0 0.0
    %1953 = vmatpush1.msra.mxu0 0.0
    %1954 = vmatprep.subr.mxu0 0.0
    %1955 = vmatpush1.msra.mxu0 0.0
    %1956 = vmatprep.subr.mxu0 0.0
    %1957 = vmatpush1.msra.mxu0 0.0
    %1958 = vmatprep.subr.mxu0 0.0
    %1959 = vmatpush1.msra.mxu0 0.0
    %1960 = vmatprep.subr.mxu0 0.0
    %1961 = vmatpush1.msra.mxu0 0.0
    %1962 = vmatprep.subr.mxu0 0.0
    %1963 = vmatpush1.msra.mxu0 0.0
    %1964 = vmatprep.subr.mxu0 0.0
    %1965 = vmatpush1.msra.mxu0 0.0
    %1966 = vmatprep.subr.mxu0 0.0
    %1967 = vmatpush1.msra.mxu0 0.0
    %1968 = vmatprep.subr.mxu0 0.0
    %1969 = vmatpush1.msra.mxu0 0.0
    %1970 = vmatprep.subr.mxu0 0.0
    %1971 = vmatpush1.msra.mxu0 0.0
    %1972 = vmatprep.subr.mxu0 0.0
    %1973 = vmatpush1.msra.mxu0 0.0
    %1974 = vmatprep.subr.mxu0 0.0
    %1975 = vmatpush1.msra.mxu0 0.0
    %1976 = vmatprep.subr.mxu0 0.0
    %1977 = vmatpush1.msra.mxu0 0.0
    %1978 = vmatprep.subr.mxu0 0.0
    %1979 = vmatpush1.msra.mxu0 0.0
    %1980 = vmatprep.subr.mxu0 0.0
    %1981 = vmatpush1.msra.mxu0 0.0
    %1982 = vmatprep.subr.mxu0 0.0
    %1983 = vmatpush1.msra.mxu0 0.0
    %1984 = vmatprep.subr.mxu0 0.0
    %1985 = vmatpush1.msra.mxu0 0.0
    %1986 = vmatprep.subr.mxu0 0.0
    %1987 = vmatpush1.msra.mxu0 0.0
    %1988 = vmatprep.subr.mxu0 0.0
    %1989 = vmatpush1.msra.mxu0 0.0
    %1990 = vmatprep.subr.mxu0 0.0
    %1991 = vmatpush1.msra.mxu0 0.0
    %1992 = vmatprep.subr.mxu0 0.0
    %1993 = vmatpush1.msra.mxu0 0.0
    %1994 = vmatprep.subr.mxu0 0.0
    %1995 = vmatpush1.msra.mxu0 0.0
    %1996 = vmatprep.subr.mxu0 0.0
    %1997 = vmatpush1.msra.mxu0 0.0
    %1998 = vmatprep.subr.mxu0 0.0
    %1999 = vmatpush1.msra.mxu0 0.0
    %2000 = vmatprep.subr.mxu0 0.0
    %2001 = vmatpush1.msra.mxu0 0.0
    %2002 = vmatprep.subr.mxu0 0.0
    %2003 = vmatpush1.msra.mxu0 0.0
    %2004 = vmatprep.mubr.f32.mxu0 0.0
    %2005 = vmatmul.mubr.f32.gmra.mrb[0].mxu0 %v432
    %v2006 = vpop.f32.mrb[0].mxu0
    %v2007 = vadd.f32 %v1441, %v2006
    %v2008 = vpop.f32.mrb[0].mxu0
    %2009 = vdwg.mxu0
    %vm2010 = vcmask 64512
    %v2012 = vsel %vm2010, %v218, 0
    %v2015 = vsel %vm2010, %v869, 0
    %2017 = vmatprep.subr.mxu0 0.0
    %2018 = vmatpush1.xpose.msra.mxu0 %v2015
    %2019 = vmatprep.subr.mxu0 0.0
    %2020 = vmatpush1.xpose.msra.mxu0 0.0
    %2021 = vmatprep.subr.mxu0 0.0
    %2022 = vmatpush1.xpose.msra.mxu0 0.0
    %2023 = vmatprep.subr.mxu0 0.0
    %2024 = vmatpush1.xpose.msra.mxu0 0.0
    %2025 = vmatprep.subr.mxu0 0.0
    %2026 = vmatpush1.xpose.msra.mxu0 0.0
    %2027 = vmatprep.subr.mxu0 0.0
    %2028 = vmatpush1.xpose.msra.mxu0 0.0
    %2029 = vmatprep.subr.mxu0 0.0
    %2030 = vmatpush1.xpose.msra.mxu0 0.0
    %2031 = vmatprep.subr.mxu0 0.0
    %2032 = vmatpush1.xpose.msra.mxu0 0.0
    %2033 = vmatprep.subr.mxu0 0.0
    %2034 = vmatpush1.xpose.msra.mxu0 0.0
    %2035 = vmatprep.subr.mxu0 0.0
    %2036 = vmatpush1.xpose.msra.mxu0 0.0
    %2037 = vmatprep.subr.mxu0 0.0
    %2038 = vmatpush1.xpose.msra.mxu0 0.0
    %2039 = vmatprep.subr.mxu0 0.0
    %2040 = vmatpush1.xpose.msra.mxu0 0.0
    %2041 = vmatprep.subr.mxu0 0.0
    %2042 = vmatpush1.xpose.msra.mxu0 0.0
    %2043 = vmatprep.subr.mxu0 0.0
    %2044 = vmatpush1.xpose.msra.mxu0 0.0
    %2045 = vmatprep.subr.mxu0 0.0
    %2046 = vmatpush1.xpose.msra.mxu0 0.0
    %2047 = vmatprep.subr.mxu0 0.0
    %2048 = vmatpush1.xpose.msra.mxu0 0.0
    %2049 = vmatprep.subr.mxu0 0.0
    %2050 = vmatpush1.xpose.msra.mxu0 0.0
    %2051 = vmatprep.subr.mxu0 0.0
    %2052 = vmatpush1.xpose.msra.mxu0 0.0
    %2053 = vmatprep.subr.mxu0 0.0
    %2054 = vmatpush1.xpose.msra.mxu0 0.0
    %2055 = vmatprep.subr.mxu0 0.0
    %2056 = vmatpush1.xpose.msra.mxu0 0.0
    %2057 = vmatprep.subr.mxu0 0.0
    %2058 = vmatpush1.xpose.msra.mxu0 0.0
    %2059 = vmatprep.subr.mxu0 0.0
    %2060 = vmatpush1.xpose.msra.mxu0 0.0
    %2061 = vmatprep.subr.mxu0 0.0
    %2062 = vmatpush1.xpose.msra.mxu0 0.0
    %2063 = vmatprep.subr.mxu0 0.0
    %2064 = vmatpush1.xpose.msra.mxu0 0.0
    %2065 = vmatprep.subr.mxu0 0.0
    %2066 = vmatpush1.xpose.msra.mxu0 0.0
    %2067 = vmatprep.subr.mxu0 0.0
    %2068 = vmatpush1.xpose.msra.mxu0 0.0
    %2069 = vmatprep.subr.mxu0 0.0
    %2070 = vmatpush1.xpose.msra.mxu0 0.0
    %2071 = vmatprep.subr.mxu0 0.0
    %2072 = vmatpush1.xpose.msra.mxu0 0.0
    %2073 = vmatprep.subr.mxu0 0.0
    %2074 = vmatpush1.xpose.msra.mxu0 0.0
    %2075 = vmatprep.subr.mxu0 0.0
    %2076 = vmatpush1.xpose.msra.mxu0 0.0
    %2077 = vmatprep.subr.mxu0 0.0
    %2078 = vmatpush1.xpose.msra.mxu0 0.0
    %2079 = vmatprep.subr.mxu0 0.0
    %2080 = vmatpush1.xpose.msra.mxu0 0.0
    %2081 = vmatprep.mubr.f32.mxu0 0.0
    %2082 = vmatmul.mubr.f32.gmra.mrb[0].mxu0 %v2012
    %v2083 = vpop.f32.mrb[0].mxu0
    %v2084 = vadd.f32 0.0, %v2083
    %v2085 = vpop.f32.mrb[0].mxu0
    %2086 = vdwg.mxu0
    %v2088 = vsel %vm2010, %v288, 0
    %v2091 = vsel %vm2010, %v939, 0
    %2093 = vmatprep.subr.mxu0 0.0
    %2094 = vmatpush1.xpose.msra.mxu0 %v2091
    %2095 = vmatprep.subr.mxu0 0.0
    %2096 = vmatpush1.xpose.msra.mxu0 0.0
    %2097 = vmatprep.subr.mxu0 0.0
    %2098 = vmatpush1.xpose.msra.mxu0 0.0
    %2099 = vmatprep.subr.mxu0 0.0
    %2100 = vmatpush1.xpose.msra.mxu0 0.0
    %2101 = vmatprep.subr.mxu0 0.0
    %2102 = vmatpush1.xpose.msra.mxu0 0.0
    %2103 = vmatprep.subr.mxu0 0.0
    %2104 = vmatpush1.xpose.msra.mxu0 0.0
    %2105 = vmatprep.subr.mxu0 0.0
    %2106 = vmatpush1.xpose.msra.mxu0 0.0
    %2107 = vmatprep.subr.mxu0 0.0
    %2108 = vmatpush1.xpose.msra.mxu0 0.0
    %2109 = vmatprep.subr.mxu0 0.0
    %2110 = vmatpush1.xpose.msra.mxu0 0.0
    %2111 = vmatprep.subr.mxu0 0.0
    %2112 = vmatpush1.xpose.msra.mxu0 0.0
    %2113 = vmatprep.subr.mxu0 0.0
    %2114 = vmatpush1.xpose.msra.mxu0 0.0
    %2115 = vmatprep.subr.mxu0 0.0
    %2116 = vmatpush1.xpose.msra.mxu0 0.0
    %2117 = vmatprep.subr.mxu0 0.0
    %2118 = vmatpush1.xpose.msra.mxu0 0.0
    %2119 = vmatprep.subr.mxu0 0.0
    %2120 = vmatpush1.xpose.msra.mxu0 0.0
    %2121 = vmatprep.subr.mxu0 0.0
    %2122 = vmatpush1.xpose.msra.mxu0 0.0
    %2123 = vmatprep.subr.mxu0 0.0
    %2124 = vmatpush1.xpose.msra.mxu0 0.0
    %2125 = vmatprep.subr.mxu0 0.0
    %2126 = vmatpush1.xpose.msra.mxu0 0.0
    %2127 = vmatprep.subr.mxu0 0.0
    %2128 = vmatpush1.xpose.msra.mxu0 0.0
    %2129 = vmatprep.subr.mxu0 0.0
    %2130 = vmatpush1.xpose.msra.mxu0 0.0
    %2131 = vmatprep.subr.mxu0 0.0
    %2132 = vmatpush1.xpose.msra.mxu0 0.0
    %2133 = vmatprep.subr.mxu0 0.0
    %2134 = vmatpush1.xpose.msra.mxu0 0.0
    %2135 = vmatprep.subr.mxu0 0.0
    %2136 = vmatpush1.xpose.msra.mxu0 0.0
    %2137 = vmatprep.subr.mxu0 0.0
    %2138 = vmatpush1.xpose.msra.mxu0 0.0
    %2139 = vmatprep.subr.mxu0 0.0
    %2140 = vmatpush1.xpose.msra.mxu0 0.0
    %2141 = vmatprep.subr.mxu0 0.0
    %2142 = vmatpush1.xpose.msra.mxu0 0.0
    %2143 = vmatprep.subr.mxu0 0.0
    %2144 = vmatpush1.xpose.msra.mxu0 0.0
    %2145 = vmatprep.subr.mxu0 0.0
    %2146 = vmatpush1.xpose.msra.mxu0 0.0
    %2147 = vmatprep.subr.mxu0 0.0
    %2148 = vmatpush1.xpose.msra.mxu0 0.0
    %2149 = vmatprep.subr.mxu0 0.0
    %2150 = vmatpush1.xpose.msra.mxu0 0.0
    %2151 = vmatprep.subr.mxu0 0.0
    %2152 = vmatpush1.xpose.msra.mxu0 0.0
    %2153 = vmatprep.subr.mxu0 0.0
    %2154 = vmatpush1.xpose.msra.mxu0 0.0
    %2155 = vmatprep.subr.mxu0 0.0
    %2156 = vmatpush1.xpose.msra.mxu0 0.0
    %2157 = vmatprep.mubr.f32.mxu0 0.0
    %2158 = vmatmul.mubr.f32.gmra.mrb[0].mxu0 %v2088
    %v2159 = vpop.f32.mrb[0].mxu0
    %v2160 = vadd.f32 0.0, %v2159
    %v2161 = vpop.f32.mrb[0].mxu0
    %2162 = vdwg.mxu0
    %v2164 = vsel %vm2010, %v358, 0
    %v2167 = vsel %vm2010, %v1009, 0
    %2169 = vmatprep.subr.mxu0 0.0
    %2170 = vmatpush1.xpose.msra.mxu0 %v2167
    %2171 = vmatprep.subr.mxu0 0.0
    %2172 = vmatpush1.xpose.msra.mxu0 0.0
    %2173 = vmatprep.subr.mxu0 0.0
    %2174 = vmatpush1.xpose.msra.mxu0 0.0
    %2175 = vmatprep.subr.mxu0 0.0
    %2176 = vmatpush1.xpose.msra.mxu0 0.0
    %2177 = vmatprep.subr.mxu0 0.0
    %2178 = vmatpush1.xpose.msra.mxu0 0.0
    %2179 = vmatprep.subr.mxu0 0.0
    %2180 = vmatpush1.xpose.msra.mxu0 0.0
    %2181 = vmatprep.subr.mxu0 0.0
    %2182 = vmatpush1.xpose.msra.mxu0 0.0
    %2183 = vmatprep.subr.mxu0 0.0
    %2184 = vmatpush1.xpose.msra.mxu0 0.0
    %2185 = vmatprep.subr.mxu0 0.0
    %2186 = vmatpush1.xpose.msra.mxu0 0.0
    %2187 = vmatprep.subr.mxu0 0.0
    %2188 = vmatpush1.xpose.msra.mxu0 0.0
    %2189 = vmatprep.subr.mxu0 0.0
    %2190 = vmatpush1.xpose.msra.mxu0 0.0
    %2191 = vmatprep.subr.mxu0 0.0
    %2192 = vmatpush1.xpose.msra.mxu0 0.0
    %2193 = vmatprep.subr.mxu0 0.0
    %2194 = vmatpush1.xpose.msra.mxu0 0.0
    %2195 = vmatprep.subr.mxu0 0.0
    %2196 = vmatpush1.xpose.msra.mxu0 0.0
    %2197 = vmatprep.subr.mxu0 0.0
    %2198 = vmatpush1.xpose.msra.mxu0 0.0
    %2199 = vmatprep.subr.mxu0 0.0
    %2200 = vmatpush1.xpose.msra.mxu0 0.0
    %2201 = vmatprep.subr.mxu0 0.0
    %2202 = vmatpush1.xpose.msra.mxu0 0.0
    %2203 = vmatprep.subr.mxu0 0.0
    %2204 = vmatpush1.xpose.msra.mxu0 0.0
    %2205 = vmatprep.subr.mxu0 0.0
    %2206 = vmatpush1.xpose.msra.mxu0 0.0
    %2207 = vmatprep.subr.mxu0 0.0
    %2208 = vmatpush1.xpose.msra.mxu0 0.0
    %2209 = vmatprep.subr.mxu0 0.0
    %2210 = vmatpush1.xpose.msra.mxu0 0.0
    %2211 = vmatprep.subr.mxu0 0.0
    %2212 = vmatpush1.xpose.msra.mxu0 0.0
    %2213 = vmatprep.subr.mxu0 0.0
    %2214 = vmatpush1.xpose.msra.mxu0 0.0
    %2215 = vmatprep.subr.mxu0 0.0
    %2216 = vmatpush1.xpose.msra.mxu0 0.0
    %2217 = vmatprep.subr.mxu0 0.0
    %2218 = vmatpush1.xpose.msra.mxu0 0.0
    %2219 = vmatprep.subr.mxu0 0.0
    %2220 = vmatpush1.xpose.msra.mxu0 0.0
    %2221 = vmatprep.subr.mxu0 0.0
    %2222 = vmatpush1.xpose.msra.mxu0 0.0
    %2223 = vmatprep.subr.mxu0 0.0
    %2224 = vmatpush1.xpose.msra.mxu0 0.0
    %2225 = vmatprep.subr.mxu0 0.0
    %2226 = vmatpush1.xpose.msra.mxu0 0.0
    %2227 = vmatprep.subr.mxu0 0.0
    %2228 = vmatpush1.xpose.msra.mxu0 0.0
    %2229 = vmatprep.subr.mxu0 0.0
    %2230 = vmatpush1.xpose.msra.mxu0 0.0
    %2231 = vmatprep.subr.mxu0 0.0
    %2232 = vmatpush1.xpose.msra.mxu0 0.0
    %2233 = vmatprep.mubr.f32.mxu0 0.0
    %2234 = vmatmul.mubr.f32.gmra.mrb[0].mxu0 %v2164
    %v2235 = vpop.f32.mrb[0].mxu0
    %v2236 = vadd.f32 0.0, %v2235
    %v2237 = vpop.f32.mrb[0].mxu0
    %2238 = vdwg.mxu0
    %v2240 = vsel %vm2010, %v428, 0
    %v2243 = vsel %vm2010, %v1079, 0
    %2245 = vmatprep.subr.mxu0 0.0
    %2246 = vmatpush1.xpose.msra.mxu0 %v2243
    %2247 = vmatprep.subr.mxu0 0.0
    %2248 = vmatpush1.xpose.msra.mxu0 0.0
    %2249 = vmatprep.subr.mxu0 0.0
    %2250 = vmatpush1.xpose.msra.mxu0 0.0
    %2251 = vmatprep.subr.mxu0 0.0
    %2252 = vmatpush1.xpose.msra.mxu0 0.0
    %2253 = vmatprep.subr.mxu0 0.0
    %2254 = vmatpush1.xpose.msra.mxu0 0.0
    %2255 = vmatprep.subr.mxu0 0.0
    %2256 = vmatpush1.xpose.msra.mxu0 0.0
    %2257 = vmatprep.subr.mxu0 0.0
    %2258 = vmatpush1.xpose.msra.mxu0 0.0
    %2259 = vmatprep.subr.mxu0 0.0
    %2260 = vmatpush1.xpose.msra.mxu0 0.0
    %2261 = vmatprep.subr.mxu0 0.0
    %2262 = vmatpush1.xpose.msra.mxu0 0.0
    %2263 = vmatprep.subr.mxu0 0.0
    %2264 = vmatpush1.xpose.msra.mxu0 0.0
    %2265 = vmatprep.subr.mxu0 0.0
    %2266 = vmatpush1.xpose.msra.mxu0 0.0
    %2267 = vmatprep.subr.mxu0 0.0
    %2268 = vmatpush1.xpose.msra.mxu0 0.0
    %2269 = vmatprep.subr.mxu0 0.0
    %2270 = vmatpush1.xpose.msra.mxu0 0.0
    %2271 = vmatprep.subr.mxu0 0.0
    %2272 = vmatpush1.xpose.msra.mxu0 0.0
    %2273 = vmatprep.subr.mxu0 0.0
    %2274 = vmatpush1.xpose.msra.mxu0 0.0
    %2275 = vmatprep.subr.mxu0 0.0
    %2276 = vmatpush1.xpose.msra.mxu0 0.0
    %2277 = vmatprep.subr.mxu0 0.0
    %2278 = vmatpush1.xpose.msra.mxu0 0.0
    %2279 = vmatprep.subr.mxu0 0.0
    %2280 = vmatpush1.xpose.msra.mxu0 0.0
    %2281 = vmatprep.subr.mxu0 0.0
    %2282 = vmatpush1.xpose.msra.mxu0 0.0
    %2283 = vmatprep.subr.mxu0 0.0
    %2284 = vmatpush1.xpose.msra.mxu0 0.0
    %2285 = vmatprep.subr.mxu0 0.0
    %2286 = vmatpush1.xpose.msra.mxu0 0.0
    %2287 = vmatprep.subr.mxu0 0.0
    %2288 = vmatpush1.xpose.msra.mxu0 0.0
    %2289 = vmatprep.subr.mxu0 0.0
    %2290 = vmatpush1.xpose.msra.mxu0 0.0
    %2291 = vmatprep.subr.mxu0 0.0
    %2292 = vmatpush1.xpose.msra.mxu0 0.0
    %2293 = vmatprep.subr.mxu0 0.0
    %2294 = vmatpush1.xpose.msra.mxu0 0.0
    %2295 = vmatprep.subr.mxu0 0.0
    %2296 = vmatpush1.xpose.msra.mxu0 0.0
    %2297 = vmatprep.subr.mxu0 0.0
    %2298 = vmatpush1.xpose.msra.mxu0 0.0
    %2299 = vmatprep.subr.mxu0 0.0
    %2300 = vmatpush1.xpose.msra.mxu0 0.0
    %2301 = vmatprep.subr.mxu0 0.0
    %2302 = vmatpush1.xpose.msra.mxu0 0.0
    %2303 = vmatprep.subr.mxu0 0.0
    %2304 = vmatpush1.xpose.msra.mxu0 0.0
    %2305 = vmatprep.subr.mxu0 0.0
    %2306 = vmatpush1.xpose.msra.mxu0 0.0
    %2307 = vmatprep.subr.mxu0 0.0
    %2308 = vmatpush1.xpose.msra.mxu0 0.0
    %2309 = vmatprep.mubr.f32.mxu0 0.0
    %2310 = vmatmul.mubr.f32.gmra.mrb[0].mxu0 %v2240
    %v2311 = vpop.f32.mrb[0].mxu0
    %v2312 = vadd.f32 0.0, %v2311
    %v2313 = vpop.f32.mrb[0].mxu0
    %2314 = vdwg.mxu0
    %v2316 = vsel %vm2010, %v501, 0
    %v2319 = vsel %vm2010, %v1149, 0
    %2321 = vmatprep.subr.mxu0 0.0
    %2322 = vmatpush1.xpose.msra.mxu0 %v2319
    %2323 = vmatprep.subr.mxu0 0.0
    %2324 = vmatpush1.xpose.msra.mxu0 0.0
    %2325 = vmatprep.subr.mxu0 0.0
    %2326 = vmatpush1.xpose.msra.mxu0 0.0
    %2327 = vmatprep.subr.mxu0 0.0
    %2328 = vmatpush1.xpose.msra.mxu0 0.0
    %2329 = vmatprep.subr.mxu0 0.0
    %2330 = vmatpush1.xpose.msra.mxu0 0.0
    %2331 = vmatprep.subr.mxu0 0.0
    %2332 = vmatpush1.xpose.msra.mxu0 0.0
    %2333 = vmatprep.subr.mxu0 0.0
    %2334 = vmatpush1.xpose.msra.mxu0 0.0
    %2335 = vmatprep.subr.mxu0 0.0
    %2336 = vmatpush1.xpose.msra.mxu0 0.0
    %2337 = vmatprep.subr.mxu0 0.0
    %2338 = vmatpush1.xpose.msra.mxu0 0.0
    %2339 = vmatprep.subr.mxu0 0.0
    %2340 = vmatpush1.xpose.msra.mxu0 0.0
    %2341 = vmatprep.subr.mxu0 0.0
    %2342 = vmatpush1.xpose.msra.mxu0 0.0
    %2343 = vmatprep.subr.mxu0 0.0
    %2344 = vmatpush1.xpose.msra.mxu0 0.0
    %2345 = vmatprep.subr.mxu0 0.0
    %2346 = vmatpush1.xpose.msra.mxu0 0.0
    %2347 = vmatprep.subr.mxu0 0.0
    %2348 = vmatpush1.xpose.msra.mxu0 0.0
    %2349 = vmatprep.subr.mxu0 0.0
    %2350 = vmatpush1.xpose.msra.mxu0 0.0
    %2351 = vmatprep.subr.mxu0 0.0
    %2352 = vmatpush1.xpose.msra.mxu0 0.0
    %2353 = vmatprep.subr.mxu0 0.0
    %2354 = vmatpush1.xpose.msra.mxu0 0.0
    %2355 = vmatprep.subr.mxu0 0.0
    %2356 = vmatpush1.xpose.msra.mxu0 0.0
    %2357 = vmatprep.subr.mxu0 0.0
    %2358 = vmatpush1.xpose.msra.mxu0 0.0
    %2359 = vmatprep.subr.mxu0 0.0
    %2360 = vmatpush1.xpose.msra.mxu0 0.0
    %2361 = vmatprep.subr.mxu0 0.0
    %2362 = vmatpush1.xpose.msra.mxu0 0.0
    %2363 = vmatprep.subr.mxu0 0.0
    %2364 = vmatpush1.xpose.msra.mxu0 0.0
    %2365 = vmatprep.subr.mxu0 0.0
    %2366 = vmatpush1.xpose.msra.mxu0 0.0
    %2367 = vmatprep.subr.mxu0 0.0
    %2368 = vmatpush1.xpose.msra.mxu0 0.0
    %2369 = vmatprep.subr.mxu0 0.0
    %2370 = vmatpush1.xpose.msra.mxu0 0.0
    %2371 = vmatprep.subr.mxu0 0.0
    %2372 = vmatpush1.xpose.msra.mxu0 0.0
    %2373 = vmatprep.subr.mxu0 0.0
    %2374 = vmatpush1.xpose.msra.mxu0 0.0
    %2375 = vmatprep.subr.mxu0 0.0
    %2376 = vmatpush1.xpose.msra.mxu0 0.0
    %2377 = vmatprep.subr.mxu0 0.0
    %2378 = vmatpush1.xpose.msra.mxu0 0.0
    %2379 = vmatprep.subr.mxu0 0.0
    %2380 = vmatpush1.xpose.msra.mxu0 0.0
    %2381 = vmatprep.subr.mxu0 0.0
    %2382 = vmatpush1.xpose.msra.mxu0 0.0
    %2383 = vmatprep.subr.mxu0 0.0
    %2384 = vmatpush1.xpose.msra.mxu0 0.0
    %2385 = vmatprep.mubr.f32.mxu0 0.0
    %2386 = vmatmul.mubr.f32.gmra.mrb[0].mxu0 %v2316
    %v2387 = vpop.f32.mrb[0].mxu0
    %v2388 = vadd.f32 0.0, %v2387
    %v2389 = vpop.f32.mrb[0].mxu0
    %2390 = vdwg.mxu0
    %v2392 = vsel %vm2010, %v571, 0
    %v2395 = vsel %vm2010, %v1219, 0
    %2397 = vmatprep.subr.mxu0 0.0
    %2398 = vmatpush1.xpose.msra.mxu0 %v2395
    %2399 = vmatprep.subr.mxu0 0.0
    %2400 = vmatpush1.xpose.msra.mxu0 0.0
    %2401 = vmatprep.subr.mxu0 0.0
    %2402 = vmatpush1.xpose.msra.mxu0 0.0
    %2403 = vmatprep.subr.mxu0 0.0
    %2404 = vmatpush1.xpose.msra.mxu0 0.0
    %2405 = vmatprep.subr.mxu0 0.0
    %2406 = vmatpush1.xpose.msra.mxu0 0.0
    %2407 = vmatprep.subr.mxu0 0.0
    %2408 = vmatpush1.xpose.msra.mxu0 0.0
    %2409 = vmatprep.subr.mxu0 0.0
    %2410 = vmatpush1.xpose.msra.mxu0 0.0
    %2411 = vmatprep.subr.mxu0 0.0
    %2412 = vmatpush1.xpose.msra.mxu0 0.0
    %2413 = vmatprep.subr.mxu0 0.0
    %2414 = vmatpush1.xpose.msra.mxu0 0.0
    %2415 = vmatprep.subr.mxu0 0.0
    %2416 = vmatpush1.xpose.msra.mxu0 0.0
    %2417 = vmatprep.subr.mxu0 0.0
    %2418 = vmatpush1.xpose.msra.mxu0 0.0
    %2419 = vmatprep.subr.mxu0 0.0
    %2420 = vmatpush1.xpose.msra.mxu0 0.0
    %2421 = vmatprep.subr.mxu0 0.0
    %2422 = vmatpush1.xpose.msra.mxu0 0.0
    %2423 = vmatprep.subr.mxu0 0.0
    %2424 = vmatpush1.xpose.msra.mxu0 0.0
    %2425 = vmatprep.subr.mxu0 0.0
    %2426 = vmatpush1.xpose.msra.mxu0 0.0
    %2427 = vmatprep.subr.mxu0 0.0
    %2428 = vmatpush1.xpose.msra.mxu0 0.0
    %2429 = vmatprep.subr.mxu0 0.0
    %2430 = vmatpush1.xpose.msra.mxu0 0.0
    %2431 = vmatprep.subr.mxu0 0.0
    %2432 = vmatpush1.xpose.msra.mxu0 0.0
    %2433 = vmatprep.subr.mxu0 0.0
    %2434 = vmatpush1.xpose.msra.mxu0 0.0
    %2435 = vmatprep.subr.mxu0 0.0
    %2436 = vmatpush1.xpose.msra.mxu0 0.0
    %2437 = vmatprep.subr.mxu0 0.0
    %2438 = vmatpush1.xpose.msra.mxu0 0.0
    %2439 = vmatprep.subr.mxu0 0.0
    %2440 = vmatpush1.xpose.msra.mxu0 0.0
    %2441 = vmatprep.subr.mxu0 0.0
    %2442 = vmatpush1.xpose.msra.mxu0 0.0
    %2443 = vmatprep.subr.mxu0 0.0
    %2444 = vmatpush1.xpose.msra.mxu0 0.0
    %2445 = vmatprep.subr.mxu0 0.0
    %2446 = vmatpush1.xpose.msra.mxu0 0.0
    %2447 = vmatprep.subr.mxu0 0.0
    %2448 = vmatpush1.xpose.msra.mxu0 0.0
    %2449 = vmatprep.subr.mxu0 0.0
    %2450 = vmatpush1.xpose.msra.mxu0 0.0
    %2451 = vmatprep.subr.mxu0 0.0
    %2452 = vmatpush1.xpose.msra.mxu0 0.0
    %2453 = vmatprep.subr.mxu0 0.0
    %2454 = vmatpush1.xpose.msra.mxu0 0.0
    %2455 = vmatprep.subr.mxu0 0.0
    %2456 = vmatpush1.xpose.msra.mxu0 0.0
    %2457 = vmatprep.subr.mxu0 0.0
    %2458 = vmatpush1.xpose.msra.mxu0 0.0
    %2459 = vmatprep.subr.mxu0 0.0
    %2460 = vmatpush1.xpose.msra.mxu0 0.0
    %2461 = vmatprep.mubr.f32.mxu0 0.0
    %2462 = vmatmul.mubr.f32.gmra.mrb[0].mxu0 %v2392
    %v2463 = vpop.f32.mrb[0].mxu0
    %v2464 = vadd.f32 0.0, %v2463
    %v2465 = vpop.f32.mrb[0].mxu0
    %2466 = vdwg.mxu0
    %v2468 = vsel %vm2010, %v641, 0
    %v2471 = vsel %vm2010, %v1289, 0
    %2473 = vmatprep.subr.mxu0 0.0
    %2474 = vmatpush1.xpose.msra.mxu0 %v2471
    %2475 = vmatprep.subr.mxu0 0.0
    %2476 = vmatpush1.xpose.msra.mxu0 0.0
    %2477 = vmatprep.subr.mxu0 0.0
    %2478 = vmatpush1.xpose.msra.mxu0 0.0
    %2479 = vmatprep.subr.mxu0 0.0
    %2480 = vmatpush1.xpose.msra.mxu0 0.0
    %2481 = vmatprep.subr.mxu0 0.0
    %2482 = vmatpush1.xpose.msra.mxu0 0.0
    %2483 = vmatprep.subr.mxu0 0.0
    %2484 = vmatpush1.xpose.msra.mxu0 0.0
    %2485 = vmatprep.subr.mxu0 0.0
    %2486 = vmatpush1.xpose.msra.mxu0 0.0
    %2487 = vmatprep.subr.mxu0 0.0
    %2488 = vmatpush1.xpose.msra.mxu0 0.0
    %2489 = vmatprep.subr.mxu0 0.0
    %2490 = vmatpush1.xpose.msra.mxu0 0.0
    %2491 = vmatprep.subr.mxu0 0.0
    %2492 = vmatpush1.xpose.msra.mxu0 0.0
    %2493 = vmatprep.subr.mxu0 0.0
    %2494 = vmatpush1.xpose.msra.mxu0 0.0
    %2495 = vmatprep.subr.mxu0 0.0
    %2496 = vmatpush1.xpose.msra.mxu0 0.0
    %2497 = vmatprep.subr.mxu0 0.0
    %2498 = vmatpush1.xpose.msra.mxu0 0.0
    %2499 = vmatprep.subr.mxu0 0.0
    %2500 = vmatpush1.xpose.msra.mxu0 0.0
    %2501 = vmatprep.subr.mxu0 0.0
    %2502 = vmatpush1.xpose.msra.mxu0 0.0
    %2503 = vmatprep.subr.mxu0 0.0
    %2504 = vmatpush1.xpose.msra.mxu0 0.0
    %2505 = vmatprep.subr.mxu0 0.0
    %2506 = vmatpush1.xpose.msra.mxu0 0.0
    %2507 = vmatprep.subr.mxu0 0.0
    %2508 = vmatpush1.xpose.msra.mxu0 0.0
    %2509 = vmatprep.subr.mxu0 0.0
    %2510 = vmatpush1.xpose.msra.mxu0 0.0
    %2511 = vmatprep.subr.mxu0 0.0
    %2512 = vmatpush1.xpose.msra.mxu0 0.0
    %2513 = vmatprep.subr.mxu0 0.0
    %2514 = vmatpush1.xpose.msra.mxu0 0.0
    %2515 = vmatprep.subr.mxu0 0.0
    %2516 = vmatpush1.xpose.msra.mxu0 0.0
    %2517 = vmatprep.subr.mxu0 0.0
    %2518 = vmatpush1.xpose.msra.mxu0 0.0
    %2519 = vmatprep.subr.mxu0 0.0
    %2520 = vmatpush1.xpose.msra.mxu0 0.0
    %2521 = vmatprep.subr.mxu0 0.0
    %2522 = vmatpush1.xpose.msra.mxu0 0.0
    %2523 = vmatprep.subr.mxu0 0.0
    %2524 = vmatpush1.xpose.msra.mxu0 0.0
    %2525 = vmatprep.subr.mxu0 0.0
    %2526 = vmatpush1.xpose.msra.mxu0 0.0
    %2527 = vmatprep.subr.mxu0 0.0
    %2528 = vmatpush1.xpose.msra.mxu0 0.0
    %2529 = vmatprep.subr.mxu0 0.0
    %2530 = vmatpush1.xpose.msra.mxu0 0.0
    %2531 = vmatprep.subr.mxu0 0.0
    %2532 = vmatpush1.xpose.msra.mxu0 0.0
    %2533 = vmatprep.subr.mxu0 0.0
    %2534 = vmatpush1.xpose.msra.mxu0 0.0
    %2535 = vmatprep.subr.mxu0 0.0
    %2536 = vmatpush1.xpose.msra.mxu0 0.0
    %2537 = vmatprep.mubr.f32.mxu0 0.0
    %2538 = vmatmul.mubr.f32.gmra.mrb[0].mxu0 %v2468
    %v2539 = vpop.f32.mrb[0].mxu0
    %v2540 = vadd.f32 0.0, %v2539
    %v2541 = vpop.f32.mrb[0].mxu0
    %2542 = vdwg.mxu0
    %v2544 = vsel %vm2010, %v711, 0
    %v2547 = vsel %vm2010, %v1359, 0
    %2549 = vmatprep.subr.mxu0 0.0
    %2550 = vmatpush1.xpose.msra.mxu0 %v2547
    %2551 = vmatprep.subr.mxu0 0.0
    %2552 = vmatpush1.xpose.msra.mxu0 0.0
    %2553 = vmatprep.subr.mxu0 0.0
    %2554 = vmatpush1.xpose.msra.mxu0 0.0
    %2555 = vmatprep.subr.mxu0 0.0
    %2556 = vmatpush1.xpose.msra.mxu0 0.0
    %2557 = vmatprep.subr.mxu0 0.0
    %2558 = vmatpush1.xpose.msra.mxu0 0.0
    %2559 = vmatprep.subr.mxu0 0.0
    %2560 = vmatpush1.xpose.msra.mxu0 0.0
    %2561 = vmatprep.subr.mxu0 0.0
    %2562 = vmatpush1.xpose.msra.mxu0 0.0
    %2563 = vmatprep.subr.mxu0 0.0
    %2564 = vmatpush1.xpose.msra.mxu0 0.0
    %2565 = vmatprep.subr.mxu0 0.0
    %2566 = vmatpush1.xpose.msra.mxu0 0.0
    %2567 = vmatprep.subr.mxu0 0.0
    %2568 = vmatpush1.xpose.msra.mxu0 0.0
    %2569 = vmatprep.subr.mxu0 0.0
    %2570 = vmatpush1.xpose.msra.mxu0 0.0
    %2571 = vmatprep.subr.mxu0 0.0
    %2572 = vmatpush1.xpose.msra.mxu0 0.0
    %2573 = vmatprep.subr.mxu0 0.0
    %2574 = vmatpush1.xpose.msra.mxu0 0.0
    %2575 = vmatprep.subr.mxu0 0.0
    %2576 = vmatpush1.xpose.msra.mxu0 0.0
    %2577 = vmatprep.subr.mxu0 0.0
    %2578 = vmatpush1.xpose.msra.mxu0 0.0
    %2579 = vmatprep.subr.mxu0 0.0
    %2580 = vmatpush1.xpose.msra.mxu0 0.0
    %2581 = vmatprep.subr.mxu0 0.0
    %2582 = vmatpush1.xpose.msra.mxu0 0.0
    %2583 = vmatprep.subr.mxu0 0.0
    %2584 = vmatpush1.xpose.msra.mxu0 0.0
    %2585 = vmatprep.subr.mxu0 0.0
    %2586 = vmatpush1.xpose.msra.mxu0 0.0
    %2587 = vmatprep.subr.mxu0 0.0
    %2588 = vmatpush1.xpose.msra.mxu0 0.0
    %2589 = vmatprep.subr.mxu0 0.0
    %2590 = vmatpush1.xpose.msra.mxu0 0.0
    %2591 = vmatprep.subr.mxu0 0.0
    %2592 = vmatpush1.xpose.msra.mxu0 0.0
    %2593 = vmatprep.subr.mxu0 0.0
    %2594 = vmatpush1.xpose.msra.mxu0 0.0
    %2595 = vmatprep.subr.mxu0 0.0
    %2596 = vmatpush1.xpose.msra.mxu0 0.0
    %2597 = vmatprep.subr.mxu0 0.0
    %2598 = vmatpush1.xpose.msra.mxu0 0.0
    %2599 = vmatprep.subr.mxu0 0.0
    %2600 = vmatpush1.xpose.msra.mxu0 0.0
    %2601 = vmatprep.subr.mxu0 0.0
    %2602 = vmatpush1.xpose.msra.mxu0 0.0
    %2603 = vmatprep.subr.mxu0 0.0
    %2604 = vmatpush1.xpose.msra.mxu0 0.0
    %2605 = vmatprep.subr.mxu0 0.0
    %2606 = vmatpush1.xpose.msra.mxu0 0.0
    %2607 = vmatprep.subr.mxu0 0.0
    %2608 = vmatpush1.xpose.msra.mxu0 0.0
    %2609 = vmatprep.subr.mxu0 0.0
    %2610 = vmatpush1.xpose.msra.mxu0 0.0
    %2611 = vmatprep.subr.mxu0 0.0
    %2612 = vmatpush1.xpose.msra.mxu0 0.0
    %2613 = vmatprep.mubr.f32.mxu0 0.0
    %2614 = vmatmul.mubr.f32.gmra.mrb[0].mxu0 %v2544
    %v2615 = vpop.f32.mrb[0].mxu0
    %v2616 = vadd.f32 0.0, %v2615
    %v2617 = vpop.f32.mrb[0].mxu0
    %2618 = vdwg.mxu0
    %v2619 = vmul.f32 %v2084, 0.35355338
    %v2620 = vmul.f32 %v2160, 0.35355338
    %v2621 = vmul.f32 %v2236, 0.35355338
    %v2622 = vmul.f32 %v2312, 0.35355338
    %v2623 = vmul.f32 %v2388, 0.35355338
    %v2624 = vmul.f32 %v2464, 0.35355338
    %v2625 = vmul.f32 %v2540, 0.35355338
    %v2626 = vmul.f32 %v2616, 0.35355338
    %v2627 = vsel %vm2010, %v2619, -inf
    %2628 = vmax.xlane.f32.xlu0 %v2627
    %v2629 = vpop.xlane.xlu0 %2628
    %v2630 = vsel %vm2010, %v2620, -inf
    %2631 = vmax.xlane.f32.xlu0 %v2630
    %v2632 = vpop.xlane.xlu0 %2631
    %v2633 = vsel %vm2010, %v2621, -inf
    %2634 = vmax.xlane.f32.xlu0 %v2633
    %v2635 = vpop.xlane.xlu0 %2634
    %v2636 = vsel %vm2010, %v2622, -inf
    %2637 = vmax.xlane.f32.xlu0 %v2636
    %v2638 = vpop.xlane.xlu0 %2637
    %v2639 = vsel %vm2010, %v2623, -inf
    %2640 = vmax.xlane.f32.xlu0 %v2639
    %v2641 = vpop.xlane.xlu0 %2640
    %v2642 = vsel %vm2010, %v2624, -inf
    %2643 = vmax.xlane.f32.xlu0 %v2642
    %v2644 = vpop.xlane.xlu0 %2643
    %v2645 = vsel %vm2010, %v2625, -inf
    %2646 = vmax.xlane.f32.xlu0 %v2645
    %v2647 = vpop.xlane.xlu0 %2646
    %v2648 = vsel %vm2010, %v2626, -inf
    %2649 = vmax.xlane.f32.xlu0 %v2648
    %v2650 = vpop.xlane.xlu0 %2649
    %v2651 = vsub.f32 %v2619, %v2629
    %v2652 = vsub.f32 %v2620, %v2632
    %v2653 = vsub.f32 %v2621, %v2635
    %v2654 = vsub.f32 %v2622, %v2638
    %v2655 = vsub.f32 %v2623, %v2641
    %v2656 = vsub.f32 %v2624, %v2644
    %v2657 = vsub.f32 %v2625, %v2647
    %v2658 = vsub.f32 %v2626, %v2650
    %v2659 = vmul.f32 %v2651, 1.442695
    %v2660 = vpow.pop %v2659
    %v2661 = vmul.f32 %v2652, 1.442695
    %v2662 = vpow.pop %v2661
    %v2663 = vmul.f32 %v2653, 1.442695
    %v2664 = vpow.pop %v2663
    %v2665 = vmul.f32 %v2654, 1.442695
    %v2666 = vpow.pop %v2665
    %v2667 = vmul.f32 %v2655, 1.442695
    %v2668 = vpow.pop %v2667
    %v2669 = vmul.f32 %v2656, 1.442695
    %v2670 = vpow.pop %v2669
    %v2671 = vmul.f32 %v2657, 1.442695
    %v2672 = vpow.pop %v2671
    %v2673 = vmul.f32 %v2658, 1.442695
    %v2674 = vpow.pop %v2673
    %v2675 = vsel %vm2010, %v2660, 0.0
    %2676 = vadd.xlane.f32.xlu0 %v2675
    %v2677 = vpop.xlane.xlu0 %2676
    %v2678 = vsel %vm2010, %v2662, 0.0
    %2679 = vadd.xlane.f32.xlu0 %v2678
    %v2680 = vpop.xlane.xlu0 %2679
    %v2681 = vsel %vm2010, %v2664, 0.0
    %2682 = vadd.xlane.f32.xlu0 %v2681
    %v2683 = vpop.xlane.xlu0 %2682
    %v2684 = vsel %vm2010, %v2666, 0.0
    %2685 = vadd.xlane.f32.xlu0 %v2684
    %v2686 = vpop.xlane.xlu0 %2685
    %v2687 = vsel %vm2010, %v2668, 0.0
    %2688 = vadd.xlane.f32.xlu0 %v2687
    %v2689 = vpop.xlane.xlu0 %2688
    %v2690 = vsel %vm2010, %v2670, 0.0
    %2691 = vadd.xlane.f32.xlu0 %v2690
    %v2692 = vpop.xlane.xlu0 %2691
    %v2693 = vsel %vm2010, %v2672, 0.0
    %2694 = vadd.xlane.f32.xlu0 %v2693
    %v2695 = vpop.xlane.xlu0 %2694
    %v2696 = vsel %vm2010, %v2674, 0.0
    %2697 = vadd.xlane.f32.xlu0 %v2696
    %v2698 = vpop.xlane.xlu0 %2697
    %v2699 = vrcp.pop %v2677
    %v2700 = vrcp.pop %v2680
    %v2701 = vrcp.pop %v2683
    %v2702 = vrcp.pop %v2686
    %v2703 = vrcp.pop %v2689
    %v2704 = vrcp.pop %v2692
    %v2705 = vrcp.pop %v2695
    %v2706 = vrcp.pop %v2698
    %v2707 = vmul.f32 %v2660, %v2699
    %v2708 = vmul.f32 %v2662, %v2700
    %v2709 = vmul.f32 %v2664, %v2701
    %v2710 = vmul.f32 %v2666, %v2702
    %v2711 = vmul.f32 %v2668, %v2703
    %v2712 = vmul.f32 %v2670, %v2704
    %v2713 = vmul.f32 %v2672, %v2705
    %v2714 = vmul.f32 %v2674, %v2706
    %v2716 = vsel %vm2010, %v2707, 0
    %2718 = vmatprep.subr.mxu0 0.0
    %2719 = vmatpush1.msra.mxu0 %v1517
    %2720 = vmatprep.subr.mxu0 0.0
    %2721 = vmatpush1.msra.mxu0 0.0
    %2722 = vmatprep.subr.mxu0 0.0
    %2723 = vmatpush1.msra.mxu0 0.0
    %2724 = vmatprep.subr.mxu0 0.0
    %2725 = vmatpush1.msra.mxu0 0.0
    %2726 = vmatprep.subr.mxu0 0.0
    %2727 = vmatpush1.msra.mxu0 0.0
    %2728 = vmatprep.subr.mxu0 0.0
    %2729 = vmatpush1.msra.mxu0 0.0
    %2730 = vmatprep.subr.mxu0 0.0
    %2731 = vmatpush1.msra.mxu0 0.0
    %2732 = vmatprep.subr.mxu0 0.0
    %2733 = vmatpush1.msra.mxu0 0.0
    %2734 = vmatprep.subr.mxu0 0.0
    %2735 = vmatpush1.msra.mxu0 0.0
    %2736 = vmatprep.subr.mxu0 0.0
    %2737 = vmatpush1.msra.mxu0 0.0
    %2738 = vmatprep.subr.mxu0 0.0
    %2739 = vmatpush1.msra.mxu0 0.0
    %2740 = vmatprep.subr.mxu0 0.0
    %2741 = vmatpush1.msra.mxu0 0.0
    %2742 = vmatprep.subr.mxu0 0.0
    %2743 = vmatpush1.msra.mxu0 0.0
    %2744 = vmatprep.subr.mxu0 0.0
    %2745 = vmatpush1.msra.mxu0 0.0
    %2746 = vmatprep.subr.mxu0 0.0
    %2747 = vmatpush1.msra.mxu0 0.0
    %2748 = vmatprep.subr.mxu0 0.0
    %2749 = vmatpush1.msra.mxu0 0.0
    %2750 = vmatprep.subr.mxu0 0.0
    %2751 = vmatpush1.msra.mxu0 0.0
    %2752 = vmatprep.subr.mxu0 0.0
    %2753 = vmatpush1.msra.mxu0 0.0
    %2754 = vmatprep.subr.mxu0 0.0
    %2755 = vmatpush1.msra.mxu0 0.0
    %2756 = vmatprep.subr.mxu0 0.0
    %2757 = vmatpush1.msra.mxu0 0.0
    %2758 = vmatprep.subr.mxu0 0.0
    %2759 = vmatpush1.msra.mxu0 0.0
    %2760 = vmatprep.subr.mxu0 0.0
    %2761 = vmatpush1.msra.mxu0 0.0
    %2762 = vmatprep.subr.mxu0 0.0
    %2763 = vmatpush1.msra.mxu0 0.0
    %2764 = vmatprep.subr.mxu0 0.0
    %2765 = vmatpush1.msra.mxu0 0.0
    %2766 = vmatprep.subr.mxu0 0.0
    %2767 = vmatpush1.msra.mxu0 0.0
    %2768 = vmatprep.subr.mxu0 0.0
    %2769 = vmatpush1.msra.mxu0 0.0
    %2770 = vmatprep.subr.mxu0 0.0
    %2771 = vmatpush1.msra.mxu0 0.0
    %2772 = vmatprep.subr.mxu0 0.0
    %2773 = vmatpush1.msra.mxu0 0.0
    %2774 = vmatprep.subr.mxu0 0.0
    %2775 = vmatpush1.msra.mxu0 0.0
    %2776 = vmatprep.subr.mxu0 0.0
    %2777 = vmatpush1.msra.mxu0 0.0
    %2778 = vmatprep.subr.mxu0 0.0
    %2779 = vmatpush1.msra.mxu0 0.0
    %2780 = vmatprep.subr.mxu0 0.0
    %2781 = vmatpush1.msra.mxu0 0.0
    %2782 = vmatprep.mubr.f32.mxu0 0.0
    %2783 = vmatmul.mubr.f32.gmra.mrb[0].mxu0 %v2716
    %v2784 = vpop.f32.mrb[0].mxu0
    %v2785 = vadd.f32 0.0, %v2784
    %v2786 = vpop.f32.mrb[0].mxu0
    %2787 = vdwg.mxu0
    %v2789 = vsel %vm2010, %v2708, 0
    %2791 = vmatprep.subr.mxu0 0.0
    %2792 = vmatpush1.msra.mxu0 %v1587
    %2793 = vmatprep.subr.mxu0 0.0
    %2794 = vmatpush1.msra.mxu0 0.0
    %2795 = vmatprep.subr.mxu0 0.0
    %2796 = vmatpush1.msra.mxu0 0.0
    %2797 = vmatprep.subr.mxu0 0.0
    %2798 = vmatpush1.msra.mxu0 0.0
    %2799 = vmatprep.subr.mxu0 0.0
    %2800 = vmatpush1.msra.mxu0 0.0
    %2801 = vmatprep.subr.mxu0 0.0
    %2802 = vmatpush1.msra.mxu0 0.0
    %2803 = vmatprep.subr.mxu0 0.0
    %2804 = vmatpush1.msra.mxu0 0.0
    %2805 = vmatprep.subr.mxu0 0.0
    %2806 = vmatpush1.msra.mxu0 0.0
    %2807 = vmatprep.subr.mxu0 0.0
    %2808 = vmatpush1.msra.mxu0 0.0
    %2809 = vmatprep.subr.mxu0 0.0
    %2810 = vmatpush1.msra.mxu0 0.0
    %2811 = vmatprep.subr.mxu0 0.0
    %2812 = vmatpush1.msra.mxu0 0.0
    %2813 = vmatprep.subr.mxu0 0.0
    %2814 = vmatpush1.msra.mxu0 0.0
    %2815 = vmatprep.subr.mxu0 0.0
    %2816 = vmatpush1.msra.mxu0 0.0
    %2817 = vmatprep.subr.mxu0 0.0
    %2818 = vmatpush1.msra.mxu0 0.0
    %2819 = vmatprep.subr.mxu0 0.0
    %2820 = vmatpush1.msra.mxu0 0.0
    %2821 = vmatprep.subr.mxu0 0.0
    %2822 = vmatpush1.msra.mxu0 0.0
    %2823 = vmatprep.subr.mxu0 0.0
    %2824 = vmatpush1.msra.mxu0 0.0
    %2825 = vmatprep.subr.mxu0 0.0
    %2826 = vmatpush1.msra.mxu0 0.0
    %2827 = vmatprep.subr.mxu0 0.0
    %2828 = vmatpush1.msra.mxu0 0.0
    %2829 = vmatprep.subr.mxu0 0.0
    %2830 = vmatpush1.msra.mxu0 0.0
    %2831 = vmatprep.subr.mxu0 0.0
    %2832 = vmatpush1.msra.mxu0 0.0
    %2833 = vmatprep.subr.mxu0 0.0
    %2834 = vmatpush1.msra.mxu0 0.0
    %2835 = vmatprep.subr.mxu0 0.0
    %2836 = vmatpush1.msra.mxu0 0.0
    %2837 = vmatprep.subr.mxu0 0.0
    %2838 = vmatpush1.msra.mxu0 0.0
    %2839 = vmatprep.subr.mxu0 0.0
    %2840 = vmatpush1.msra.mxu0 0.0
    %2841 = vmatprep.subr.mxu0 0.0
    %2842 = vmatpush1.msra.mxu0 0.0
    %2843 = vmatprep.subr.mxu0 0.0
    %2844 = vmatpush1.msra.mxu0 0.0
    %2845 = vmatprep.subr.mxu0 0.0
    %2846 = vmatpush1.msra.mxu0 0.0
    %2847 = vmatprep.subr.mxu0 0.0
    %2848 = vmatpush1.msra.mxu0 0.0
    %2849 = vmatprep.subr.mxu0 0.0
    %2850 = vmatpush1.msra.mxu0 0.0
    %2851 = vmatprep.subr.mxu0 0.0
    %2852 = vmatpush1.msra.mxu0 0.0
    %2853 = vmatprep.subr.mxu0 0.0
    %2854 = vmatpush1.msra.mxu0 0.0
    %2855 = vmatprep.mubr.f32.mxu0 0.0
    %2856 = vmatmul.mubr.f32.gmra.mrb[0].mxu0 %v2789
    %v2857 = vpop.f32.mrb[0].mxu0
    %v2858 = vadd.f32 0.0, %v2857
    %v2859 = vpop.f32.mrb[0].mxu0
    %2860 = vdwg.mxu0
    %v2862 = vsel %vm2010, %v2709, 0
    %2864 = vmatprep.subr.mxu0 0.0
    %2865 = vmatpush1.msra.mxu0 %v1657
    %2866 = vmatprep.subr.mxu0 0.0
    %2867 = vmatpush1.msra.mxu0 0.0
    %2868 = vmatprep.subr.mxu0 0.0
    %2869 = vmatpush1.msra.mxu0 0.0
    %2870 = vmatprep.subr.mxu0 0.0
    %2871 = vmatpush1.msra.mxu0 0.0
    %2872 = vmatprep.subr.mxu0 0.0
    %2873 = vmatpush1.msra.mxu0 0.0
    %2874 = vmatprep.subr.mxu0 0.0
    %2875 = vmatpush1.msra.mxu0 0.0
    %2876 = vmatprep.subr.mxu0 0.0
    %2877 = vmatpush1.msra.mxu0 0.0
    %2878 = vmatprep.subr.mxu0 0.0
    %2879 = vmatpush1.msra.mxu0 0.0
    %2880 = vmatprep.subr.mxu0 0.0
    %2881 = vmatpush1.msra.mxu0 0.0
    %2882 = vmatprep.subr.mxu0 0.0
    %2883 = vmatpush1.msra.mxu0 0.0
    %2884 = vmatprep.subr.mxu0 0.0
    %2885 = vmatpush1.msra.mxu0 0.0
    %2886 = vmatprep.subr.mxu0 0.0
    %2887 = vmatpush1.msra.mxu0 0.0
    %2888 = vmatprep.subr.mxu0 0.0
    %2889 = vmatpush1.msra.mxu0 0.0
    %2890 = vmatprep.subr.mxu0 0.0
    %2891 = vmatpush1.msra.mxu0 0.0
    %2892 = vmatprep.subr.mxu0 0.0
    %2893 = vmatpush1.msra.mxu0 0.0
    %2894 = vmatprep.subr.mxu0 0.0
    %2895 = vmatpush1.msra.mxu0 0.0
    %2896 = vmatprep.subr.mxu0 0.0
    %2897 = vmatpush1.msra.mxu0 0.0
    %2898 = vmatprep.subr.mxu0 0.0
    %2899 = vmatpush1.msra.mxu0 0.0
    %2900 = vmatprep.subr.mxu0 0.0
    %2901 = vmatpush1.msra.mxu0 0.0
    %2902 = vmatprep.subr.mxu0 0.0
    %2903 = vmatpush1.msra.mxu0 0.0
    %2904 = vmatprep.subr.mxu0 0.0
    %2905 = vmatpush1.msra.mxu0 0.0
    %2906 = vmatprep.subr.mxu0 0.0
    %2907 = vmatpush1.msra.mxu0 0.0
    %2908 = vmatprep.subr.mxu0 0.0
    %2909 = vmatpush1.msra.mxu0 0.0
    %2910 = vmatprep.subr.mxu0 0.0
    %2911 = vmatpush1.msra.mxu0 0.0
    %2912 = vmatprep.subr.mxu0 0.0
    %2913 = vmatpush1.msra.mxu0 0.0
    %2914 = vmatprep.subr.mxu0 0.0
    %2915 = vmatpush1.msra.mxu0 0.0
    %2916 = vmatprep.subr.mxu0 0.0
    %2917 = vmatpush1.msra.mxu0 0.0
    %2918 = vmatprep.subr.mxu0 0.0
    %2919 = vmatpush1.msra.mxu0 0.0
    %2920 = vmatprep.subr.mxu0 0.0
    %2921 = vmatpush1.msra.mxu0 0.0
    %2922 = vmatprep.subr.mxu0 0.0
    %2923 = vmatpush1.msra.mxu0 0.0
    %2924 = vmatprep.subr.mxu0 0.0
    %2925 = vmatpush1.msra.mxu0 0.0
    %2926 = vmatprep.subr.mxu0 0.0
    %2927 = vmatpush1.msra.mxu0 0.0
    %2928 = vmatprep.mubr.f32.mxu0 0.0
    %2929 = vmatmul.mubr.f32.gmra.mrb[0].mxu0 %v2862
    %v2930 = vpop.f32.mrb[0].mxu0
    %v2931 = vadd.f32 0.0, %v2930
    %v2932 = vpop.f32.mrb[0].mxu0
    %2933 = vdwg.mxu0
    %v2935 = vsel %vm2010, %v2710, 0
    %2937 = vmatprep.subr.mxu0 0.0
    %2938 = vmatpush1.msra.mxu0 %v1727
    %2939 = vmatprep.subr.mxu0 0.0
    %2940 = vmatpush1.msra.mxu0 0.0
    %2941 = vmatprep.subr.mxu0 0.0
    %2942 = vmatpush1.msra.mxu0 0.0
    %2943 = vmatprep.subr.mxu0 0.0
    %2944 = vmatpush1.msra.mxu0 0.0
    %2945 = vmatprep.subr.mxu0 0.0
    %2946 = vmatpush1.msra.mxu0 0.0
    %2947 = vmatprep.subr.mxu0 0.0
    %2948 = vmatpush1.msra.mxu0 0.0
    %2949 = vmatprep.subr.mxu0 0.0
    %2950 = vmatpush1.msra.mxu0 0.0
    %2951 = vmatprep.subr.mxu0 0.0
    %2952 = vmatpush1.msra.mxu0 0.0
    %2953 = vmatprep.subr.mxu0 0.0
    %2954 = vmatpush1.msra.mxu0 0.0
    %2955 = vmatprep.subr.mxu0 0.0
    %2956 = vmatpush1.msra.mxu0 0.0
    %2957 = vmatprep.subr.mxu0 0.0
    %2958 = vmatpush1.msra.mxu0 0.0
    %2959 = vmatprep.subr.mxu0 0.0
    %2960 = vmatpush1.msra.mxu0 0.0
    %2961 = vmatprep.subr.mxu0 0.0
    %2962 = vmatpush1.msra.mxu0 0.0
    %2963 = vmatprep.subr.mxu0 0.0
    %2964 = vmatpush1.msra.mxu0 0.0
    %2965 = vmatprep.subr.mxu0 0.0
    %2966 = vmatpush1.msra.mxu0 0.0
    %2967 = vmatprep.subr.mxu0 0.0
    %2968 = vmatpush1.msra.mxu0 0.0
    %2969 = vmatprep.subr.mxu0 0.0
    %2970 = vmatpush1.msra.mxu0 0.0
    %2971 = vmatprep.subr.mxu0 0.0
    %2972 = vmatpush1.msra.mxu0 0.0
    %2973 = vmatprep.subr.mxu0 0.0
    %2974 = vmatpush1.msra.mxu0 0.0
    %2975 = vmatprep.subr.mxu0 0.0
    %2976 = vmatpush1.msra.mxu0 0.0
    %2977 = vmatprep.subr.mxu0 0.0
    %2978 = vmatpush1.msra.mxu0 0.0
    %2979 = vmatprep.subr.mxu0 0.0
    %2980 = vmatpush1.msra.mxu0 0.0
    %2981 = vmatprep.subr.mxu0 0.0
    %2982 = vmatpush1.msra.mxu0 0.0
    %2983 = vmatprep.subr.mxu0 0.0
    %2984 = vmatpush1.msra.mxu0 0.0
    %2985 = vmatprep.subr.mxu0 0.0
    %2986 = vmatpush1.msra.mxu0 0.0
    %2987 = vmatprep.subr.mxu0 0.0
    %2988 = vmatpush1.msra.mxu0 0.0
    %2989 = vmatprep.subr.mxu0 0.0
    %2990 = vmatpush1.msra.mxu0 0.0
    %2991 = vmatprep.subr.mxu0 0.0
    %2992 = vmatpush1.msra.mxu0 0.0
    %2993 = vmatprep.subr.mxu0 0.0
    %2994 = vmatpush1.msra.mxu0 0.0
    %2995 = vmatprep.subr.mxu0 0.0
    %2996 = vmatpush1.msra.mxu0 0.0
    %2997 = vmatprep.subr.mxu0 0.0
    %2998 = vmatpush1.msra.mxu0 0.0
    %2999 = vmatprep.subr.mxu0 0.0
    %3000 = vmatpush1.msra.mxu0 0.0
    %3001 = vmatprep.mubr.f32.mxu0 0.0
    %3002 = vmatmul.mubr.f32.gmra.mrb[0].mxu0 %v2935
    %v3003 = vpop.f32.mrb[0].mxu0
    %v3004 = vadd.f32 0.0, %v3003
    %v3005 = vpop.f32.mrb[0].mxu0
    %3006 = vdwg.mxu0
    %v3008 = vsel %vm2010, %v2711, 0
    %3010 = vmatprep.subr.mxu0 0.0
    %3011 = vmatpush1.msra.mxu0 %v1797
    %3012 = vmatprep.subr.mxu0 0.0
    %3013 = vmatpush1.msra.mxu0 0.0
    %3014 = vmatprep.subr.mxu0 0.0
    %3015 = vmatpush1.msra.mxu0 0.0
    %3016 = vmatprep.subr.mxu0 0.0
    %3017 = vmatpush1.msra.mxu0 0.0
    %3018 = vmatprep.subr.mxu0 0.0
    %3019 = vmatpush1.msra.mxu0 0.0
    %3020 = vmatprep.subr.mxu0 0.0
    %3021 = vmatpush1.msra.mxu0 0.0
    %3022 = vmatprep.subr.mxu0 0.0
    %3023 = vmatpush1.msra.mxu0 0.0
    %3024 = vmatprep.subr.mxu0 0.0
    %3025 = vmatpush1.msra.mxu0 0.0
    %3026 = vmatprep.subr.mxu0 0.0
    %3027 = vmatpush1.msra.mxu0 0.0
    %3028 = vmatprep.subr.mxu0 0.0
    %3029 = vmatpush1.msra.mxu0 0.0
    %3030 = vmatprep.subr.mxu0 0.0
    %3031 = vmatpush1.msra.mxu0 0.0
    %3032 = vmatprep.subr.mxu0 0.0
    %3033 = vmatpush1.msra.mxu0 0.0
    %3034 = vmatprep.subr.mxu0 0.0
    %3035 = vmatpush1.msra.mxu0 0.0
    %3036 = vmatprep.subr.mxu0 0.0
    %3037 = vmatpush1.msra.mxu0 0.0
    %3038 = vmatprep.subr.mxu0 0.0
    %3039 = vmatpush1.msra.mxu0 0.0
    %3040 = vmatprep.subr.mxu0 0.0
    %3041 = vmatpush1.msra.mxu0 0.0
    %3042 = vmatprep.subr.mxu0 0.0
    %3043 = vmatpush1.msra.mxu0 0.0
    %3044 = vmatprep.subr.mxu0 0.0
    %3045 = vmatpush1.msra.mxu0 0.0
    %3046 = vmatprep.subr.mxu0 0.0
    %3047 = vmatpush1.msra.mxu0 0.0
    %3048 = vmatprep.subr.mxu0 0.0
    %3049 = vmatpush1.msra.mxu0 0.0
    %3050 = vmatprep.subr.mxu0 0.0
    %3051 = vmatpush1.msra.mxu0 0.0
    %3052 = vmatprep.subr.mxu0 0.0
    %3053 = vmatpush1.msra.mxu0 0.0
    %3054 = vmatprep.subr.mxu0 0.0
    %3055 = vmatpush1.msra.mxu0 0.0
    %3056 = vmatprep.subr.mxu0 0.0
    %3057 = vmatpush1.msra.mxu0 0.0
    %3058 = vmatprep.subr.mxu0 0.0
    %3059 = vmatpush1.msra.mxu0 0.0
    %3060 = vmatprep.subr.mxu0 0.0
    %3061 = vmatpush1.msra.mxu0 0.0
    %3062 = vmatprep.subr.mxu0 0.0
    %3063 = vmatpush1.msra.mxu0 0.0
    %3064 = vmatprep.subr.mxu0 0.0
    %3065 = vmatpush1.msra.mxu0 0.0
    %3066 = vmatprep.subr.mxu0 0.0
    %3067 = vmatpush1.msra.mxu0 0.0
    %3068 = vmatprep.subr.mxu0 0.0
    %3069 = vmatpush1.msra.mxu0 0.0
    %3070 = vmatprep.subr.mxu0 0.0
    %3071 = vmatpush1.msra.mxu0 0.0
    %3072 = vmatprep.subr.mxu0 0.0
    %3073 = vmatpush1.msra.mxu0 0.0
    %3074 = vmatprep.mubr.f32.mxu0 0.0
    %3075 = vmatmul.mubr.f32.gmra.mrb[0].mxu0 %v3008
    %v3076 = vpop.f32.mrb[0].mxu0
    %v3077 = vadd.f32 0.0, %v3076
    %v3078 = vpop.f32.mrb[0].mxu0
    %3079 = vdwg.mxu0
    %v3081 = vsel %vm2010, %v2712, 0
    %3083 = vmatprep.subr.mxu0 0.0
    %3084 = vmatpush1.msra.mxu0 %v1867
    %3085 = vmatprep.subr.mxu0 0.0
    %3086 = vmatpush1.msra.mxu0 0.0
    %3087 = vmatprep.subr.mxu0 0.0
    %3088 = vmatpush1.msra.mxu0 0.0
    %3089 = vmatprep.subr.mxu0 0.0
    %3090 = vmatpush1.msra.mxu0 0.0
    %3091 = vmatprep.subr.mxu0 0.0
    %3092 = vmatpush1.msra.mxu0 0.0
    %3093 = vmatprep.subr.mxu0 0.0
    %3094 = vmatpush1.msra.mxu0 0.0
    %3095 = vmatprep.subr.mxu0 0.0
    %3096 = vmatpush1.msra.mxu0 0.0
    %3097 = vmatprep.subr.mxu0 0.0
    %3098 = vmatpush1.msra.mxu0 0.0
    %3099 = vmatprep.subr.mxu0 0.0
    %3100 = vmatpush1.msra.mxu0 0.0
    %3101 = vmatprep.subr.mxu0 0.0
    %3102 = vmatpush1.msra.mxu0 0.0
    %3103 = vmatprep.subr.mxu0 0.0
    %3104 = vmatpush1.msra.mxu0 0.0
    %3105 = vmatprep.subr.mxu0 0.0
    %3106 = vmatpush1.msra.mxu0 0.0
    %3107 = vmatprep.subr.mxu0 0.0
    %3108 = vmatpush1.msra.mxu0 0.0
    %3109 = vmatprep.subr.mxu0 0.0
    %3110 = vmatpush1.msra.mxu0 0.0
    %3111 = vmatprep.subr.mxu0 0.0
    %3112 = vmatpush1.msra.mxu0 0.0
    %3113 = vmatprep.subr.mxu0 0.0
    %3114 = vmatpush1.msra.mxu0 0.0
    %3115 = vmatprep.subr.mxu0 0.0
    %3116 = vmatpush1.msra.mxu0 0.0
    %3117 = vmatprep.subr.mxu0 0.0
    %3118 = vmatpush1.msra.mxu0 0.0
    %3119 = vmatprep.subr.mxu0 0.0
    %3120 = vmatpush1.msra.mxu0 0.0
    %3121 = vmatprep.subr.mxu0 0.0
    %3122 = vmatpush1.msra.mxu0 0.0
    %3123 = vmatprep.subr.mxu0 0.0
    %3124 = vmatpush1.msra.mxu0 0.0
    %3125 = vmatprep.subr.mxu0 0.0
    %3126 = vmatpush1.msra.mxu0 0.0
    %3127 = vmatprep.subr.mxu0 0.0
    %3128 = vmatpush1.msra.mxu0 0.0
    %3129 = vmatprep.subr.mxu0 0.0
    %3130 = vmatpush1.msra.mxu0 0.0
    %3131 = vmatprep.subr.mxu0 0.0
    %3132 = vmatpush1.msra.mxu0 0.0
    %3133 = vmatprep.subr.mxu0 0.0
    %3134 = vmatpush1.msra.mxu0 0.0
    %3135 = vmatprep.subr.mxu0 0.0
    %3136 = vmatpush1.msra.mxu0 0.0
    %3137 = vmatprep.subr.mxu0 0.0
    %3138 = vmatpush1.msra.mxu0 0.0
    %3139 = vmatprep.subr.mxu0 0.0
    %3140 = vmatpush1.msra.mxu0 0.0
    %3141 = vmatprep.subr.mxu0 0.0
    %3142 = vmatpush1.msra.mxu0 0.0
    %3143 = vmatprep.subr.mxu0 0.0
    %3144 = vmatpush1.msra.mxu0 0.0
    %3145 = vmatprep.subr.mxu0 0.0
    %3146 = vmatpush1.msra.mxu0 0.0
    %3147 = vmatprep.mubr.f32.mxu0 0.0
    %3148 = vmatmul.mubr.f32.gmra.mrb[0].mxu0 %v3081
    %v3149 = vpop.f32.mrb[0].mxu0
    %v3150 = vadd.f32 0.0, %v3149
    %v3151 = vpop.f32.mrb[0].mxu0
    %3152 = vdwg.mxu0
    %v3154 = vsel %vm2010, %v2713, 0
    %3156 = vmatprep.subr.mxu0 0.0
    %3157 = vmatpush1.msra.mxu0 %v1937
    %3158 = vmatprep.subr.mxu0 0.0
    %3159 = vmatpush1.msra.mxu0 0.0
    %3160 = vmatprep.subr.mxu0 0.0
    %3161 = vmatpush1.msra.mxu0 0.0
    %3162 = vmatprep.subr.mxu0 0.0
    %3163 = vmatpush1.msra.mxu0 0.0
    %3164 = vmatprep.subr.mxu0 0.0
    %3165 = vmatpush1.msra.mxu0 0.0
    %3166 = vmatprep.subr.mxu0 0.0
    %3167 = vmatpush1.msra.mxu0 0.0
    %3168 = vmatprep.subr.mxu0 0.0
    %3169 = vmatpush1.msra.mxu0 0.0
    %3170 = vmatprep.subr.mxu0 0.0
    %3171 = vmatpush1.msra.mxu0 0.0
    %3172 = vmatprep.subr.mxu0 0.0
    %3173 = vmatpush1.msra.mxu0 0.0
    %3174 = vmatprep.subr.mxu0 0.0
    %3175 = vmatpush1.msra.mxu0 0.0
    %3176 = vmatprep.subr.mxu0 0.0
    %3177 = vmatpush1.msra.mxu0 0.0
    %3178 = vmatprep.subr.mxu0 0.0
    %3179 = vmatpush1.msra.mxu0 0.0
    %3180 = vmatprep.subr.mxu0 0.0
    %3181 = vmatpush1.msra.mxu0 0.0
    %3182 = vmatprep.subr.mxu0 0.0
    %3183 = vmatpush1.msra.mxu0 0.0
    %3184 = vmatprep.subr.mxu0 0.0
    %3185 = vmatpush1.msra.mxu0 0.0
    %3186 = vmatprep.subr.mxu0 0.0
    %3187 = vmatpush1.msra.mxu0 0.0
    %3188 = vmatprep.subr.mxu0 0.0
    %3189 = vmatpush1.msra.mxu0 0.0
    %3190 = vmatprep.subr.mxu0 0.0
    %3191 = vmatpush1.msra.mxu0 0.0
    %3192 = vmatprep.subr.mxu0 0.0
    %3193 = vmatpush1.msra.mxu0 0.0
    %3194 = vmatprep.subr.mxu0 0.0
    %3195 = vmatpush1.msra.mxu0 0.0
    %3196 = vmatprep.subr.mxu0 0.0
    %3197 = vmatpush1.msra.mxu0 0.0
    %3198 = vmatprep.subr.mxu0 0.0
    %3199 = vmatpush1.msra.mxu0 0.0
    %3200 = vmatprep.subr.mxu0 0.0
    %3201 = vmatpush1.msra.mxu0 0.0
    %3202 = vmatprep.subr.mxu0 0.0
    %3203 = vmatpush1.msra.mxu0 0.0
    %3204 = vmatprep.subr.mxu0 0.0
    %3205 = vmatpush1.msra.mxu0 0.0
    %3206 = vmatprep.subr.mxu0 0.0
    %3207 = vmatpush1.msra.mxu0 0.0
    %3208 = vmatprep.subr.mxu0 0.0
    %3209 = vmatpush1.msra.mxu0 0.0
    %3210 = vmatprep.subr.mxu0 0.0
    %3211 = vmatpush1.msra.mxu0 0.0
    %3212 = vmatprep.subr.mxu0 0.0
    %3213 = vmatpush1.msra.mxu0 0.0
    %3214 = vmatprep.subr.mxu0 0.0
    %3215 = vmatpush1.msra.mxu0 0.0
    %3216 = vmatprep.subr.mxu0 0.0
    %3217 = vmatpush1.msra.mxu0 0.0
    %3218 = vmatprep.subr.mxu0 0.0
    %3219 = vmatpush1.msra.mxu0 0.0
    %3220 = vmatprep.mubr.f32.mxu0 0.0
    %3221 = vmatmul.mubr.f32.gmra.mrb[0].mxu0 %v3154
    %v3222 = vpop.f32.mrb[0].mxu0
    %v3223 = vadd.f32 0.0, %v3222
    %v3224 = vpop.f32.mrb[0].mxu0
    %3225 = vdwg.mxu0
    %v3227 = vsel %vm2010, %v2714, 0
    %3229 = vmatprep.subr.mxu0 0.0
    %3230 = vmatpush1.msra.mxu0 %v2007
    %3231 = vmatprep.subr.mxu0 0.0
    %3232 = vmatpush1.msra.mxu0 0.0
    %3233 = vmatprep.subr.mxu0 0.0
    %3234 = vmatpush1.msra.mxu0 0.0
    %3235 = vmatprep.subr.mxu0 0.0
    %3236 = vmatpush1.msra.mxu0 0.0
    %3237 = vmatprep.subr.mxu0 0.0
    %3238 = vmatpush1.msra.mxu0 0.0
    %3239 = vmatprep.subr.mxu0 0.0
    %3240 = vmatpush1.msra.mxu0 0.0
    %3241 = vmatprep.subr.mxu0 0.0
    %3242 = vmatpush1.msra.mxu0 0.0
    %3243 = vmatprep.subr.mxu0 0.0
    %3244 = vmatpush1.msra.mxu0 0.0
    %3245 = vmatprep.subr.mxu0 0.0
    %3246 = vmatpush1.msra.mxu0 0.0
    %3247 = vmatprep.subr.mxu0 0.0
    %3248 = vmatpush1.msra.mxu0 0.0
    %3249 = vmatprep.subr.mxu0 0.0
    %3250 = vmatpush1.msra.mxu0 0.0
    %3251 = vmatprep.subr.mxu0 0.0
    %3252 = vmatpush1.msra.mxu0 0.0
    %3253 = vmatprep.subr.mxu0 0.0
    %3254 = vmatpush1.msra.mxu0 0.0
    %3255 = vmatprep.subr.mxu0 0.0
    %3256 = vmatpush1.msra.mxu0 0.0
    %3257 = vmatprep.subr.mxu0 0.0
    %3258 = vmatpush1.msra.mxu0 0.0
    %3259 = vmatprep.subr.mxu0 0.0
    %3260 = vmatpush1.msra.mxu0 0.0
    %3261 = vmatprep.subr.mxu0 0.0
    %3262 = vmatpush1.msra.mxu0 0.0
    %3263 = vmatprep.subr.mxu0 0.0
    %3264 = vmatpush1.msra.mxu0 0.0
    %3265 = vmatprep.subr.mxu0 0.0
    %3266 = vmatpush1.msra.mxu0 0.0
    %3267 = vmatprep.subr.mxu0 0.0
    %3268 = vmatpush1.msra.mxu0 0.0
    %3269 = vmatprep.subr.mxu0 0.0
    %3270 = vmatpush1.msra.mxu0 0.0
    %3271 = vmatprep.subr.mxu0 0.0
    %3272 = vmatpush1.msra.mxu0 0.0
    %3273 = vmatprep.subr.mxu0 0.0
    %3274 = vmatpush1.msra.mxu0 0.0
    %3275 = vmatprep.subr.mxu0 0.0
    %3276 = vmatpush1.msra.mxu0 0.0
    %3277 = vmatprep.subr.mxu0 0.0
    %3278 = vmatpush1.msra.mxu0 0.0
    %3279 = vmatprep.subr.mxu0 0.0
    %3280 = vmatpush1.msra.mxu0 0.0
    %3281 = vmatprep.subr.mxu0 0.0
    %3282 = vmatpush1.msra.mxu0 0.0
    %3283 = vmatprep.subr.mxu0 0.0
    %3284 = vmatpush1.msra.mxu0 0.0
    %3285 = vmatprep.subr.mxu0 0.0
    %3286 = vmatpush1.msra.mxu0 0.0
    %3287 = vmatprep.subr.mxu0 0.0
    %3288 = vmatpush1.msra.mxu0 0.0
    %3289 = vmatprep.subr.mxu0 0.0
    %3290 = vmatpush1.msra.mxu0 0.0
    %3291 = vmatprep.subr.mxu0 0.0
    %3292 = vmatpush1.msra.mxu0 0.0
    %3293 = vmatprep.mubr.f32.mxu0 0.0
    %3294 = vmatmul.mubr.f32.gmra.mrb[0].mxu0 %v3227
    %v3295 = vpop.f32.mrb[0].mxu0
    %v3296 = vadd.f32 0.0, %v3295
    %v3297 = vpop.f32.mrb[0].mxu0
    %3298 = vdwg.mxu0
    %v3299 = vld [vmem:[%s7] sm:$0xff]
    %v3300 = vld [vmem:[%s7 + $0x8] sm:$0xff]
    %v3301 = vld [vmem:[%s7 + $0x10] sm:$0xff]
    %v3302 = vld [vmem:[%s7 + $0x18] sm:$0xff]
    %v3303 = vld [vmem:[%s7 + $0x20] sm:$0xff]
    %v3304 = vld [vmem:[%s7 + $0x28] sm:$0xff]
    %v3305 = vld [vmem:[%s7 + $0x30] sm:$0xff]
    %v3306 = vld [vmem:[%s7 + $0x38] sm:$0xff]
    %v3308 = vsel %vm2010, %v2785, 0
    %3310 = vmatprep.subr.mxu0 0.0
    %3311 = vmatpush1.msra.mxu0 %v3299
    %3312 = vmatprep.subr.mxu0 0.0
    %3313 = vmatpush1.msra.mxu0 0.0
    %3314 = vmatprep.subr.mxu0 0.0
    %3315 = vmatpush1.msra.mxu0 0.0
    %3316 = vmatprep.subr.mxu0 0.0
    %3317 = vmatpush1.msra.mxu0 0.0
    %3318 = vmatprep.subr.mxu0 0.0
    %3319 = vmatpush1.msra.mxu0 0.0
    %3320 = vmatprep.subr.mxu0 0.0
    %3321 = vmatpush1.msra.mxu0 0.0
    %3322 = vmatprep.subr.mxu0 0.0
    %3323 = vmatpush1.msra.mxu0 0.0
    %3324 = vmatprep.subr.mxu0 0.0
    %3325 = vmatpush1.msra.mxu0 0.0
    %3326 = vmatprep.subr.mxu0 0.0
    %3327 = vmatpush1.msra.mxu0 0.0
    %3328 = vmatprep.subr.mxu0 0.0
    %3329 = vmatpush1.msra.mxu0 0.0
    %3330 = vmatprep.subr.mxu0 0.0
    %3331 = vmatpush1.msra.mxu0 0.0
    %3332 = vmatprep.subr.mxu0 0.0
    %3333 = vmatpush1.msra.mxu0 0.0
    %3334 = vmatprep.subr.mxu0 0.0
    %3335 = vmatpush1.msra.mxu0 0.0
    %3336 = vmatprep.subr.mxu0 0.0
    %3337 = vmatpush1.msra.mxu0 0.0
    %3338 = vmatprep.subr.mxu0 0.0
    %3339 = vmatpush1.msra.mxu0 0.0
    %3340 = vmatprep.subr.mxu0 0.0
    %3341 = vmatpush1.msra.mxu0 0.0
    %3342 = vmatprep.subr.mxu0 0.0
    %3343 = vmatpush1.msra.mxu0 0.0
    %3344 = vmatprep.subr.mxu0 0.0
    %3345 = vmatpush1.msra.mxu0 0.0
    %3346 = vmatprep.subr.mxu0 0.0
    %3347 = vmatpush1.msra.mxu0 0.0
    %3348 = vmatprep.subr.mxu0 0.0
    %3349 = vmatpush1.msra.mxu0 0.0
    %3350 = vmatprep.subr.mxu0 0.0
    %3351 = vmatpush1.msra.mxu0 0.0
    %3352 = vmatprep.subr.mxu0 0.0
    %3353 = vmatpush1.msra.mxu0 0.0
    %3354 = vmatprep.subr.mxu0 0.0
    %3355 = vmatpush1.msra.mxu0 0.0
    %3356 = vmatprep.subr.mxu0 0.0
    %3357 = vmatpush1.msra.mxu0 0.0
    %3358 = vmatprep.subr.mxu0 0.0
    %3359 = vmatpush1.msra.mxu0 0.0
    %3360 = vmatprep.subr.mxu0 0.0
    %3361 = vmatpush1.msra.mxu0 0.0
    %3362 = vmatprep.subr.mxu0 0.0
    %3363 = vmatpush1.msra.mxu0 0.0
    %3364 = vmatprep.subr.mxu0 0.0
    %3365 = vmatpush1.msra.mxu0 0.0
    %3366 = vmatprep.subr.mxu0 0.0
    %3367 = vmatpush1.msra.mxu0 0.0
    %3368 = vmatprep.subr.mxu0 0.0
    %3369 = vmatpush1.msra.mxu0 0.0
    %3370 = vmatprep.subr.mxu0 0.0
    %3371 = vmatpush1.msra.mxu0 0.0
    %3372 = vmatprep.subr.mxu0 0.0
    %3373 = vmatpush1.msra.mxu0 0.0
    %3374 = vmatprep.mubr.f32.mxu0 0.0
    %3375 = vmatmul.mubr.f32.gmra.mrb[0].mxu0 %v3308
    %v3376 = vpop.f32.mrb[0].mxu0
    %v3377 = vadd.f32 0.0, %v3376
    %v3378 = vpop.f32.mrb[0].mxu0
    %3379 = vdwg.mxu0
    %v3381 = vsel %vm2010, %v2858, 0
    %3383 = vmatprep.subr.mxu0 0.0
    %3384 = vmatpush1.msra.mxu0 %v3300
    %3385 = vmatprep.subr.mxu0 0.0
    %3386 = vmatpush1.msra.mxu0 0.0
    %3387 = vmatprep.subr.mxu0 0.0
    %3388 = vmatpush1.msra.mxu0 0.0
    %3389 = vmatprep.subr.mxu0 0.0
    %3390 = vmatpush1.msra.mxu0 0.0
    %3391 = vmatprep.subr.mxu0 0.0
    %3392 = vmatpush1.msra.mxu0 0.0
    %3393 = vmatprep.subr.mxu0 0.0
    %3394 = vmatpush1.msra.mxu0 0.0
    %3395 = vmatprep.subr.mxu0 0.0
    %3396 = vmatpush1.msra.mxu0 0.0
    %3397 = vmatprep.subr.mxu0 0.0
    %3398 = vmatpush1.msra.mxu0 0.0
    %3399 = vmatprep.subr.mxu0 0.0
    %3400 = vmatpush1.msra.mxu0 0.0
    %3401 = vmatprep.subr.mxu0 0.0
    %3402 = vmatpush1.msra.mxu0 0.0
    %3403 = vmatprep.subr.mxu0 0.0
    %3404 = vmatpush1.msra.mxu0 0.0
    %3405 = vmatprep.subr.mxu0 0.0
    %3406 = vmatpush1.msra.mxu0 0.0
    %3407 = vmatprep.subr.mxu0 0.0
    %3408 = vmatpush1.msra.mxu0 0.0
    %3409 = vmatprep.subr.mxu0 0.0
    %3410 = vmatpush1.msra.mxu0 0.0
    %3411 = vmatprep.subr.mxu0 0.0
    %3412 = vmatpush1.msra.mxu0 0.0
    %3413 = vmatprep.subr.mxu0 0.0
    %3414 = vmatpush1.msra.mxu0 0.0
    %3415 = vmatprep.subr.mxu0 0.0
    %3416 = vmatpush1.msra.mxu0 0.0
    %3417 = vmatprep.subr.mxu0 0.0
    %3418 = vmatpush1.msra.mxu0 0.0
    %3419 = vmatprep.subr.mxu0 0.0
    %3420 = vmatpush1.msra.mxu0 0.0
    %3421 = vmatprep.subr.mxu0 0.0
    %3422 = vmatpush1.msra.mxu0 0.0
    %3423 = vmatprep.subr.mxu0 0.0
    %3424 = vmatpush1.msra.mxu0 0.0
    %3425 = vmatprep.subr.mxu0 0.0
    %3426 = vmatpush1.msra.mxu0 0.0
    %3427 = vmatprep.subr.mxu0 0.0
    %3428 = vmatpush1.msra.mxu0 0.0
    %3429 = vmatprep.subr.mxu0 0.0
    %3430 = vmatpush1.msra.mxu0 0.0
    %3431 = vmatprep.subr.mxu0 0.0
    %3432 = vmatpush1.msra.mxu0 0.0
    %3433 = vmatprep.subr.mxu0 0.0
    %3434 = vmatpush1.msra.mxu0 0.0
    %3435 = vmatprep.subr.mxu0 0.0
    %3436 = vmatpush1.msra.mxu0 0.0
    %3437 = vmatprep.subr.mxu0 0.0
    %3438 = vmatpush1.msra.mxu0 0.0
    %3439 = vmatprep.subr.mxu0 0.0
    %3440 = vmatpush1.msra.mxu0 0.0
    %3441 = vmatprep.subr.mxu0 0.0
    %3442 = vmatpush1.msra.mxu0 0.0
    %3443 = vmatprep.subr.mxu0 0.0
    %3444 = vmatpush1.msra.mxu0 0.0
    %3445 = vmatprep.subr.mxu0 0.0
    %3446 = vmatpush1.msra.mxu0 0.0
    %3447 = vmatprep.mubr.f32.mxu0 0.0
    %3448 = vmatmul.mubr.f32.gmra.mrb[0].mxu0 %v3381
    %v3449 = vpop.f32.mrb[0].mxu0
    %v3450 = vadd.f32 0.0, %v3449
    %v3451 = vpop.f32.mrb[0].mxu0
    %3452 = vdwg.mxu0
    %v3454 = vsel %vm2010, %v2931, 0
    %3456 = vmatprep.subr.mxu0 0.0
    %3457 = vmatpush1.msra.mxu0 %v3301
    %3458 = vmatprep.subr.mxu0 0.0
    %3459 = vmatpush1.msra.mxu0 0.0
    %3460 = vmatprep.subr.mxu0 0.0
    %3461 = vmatpush1.msra.mxu0 0.0
    %3462 = vmatprep.subr.mxu0 0.0
    %3463 = vmatpush1.msra.mxu0 0.0
    %3464 = vmatprep.subr.mxu0 0.0
    %3465 = vmatpush1.msra.mxu0 0.0
    %3466 = vmatprep.subr.mxu0 0.0
    %3467 = vmatpush1.msra.mxu0 0.0
    %3468 = vmatprep.subr.mxu0 0.0
    %3469 = vmatpush1.msra.mxu0 0.0
    %3470 = vmatprep.subr.mxu0 0.0
    %3471 = vmatpush1.msra.mxu0 0.0
    %3472 = vmatprep.subr.mxu0 0.0
    %3473 = vmatpush1.msra.mxu0 0.0
    %3474 = vmatprep.subr.mxu0 0.0
    %3475 = vmatpush1.msra.mxu0 0.0
    %3476 = vmatprep.subr.mxu0 0.0
    %3477 = vmatpush1.msra.mxu0 0.0
    %3478 = vmatprep.subr.mxu0 0.0
    %3479 = vmatpush1.msra.mxu0 0.0
    %3480 = vmatprep.subr.mxu0 0.0
    %3481 = vmatpush1.msra.mxu0 0.0
    %3482 = vmatprep.subr.mxu0 0.0
    %3483 = vmatpush1.msra.mxu0 0.0
    %3484 = vmatprep.subr.mxu0 0.0
    %3485 = vmatpush1.msra.mxu0 0.0
    %3486 = vmatprep.subr.mxu0 0.0
    %3487 = vmatpush1.msra.mxu0 0.0
    %3488 = vmatprep.subr.mxu0 0.0
    %3489 = vmatpush1.msra.mxu0 0.0
    %3490 = vmatprep.subr.mxu0 0.0
    %3491 = vmatpush1.msra.mxu0 0.0
    %3492 = vmatprep.subr.mxu0 0.0
    %3493 = vmatpush1.msra.mxu0 0.0
    %3494 = vmatprep.subr.mxu0 0.0
    %3495 = vmatpush1.msra.mxu0 0.0
    %3496 = vmatprep.subr.mxu0 0.0
    %3497 = vmatpush1.msra.mxu0 0.0
    %3498 = vmatprep.subr.mxu0 0.0
    %3499 = vmatpush1.msra.mxu0 0.0
    %3500 = vmatprep.subr.mxu0 0.0
    %3501 = vmatpush1.msra.mxu0 0.0
    %3502 = vmatprep.subr.mxu0 0.0
    %3503 = vmatpush1.msra.mxu0 0.0
    %3504 = vmatprep.subr.mxu0 0.0
    %3505 = vmatpush1.msra.mxu0 0.0
    %3506 = vmatprep.subr.mxu0 0.0
    %3507 = vmatpush1.msra.mxu0 0.0
    %3508 = vmatprep.subr.mxu0 0.0
    %3509 = vmatpush1.msra.mxu0 0.0
    %3510 = vmatprep.subr.mxu0 0.0
    %3511 = vmatpush1.msra.mxu0 0.0
    %3512 = vmatprep.subr.mxu0 0.0
    %3513 = vmatpush1.msra.mxu0 0.0
    %3514 = vmatprep.subr.mxu0 0.0
    %3515 = vmatpush1.msra.mxu0 0.0
    %3516 = vmatprep.subr.mxu0 0.0
    %3517 = vmatpush1.msra.mxu0 0.0
    %3518 = vmatprep.subr.mxu0 0.0
    %3519 = vmatpush1.msra.mxu0 0.0
    %3520 = vmatprep.mubr.f32.mxu0 0.0
    %3521 = vmatmul.mubr.f32.gmra.mrb[0].mxu0 %v3454
    %v3522 = vpop.f32.mrb[0].mxu0
    %v3523 = vadd.f32 0.0, %v3522
    %v3524 = vpop.f32.mrb[0].mxu0
    %3525 = vdwg.mxu0
    %v3527 = vsel %vm2010, %v3004, 0
    %3529 = vmatprep.subr.mxu0 0.0
    %3530 = vmatpush1.msra.mxu0 %v3302
    %3531 = vmatprep.subr.mxu0 0.0
    %3532 = vmatpush1.msra.mxu0 0.0
    %3533 = vmatprep.subr.mxu0 0.0
    %3534 = vmatpush1.msra.mxu0 0.0
    %3535 = vmatprep.subr.mxu0 0.0
    %3536 = vmatpush1.msra.mxu0 0.0
    %3537 = vmatprep.subr.mxu0 0.0
    %3538 = vmatpush1.msra.mxu0 0.0
    %3539 = vmatprep.subr.mxu0 0.0
    %3540 = vmatpush1.msra.mxu0 0.0
    %3541 = vmatprep.subr.mxu0 0.0
    %3542 = vmatpush1.msra.mxu0 0.0
    %3543 = vmatprep.subr.mxu0 0.0
    %3544 = vmatpush1.msra.mxu0 0.0
    %3545 = vmatprep.subr.mxu0 0.0
    %3546 = vmatpush1.msra.mxu0 0.0
    %3547 = vmatprep.subr.mxu0 0.0
    %3548 = vmatpush1.msra.mxu0 0.0
    %3549 = vmatprep.subr.mxu0 0.0
    %3550 = vmatpush1.msra.mxu0 0.0
    %3551 = vmatprep.subr.mxu0 0.0
    %3552 = vmatpush1.msra.mxu0 0.0
    %3553 = vmatprep.subr.mxu0 0.0
    %3554 = vmatpush1.msra.mxu0 0.0
    %3555 = vmatprep.subr.mxu0 0.0
    %3556 = vmatpush1.msra.mxu0 0.0
    %3557 = vmatprep.subr.mxu0 0.0
    %3558 = vmatpush1.msra.mxu0 0.0
    %3559 = vmatprep.subr.mxu0 0.0
    %3560 = vmatpush1.msra.mxu0 0.0
    %3561 = vmatprep.subr.mxu0 0.0
    %3562 = vmatpush1.msra.mxu0 0.0
    %3563 = vmatprep.subr.mxu0 0.0
    %3564 = vmatpush1.msra.mxu0 0.0
    %3565 = vmatprep.subr.mxu0 0.0
    %3566 = vmatpush1.msra.mxu0 0.0
    %3567 = vmatprep.subr.mxu0 0.0
    %3568 = vmatpush1.msra.mxu0 0.0
    %3569 = vmatprep.subr.mxu0 0.0
    %3570 = vmatpush1.msra.mxu0 0.0
    %3571 = vmatprep.subr.mxu0 0.0
    %3572 = vmatpush1.msra.mxu0 0.0
    %3573 = vmatprep.subr.mxu0 0.0
    %3574 = vmatpush1.msra.mxu0 0.0
    %3575 = vmatprep.subr.mxu0 0.0
    %3576 = vmatpush1.msra.mxu0 0.0
    %3577 = vmatprep.subr.mxu0 0.0
    %3578 = vmatpush1.msra.mxu0 0.0
    %3579 = vmatprep.subr.mxu0 0.0
    %3580 = vmatpush1.msra.mxu0 0.0
    %3581 = vmatprep.subr.mxu0 0.0
    %3582 = vmatpush1.msra.mxu0 0.0
    %3583 = vmatprep.subr.mxu0 0.0
    %3584 = vmatpush1.msra.mxu0 0.0
    %3585 = vmatprep.subr.mxu0 0.0
    %3586 = vmatpush1.msra.mxu0 0.0
    %3587 = vmatprep.subr.mxu0 0.0
    %3588 = vmatpush1.msra.mxu0 0.0
    %3589 = vmatprep.subr.mxu0 0.0
    %3590 = vmatpush1.msra.mxu0 0.0
    %3591 = vmatprep.subr.mxu0 0.0
    %3592 = vmatpush1.msra.mxu0 0.0
    %3593 = vmatprep.mubr.f32.mxu0 0.0
    %3594 = vmatmul.mubr.f32.gmra.mrb[0].mxu0 %v3527
    %v3595 = vpop.f32.mrb[0].mxu0
    %v3596 = vadd.f32 0.0, %v3595
    %v3597 = vpop.f32.mrb[0].mxu0
    %3598 = vdwg.mxu0
    %v3600 = vsel %vm2010, %v3077, 0
    %3602 = vmatprep.subr.mxu0 0.0
    %3603 = vmatpush1.msra.mxu0 %v3303
    %3604 = vmatprep.subr.mxu0 0.0
    %3605 = vmatpush1.msra.mxu0 0.0
    %3606 = vmatprep.subr.mxu0 0.0
    %3607 = vmatpush1.msra.mxu0 0.0
    %3608 = vmatprep.subr.mxu0 0.0
    %3609 = vmatpush1.msra.mxu0 0.0
    %3610 = vmatprep.subr.mxu0 0.0
    %3611 = vmatpush1.msra.mxu0 0.0
    %3612 = vmatprep.subr.mxu0 0.0
    %3613 = vmatpush1.msra.mxu0 0.0
    %3614 = vmatprep.subr.mxu0 0.0
    %3615 = vmatpush1.msra.mxu0 0.0
    %3616 = vmatprep.subr.mxu0 0.0
    %3617 = vmatpush1.msra.mxu0 0.0
    %3618 = vmatprep.subr.mxu0 0.0
    %3619 = vmatpush1.msra.mxu0 0.0
    %3620 = vmatprep.subr.mxu0 0.0
    %3621 = vmatpush1.msra.mxu0 0.0
    %3622 = vmatprep.subr.mxu0 0.0
    %3623 = vmatpush1.msra.mxu0 0.0
    %3624 = vmatprep.subr.mxu0 0.0
    %3625 = vmatpush1.msra.mxu0 0.0
    %3626 = vmatprep.subr.mxu0 0.0
    %3627 = vmatpush1.msra.mxu0 0.0
    %3628 = vmatprep.subr.mxu0 0.0
    %3629 = vmatpush1.msra.mxu0 0.0
    %3630 = vmatprep.subr.mxu0 0.0
    %3631 = vmatpush1.msra.mxu0 0.0
    %3632 = vmatprep.subr.mxu0 0.0
    %3633 = vmatpush1.msra.mxu0 0.0
    %3634 = vmatprep.subr.mxu0 0.0
    %3635 = vmatpush1.msra.mxu0 0.0
    %3636 = vmatprep.subr.mxu0 0.0
    %3637 = vmatpush1.msra.mxu0 0.0
    %3638 = vmatprep.subr.mxu0 0.0
    %3639 = vmatpush1.msra.mxu0 0.0
    %3640 = vmatprep.subr.mxu0 0.0
    %3641 = vmatpush1.msra.mxu0 0.0
    %3642 = vmatprep.subr.mxu0 0.0
    %3643 = vmatpush1.msra.mxu0 0.0
    %3644 = vmatprep.subr.mxu0 0.0
    %3645 = vmatpush1.msra.mxu0 0.0
    %3646 = vmatprep.subr.mxu0 0.0
    %3647 = vmatpush1.msra.mxu0 0.0
    %3648 = vmatprep.subr.mxu0 0.0
    %3649 = vmatpush1.msra.mxu0 0.0
    %3650 = vmatprep.subr.mxu0 0.0
    %3651 = vmatpush1.msra.mxu0 0.0
    %3652 = vmatprep.subr.mxu0 0.0
    %3653 = vmatpush1.msra.mxu0 0.0
    %3654 = vmatprep.subr.mxu0 0.0
    %3655 = vmatpush1.msra.mxu0 0.0
    %3656 = vmatprep.subr.mxu0 0.0
    %3657 = vmatpush1.msra.mxu0 0.0
    %3658 = vmatprep.subr.mxu0 0.0
    %3659 = vmatpush1.msra.mxu0 0.0
    %3660 = vmatprep.subr.mxu0 0.0
    %3661 = vmatpush1.msra.mxu0 0.0
    %3662 = vmatprep.subr.mxu0 0.0
    %3663 = vmatpush1.msra.mxu0 0.0
    %3664 = vmatprep.subr.mxu0 0.0
    %3665 = vmatpush1.msra.mxu0 0.0
    %3666 = vmatprep.mubr.f32.mxu0 0.0
    %3667 = vmatmul.mubr.f32.gmra.mrb[0].mxu0 %v3600
    %v3668 = vpop.f32.mrb[0].mxu0
    %v3669 = vadd.f32 0.0, %v3668
    %v3670 = vpop.f32.mrb[0].mxu0
    %3671 = vdwg.mxu0
    %v3673 = vsel %vm2010, %v3150, 0
    %3675 = vmatprep.subr.mxu0 0.0
    %3676 = vmatpush1.msra.mxu0 %v3304
    %3677 = vmatprep.subr.mxu0 0.0
    %3678 = vmatpush1.msra.mxu0 0.0
    %3679 = vmatprep.subr.mxu0 0.0
    %3680 = vmatpush1.msra.mxu0 0.0
    %3681 = vmatprep.subr.mxu0 0.0
    %3682 = vmatpush1.msra.mxu0 0.0
    %3683 = vmatprep.subr.mxu0 0.0
    %3684 = vmatpush1.msra.mxu0 0.0
    %3685 = vmatprep.subr.mxu0 0.0
    %3686 = vmatpush1.msra.mxu0 0.0
    %3687 = vmatprep.subr.mxu0 0.0
    %3688 = vmatpush1.msra.mxu0 0.0
    %3689 = vmatprep.subr.mxu0 0.0
    %3690 = vmatpush1.msra.mxu0 0.0
    %3691 = vmatprep.subr.mxu0 0.0
    %3692 = vmatpush1.msra.mxu0 0.0
    %3693 = vmatprep.subr.mxu0 0.0
    %3694 = vmatpush1.msra.mxu0 0.0
    %3695 = vmatprep.subr.mxu0 0.0
    %3696 = vmatpush1.msra.mxu0 0.0
    %3697 = vmatprep.subr.mxu0 0.0
    %3698 = vmatpush1.msra.mxu0 0.0
    %3699 = vmatprep.subr.mxu0 0.0
    %3700 = vmatpush1.msra.mxu0 0.0
    %3701 = vmatprep.subr.mxu0 0.0
    %3702 = vmatpush1.msra.mxu0 0.0
    %3703 = vmatprep.subr.mxu0 0.0
    %3704 = vmatpush1.msra.mxu0 0.0
    %3705 = vmatprep.subr.mxu0 0.0
    %3706 = vmatpush1.msra.mxu0 0.0
    %3707 = vmatprep.subr.mxu0 0.0
    %3708 = vmatpush1.msra.mxu0 0.0
    %3709 = vmatprep.subr.mxu0 0.0
    %3710 = vmatpush1.msra.mxu0 0.0
    %3711 = vmatprep.subr.mxu0 0.0
    %3712 = vmatpush1.msra.mxu0 0.0
    %3713 = vmatprep.subr.mxu0 0.0
    %3714 = vmatpush1.msra.mxu0 0.0
    %3715 = vmatprep.subr.mxu0 0.0
    %3716 = vmatpush1.msra.mxu0 0.0
    %3717 = vmatprep.subr.mxu0 0.0
    %3718 = vmatpush1.msra.mxu0 0.0
    %3719 = vmatprep.subr.mxu0 0.0
    %3720 = vmatpush1.msra.mxu0 0.0
    %3721 = vmatprep.subr.mxu0 0.0
    %3722 = vmatpush1.msra.mxu0 0.0
    %3723 = vmatprep.subr.mxu0 0.0
    %3724 = vmatpush1.msra.mxu0 0.0
    %3725 = vmatprep.subr.mxu0 0.0
    %3726 = vmatpush1.msra.mxu0 0.0
    %3727 = vmatprep.subr.mxu0 0.0
    %3728 = vmatpush1.msra.mxu0 0.0
    %3729 = vmatprep.subr.mxu0 0.0
    %3730 = vmatpush1.msra.mxu0 0.0
    %3731 = vmatprep.subr.mxu0 0.0
    %3732 = vmatpush1.msra.mxu0 0.0
    %3733 = vmatprep.subr.mxu0 0.0
    %3734 = vmatpush1.msra.mxu0 0.0
    %3735 = vmatprep.subr.mxu0 0.0
    %3736 = vmatpush1.msra.mxu0 0.0
    %3737 = vmatprep.subr.mxu0 0.0
    %3738 = vmatpush1.msra.mxu0 0.0
    %3739 = vmatprep.mubr.f32.mxu0 0.0
    %3740 = vmatmul.mubr.f32.gmra.mrb[0].mxu0 %v3673
    %v3741 = vpop.f32.mrb[0].mxu0
    %v3742 = vadd.f32 0.0, %v3741
    %v3743 = vpop.f32.mrb[0].mxu0
    %3744 = vdwg.mxu0
    %v3746 = vsel %vm2010, %v3223, 0
    %3748 = vmatprep.subr.mxu0 0.0
    %3749 = vmatpush1.msra.mxu0 %v3305
    %3750 = vmatprep.subr.mxu0 0.0
    %3751 = vmatpush1.msra.mxu0 0.0
    %3752 = vmatprep.subr.mxu0 0.0
    %3753 = vmatpush1.msra.mxu0 0.0
    %3754 = vmatprep.subr.mxu0 0.0
    %3755 = vmatpush1.msra.mxu0 0.0
    %3756 = vmatprep.subr.mxu0 0.0
    %3757 = vmatpush1.msra.mxu0 0.0
    %3758 = vmatprep.subr.mxu0 0.0
    %3759 = vmatpush1.msra.mxu0 0.0
    %3760 = vmatprep.subr.mxu0 0.0
    %3761 = vmatpush1.msra.mxu0 0.0
    %3762 = vmatprep.subr.mxu0 0.0
    %3763 = vmatpush1.msra.mxu0 0.0
    %3764 = vmatprep.subr.mxu0 0.0
    %3765 = vmatpush1.msra.mxu0 0.0
    %3766 = vmatprep.subr.mxu0 0.0
    %3767 = vmatpush1.msra.mxu0 0.0
    %3768 = vmatprep.subr.mxu0 0.0
    %3769 = vmatpush1.msra.mxu0 0.0
    %3770 = vmatprep.subr.mxu0 0.0
    %3771 = vmatpush1.msra.mxu0 0.0
    %3772 = vmatprep.subr.mxu0 0.0
    %3773 = vmatpush1.msra.mxu0 0.0
    %3774 = vmatprep.subr.mxu0 0.0
    %3775 = vmatpush1.msra.mxu0 0.0
    %3776 = vmatprep.subr.mxu0 0.0
    %3777 = vmatpush1.msra.mxu0 0.0
    %3778 = vmatprep.subr.mxu0 0.0
    %3779 = vmatpush1.msra.mxu0 0.0
    %3780 = vmatprep.subr.mxu0 0.0
    %3781 = vmatpush1.msra.mxu0 0.0
    %3782 = vmatprep.subr.mxu0 0.0
    %3783 = vmatpush1.msra.mxu0 0.0
    %3784 = vmatprep.subr.mxu0 0.0
    %3785 = vmatpush1.msra.mxu0 0.0
    %3786 = vmatprep.subr.mxu0 0.0
    %3787 = vmatpush1.msra.mxu0 0.0
    %3788 = vmatprep.subr.mxu0 0.0
    %3789 = vmatpush1.msra.mxu0 0.0
    %3790 = vmatprep.subr.mxu0 0.0
    %3791 = vmatpush1.msra.mxu0 0.0
    %3792 = vmatprep.subr.mxu0 0.0
    %3793 = vmatpush1.msra.mxu0 0.0
    %3794 = vmatprep.subr.mxu0 0.0
    %3795 = vmatpush1.msra.mxu0 0.0
    %3796 = vmatprep.subr.mxu0 0.0
    %3797 = vmatpush1.msra.mxu0 0.0
    %3798 = vmatprep.subr.mxu0 0.0
    %3799 = vmatpush1.msra.mxu0 0.0
    %3800 = vmatprep.subr.mxu0 0.0
    %3801 = vmatpush1.msra.mxu0 0.0
    %3802 = vmatprep.subr.mxu0 0.0
    %3803 = vmatpush1.msra.mxu0 0.0
    %3804 = vmatprep.subr.mxu0 0.0
    %3805 = vmatpush1.msra.mxu0 0.0
    %3806 = vmatprep.subr.mxu0 0.0
    %3807 = vmatpush1.msra.mxu0 0.0
    %3808 = vmatprep.subr.mxu0 0.0
    %3809 = vmatpush1.msra.mxu0 0.0
    %3810 = vmatprep.subr.mxu0 0.0
    %3811 = vmatpush1.msra.mxu0 0.0
    %3812 = vmatprep.mubr.f32.mxu0 0.0
    %3813 = vmatmul.mubr.f32.gmra.mrb[0].mxu0 %v3746
    %v3814 = vpop.f32.mrb[0].mxu0
    %v3815 = vadd.f32 0.0, %v3814
    %v3816 = vpop.f32.mrb[0].mxu0
    %3817 = vdwg.mxu0
    %v3819 = vsel %vm2010, %v3296, 0
    %3821 = vmatprep.subr.mxu0 0.0
    %3822 = vmatpush1.msra.mxu0 %v3306
    %3823 = vmatprep.subr.mxu0 0.0
    %3824 = vmatpush1.msra.mxu0 0.0
    %3825 = vmatprep.subr.mxu0 0.0
    %3826 = vmatpush1.msra.mxu0 0.0
    %3827 = vmatprep.subr.mxu0 0.0
    %3828 = vmatpush1.msra.mxu0 0.0
    %3829 = vmatprep.subr.mxu0 0.0
    %3830 = vmatpush1.msra.mxu0 0.0
    %3831 = vmatprep.subr.mxu0 0.0
    %3832 = vmatpush1.msra.mxu0 0.0
    %3833 = vmatprep.subr.mxu0 0.0
    %3834 = vmatpush1.msra.mxu0 0.0
    %3835 = vmatprep.subr.mxu0 0.0
    %3836 = vmatpush1.msra.mxu0 0.0
    %3837 = vmatprep.subr.mxu0 0.0
    %3838 = vmatpush1.msra.mxu0 0.0
    %3839 = vmatprep.subr.mxu0 0.0
    %3840 = vmatpush1.msra.mxu0 0.0
    %3841 = vmatprep.subr.mxu0 0.0
    %3842 = vmatpush1.msra.mxu0 0.0
    %3843 = vmatprep.subr.mxu0 0.0
    %3844 = vmatpush1.msra.mxu0 0.0
    %3845 = vmatprep.subr.mxu0 0.0
    %3846 = vmatpush1.msra.mxu0 0.0
    %3847 = vmatprep.subr.mxu0 0.0
    %3848 = vmatpush1.msra.mxu0 0.0
    %3849 = vmatprep.subr.mxu0 0.0
    %3850 = vmatpush1.msra.mxu0 0.0
    %3851 = vmatprep.subr.mxu0 0.0
    %3852 = vmatpush1.msra.mxu0 0.0
    %3853 = vmatprep.subr.mxu0 0.0
    %3854 = vmatpush1.msra.mxu0 0.0
    %3855 = vmatprep.subr.mxu0 0.0
    %3856 = vmatpush1.msra.mxu0 0.0
    %3857 = vmatprep.subr.mxu0 0.0
    %3858 = vmatpush1.msra.mxu0 0.0
    %3859 = vmatprep.subr.mxu0 0.0
    %3860 = vmatpush1.msra.mxu0 0.0
    %3861 = vmatprep.subr.mxu0 0.0
    %3862 = vmatpush1.msra.mxu0 0.0
    %3863 = vmatprep.subr.mxu0 0.0
    %3864 = vmatpush1.msra.mxu0 0.0
    %3865 = vmatprep.subr.mxu0 0.0
    %3866 = vmatpush1.msra.mxu0 0.0
    %3867 = vmatprep.subr.mxu0 0.0
    %3868 = vmatpush1.msra.mxu0 0.0
    %3869 = vmatprep.subr.mxu0 0.0
    %3870 = vmatpush1.msra.mxu0 0.0
    %3871 = vmatprep.subr.mxu0 0.0
    %3872 = vmatpush1.msra.mxu0 0.0
    %3873 = vmatprep.subr.mxu0 0.0
    %3874 = vmatpush1.msra.mxu0 0.0
    %3875 = vmatprep.subr.mxu0 0.0
    %3876 = vmatpush1.msra.mxu0 0.0
    %3877 = vmatprep.subr.mxu0 0.0
    %3878 = vmatpush1.msra.mxu0 0.0
    %3879 = vmatprep.subr.mxu0 0.0
    %3880 = vmatpush1.msra.mxu0 0.0
    %3881 = vmatprep.subr.mxu0 0.0
    %3882 = vmatpush1.msra.mxu0 0.0
    %3883 = vmatprep.subr.mxu0 0.0
    %3884 = vmatpush1.msra.mxu0 0.0
    %3885 = vmatprep.mubr.f32.mxu0 0.0
    %3886 = vmatmul.mubr.f32.gmra.mrb[0].mxu0 %v3819
    %v3887 = vpop.f32.mrb[0].mxu0
    %v3888 = vadd.f32 0.0, %v3887
    %v3889 = vpop.f32.mrb[0].mxu0
    %3890 = vdwg.mxu0
    %v3891 = vld [vmem:[%s8] sm:$0xff]
    %v3892 = vld [vmem:[%s8 + $0x8] sm:$0xff]
    %v3893 = vld [vmem:[%s8 + $0x10] sm:$0xff]
    %v3894 = vld [vmem:[%s8 + $0x18] sm:$0xff]
    %v3895 = vld [vmem:[%s8 + $0x20] sm:$0xff]
    %v3896 = vld [vmem:[%s8 + $0x28] sm:$0xff]
    %v3897 = vld [vmem:[%s8 + $0x30] sm:$0xff]
    %v3898 = vld [vmem:[%s8 + $0x38] sm:$0xff]
    %3899 = vmatprep.subr.mxu0 0.0
    %3900 = vmatpush1.msra.mxu0 %v3891
    %3901 = vmatprep.subr.mxu0 0.0
    %3902 = vmatpush1.msra.mxu0 0.0
    %3903 = vmatprep.subr.mxu0 0.0
    %3904 = vmatpush1.msra.mxu0 0.0
    %3905 = vmatprep.subr.mxu0 0.0
    %3906 = vmatpush1.msra.mxu0 0.0
    %3907 = vmatprep.subr.mxu0 0.0
    %3908 = vmatpush1.msra.mxu0 0.0
    %3909 = vmatprep.subr.mxu0 0.0
    %3910 = vmatpush1.msra.mxu0 0.0
    %3911 = vmatprep.subr.mxu0 0.0
    %3912 = vmatpush1.msra.mxu0 0.0
    %3913 = vmatprep.subr.mxu0 0.0
    %3914 = vmatpush1.msra.mxu0 0.0
    %3915 = vmatprep.subr.mxu0 0.0
    %3916 = vmatpush1.msra.mxu0 0.0
    %3917 = vmatprep.subr.mxu0 0.0
    %3918 = vmatpush1.msra.mxu0 0.0
    %3919 = vmatprep.subr.mxu0 0.0
    %3920 = vmatpush1.msra.mxu0 0.0
    %3921 = vmatprep.subr.mxu0 0.0
    %3922 = vmatpush1.msra.mxu0 0.0
    %3923 = vmatprep.subr.mxu0 0.0
    %3924 = vmatpush1.msra.mxu0 0.0
    %3925 = vmatprep.subr.mxu0 0.0
    %3926 = vmatpush1.msra.mxu0 0.0
    %3927 = vmatprep.subr.mxu0 0.0
    %3928 = vmatpush1.msra.mxu0 0.0
    %3929 = vmatprep.subr.mxu0 0.0
    %3930 = vmatpush1.msra.mxu0 0.0
    %3931 = vmatprep.subr.mxu0 0.0
    %3932 = vmatpush1.msra.mxu0 0.0
    %3933 = vmatprep.subr.mxu0 0.0
    %3934 = vmatpush1.msra.mxu0 0.0
    %3935 = vmatprep.subr.mxu0 0.0
    %3936 = vmatpush1.msra.mxu0 0.0
    %3937 = vmatprep.subr.mxu0 0.0
    %3938 = vmatpush1.msra.mxu0 0.0
    %3939 = vmatprep.subr.mxu0 0.0
    %3940 = vmatpush1.msra.mxu0 0.0
    %3941 = vmatprep.subr.mxu0 0.0
    %3942 = vmatpush1.msra.mxu0 0.0
    %3943 = vmatprep.subr.mxu0 0.0
    %3944 = vmatpush1.msra.mxu0 0.0
    %3945 = vmatprep.subr.mxu0 0.0
    %3946 = vmatpush1.msra.mxu0 0.0
    %3947 = vmatprep.subr.mxu0 0.0
    %3948 = vmatpush1.msra.mxu0 0.0
    %3949 = vmatprep.subr.mxu0 0.0
    %3950 = vmatpush1.msra.mxu0 0.0
    %3951 = vmatprep.subr.mxu0 0.0
    %3952 = vmatpush1.msra.mxu0 0.0
    %3953 = vmatprep.subr.mxu0 0.0
    %3954 = vmatpush1.msra.mxu0 0.0
    %3955 = vmatprep.subr.mxu0 0.0
    %3956 = vmatpush1.msra.mxu0 0.0
    %3957 = vmatprep.subr.mxu0 0.0
    %3958 = vmatpush1.msra.mxu0 0.0
    %3959 = vmatprep.subr.mxu0 0.0
    %3960 = vmatpush1.msra.mxu0 0.0
    %3961 = vmatprep.subr.mxu0 0.0
    %3962 = vmatpush1.msra.mxu0 0.0
    %3963 = vmatprep.mubr.f32.mxu0 0.0
    %3964 = vmatmul.mubr.f32.gmra.mrb[0].mxu0 %v3308
    %v3965 = vpop.f32.mrb[0].mxu0
    %v3966 = vadd.f32 0.0, %v3965
    %v3967 = vpop.f32.mrb[0].mxu0
    %3968 = vdwg.mxu0
    %3969 = vmatprep.subr.mxu0 0.0
    %3970 = vmatpush1.msra.mxu0 %v3892
    %3971 = vmatprep.subr.mxu0 0.0
    %3972 = vmatpush1.msra.mxu0 0.0
    %3973 = vmatprep.subr.mxu0 0.0
    %3974 = vmatpush1.msra.mxu0 0.0
    %3975 = vmatprep.subr.mxu0 0.0
    %3976 = vmatpush1.msra.mxu0 0.0
    %3977 = vmatprep.subr.mxu0 0.0
    %3978 = vmatpush1.msra.mxu0 0.0
    %3979 = vmatprep.subr.mxu0 0.0
    %3980 = vmatpush1.msra.mxu0 0.0
    %3981 = vmatprep.subr.mxu0 0.0
    %3982 = vmatpush1.msra.mxu0 0.0
    %3983 = vmatprep.subr.mxu0 0.0
    %3984 = vmatpush1.msra.mxu0 0.0
    %3985 = vmatprep.subr.mxu0 0.0
    %3986 = vmatpush1.msra.mxu0 0.0
    %3987 = vmatprep.subr.mxu0 0.0
    %3988 = vmatpush1.msra.mxu0 0.0
    %3989 = vmatprep.subr.mxu0 0.0
    %3990 = vmatpush1.msra.mxu0 0.0
    %3991 = vmatprep.subr.mxu0 0.0
    %3992 = vmatpush1.msra.mxu0 0.0
    %3993 = vmatprep.subr.mxu0 0.0
    %3994 = vmatpush1.msra.mxu0 0.0
    %3995 = vmatprep.subr.mxu0 0.0
    %3996 = vmatpush1.msra.mxu0 0.0
    %3997 = vmatprep.subr.mxu0 0.0
    %3998 = vmatpush1.msra.mxu0 0.0
    %3999 = vmatprep.subr.mxu0 0.0
    %4000 = vmatpush1.msra.mxu0 0.0
    %4001 = vmatprep.subr.mxu0 0.0
    %4002 = vmatpush1.msra.mxu0 0.0
    %4003 = vmatprep.subr.mxu0 0.0
    %4004 = vmatpush1.msra.mxu0 0.0
    %4005 = vmatprep.subr.mxu0 0.0
    %4006 = vmatpush1.msra.mxu0 0.0
    %4007 = vmatprep.subr.mxu0 0.0
    %4008 = vmatpush1.msra.mxu0 0.0
    %4009 = vmatprep.subr.mxu0 0.0
    %4010 = vmatpush1.msra.mxu0 0.0
    %4011 = vmatprep.subr.mxu0 0.0
    %4012 = vmatpush1.msra.mxu0 0.0
    %4013 = vmatprep.subr.mxu0 0.0
    %4014 = vmatpush1.msra.mxu0 0.0
    %4015 = vmatprep.subr.mxu0 0.0
    %4016 = vmatpush1.msra.mxu0 0.0
    %4017 = vmatprep.subr.mxu0 0.0
    %4018 = vmatpush1.msra.mxu0 0.0
    %4019 = vmatprep.subr.mxu0 0.0
    %4020 = vmatpush1.msra.mxu0 0.0
    %4021 = vmatprep.subr.mxu0 0.0
    %4022 = vmatpush1.msra.mxu0 0.0
    %4023 = vmatprep.subr.mxu0 0.0
    %4024 = vmatpush1.msra.mxu0 0.0
    %4025 = vmatprep.subr.mxu0 0.0
    %4026 = vmatpush1.msra.mxu0 0.0
    %4027 = vmatprep.subr.mxu0 0.0
    %4028 = vmatpush1.msra.mxu0 0.0
    %4029 = vmatprep.subr.mxu0 0.0
    %4030 = vmatpush1.msra.mxu0 0.0
    %4031 = vmatprep.subr.mxu0 0.0
    %4032 = vmatpush1.msra.mxu0 0.0
    %4033 = vmatprep.mubr.f32.mxu0 0.0
    %4034 = vmatmul.mubr.f32.gmra.mrb[0].mxu0 %v3381
    %v4035 = vpop.f32.mrb[0].mxu0
    %v4036 = vadd.f32 0.0, %v4035
    %v4037 = vpop.f32.mrb[0].mxu0
    %4038 = vdwg.mxu0
    %4039 = vmatprep.subr.mxu0 0.0
    %4040 = vmatpush1.msra.mxu0 %v3893
    %4041 = vmatprep.subr.mxu0 0.0
    %4042 = vmatpush1.msra.mxu0 0.0
    %4043 = vmatprep.subr.mxu0 0.0
    %4044 = vmatpush1.msra.mxu0 0.0
    %4045 = vmatprep.subr.mxu0 0.0
    %4046 = vmatpush1.msra.mxu0 0.0
    %4047 = vmatprep.subr.mxu0 0.0
    %4048 = vmatpush1.msra.mxu0 0.0
    %4049 = vmatprep.subr.mxu0 0.0
    %4050 = vmatpush1.msra.mxu0 0.0
    %4051 = vmatprep.subr.mxu0 0.0
    %4052 = vmatpush1.msra.mxu0 0.0
    %4053 = vmatprep.subr.mxu0 0.0
    %4054 = vmatpush1.msra.mxu0 0.0
    %4055 = vmatprep.subr.mxu0 0.0
    %4056 = vmatpush1.msra.mxu0 0.0
    %4057 = vmatprep.subr.mxu0 0.0
    %4058 = vmatpush1.msra.mxu0 0.0
    %4059 = vmatprep.subr.mxu0 0.0
    %4060 = vmatpush1.msra.mxu0 0.0
    %4061 = vmatprep.subr.mxu0 0.0
    %4062 = vmatpush1.msra.mxu0 0.0
    %4063 = vmatprep.subr.mxu0 0.0
    %4064 = vmatpush1.msra.mxu0 0.0
    %4065 = vmatprep.subr.mxu0 0.0
    %4066 = vmatpush1.msra.mxu0 0.0
    %4067 = vmatprep.subr.mxu0 0.0
    %4068 = vmatpush1.msra.mxu0 0.0
    %4069 = vmatprep.subr.mxu0 0.0
    %4070 = vmatpush1.msra.mxu0 0.0
    %4071 = vmatprep.subr.mxu0 0.0
    %4072 = vmatpush1.msra.mxu0 0.0
    %4073 = vmatprep.subr.mxu0 0.0
    %4074 = vmatpush1.msra.mxu0 0.0
    %4075 = vmatprep.subr.mxu0 0.0
    %4076 = vmatpush1.msra.mxu0 0.0
    %4077 = vmatprep.subr.mxu0 0.0
    %4078 = vmatpush1.msra.mxu0 0.0
    %4079 = vmatprep.subr.mxu0 0.0
    %4080 = vmatpush1.msra.mxu0 0.0
    %4081 = vmatprep.subr.mxu0 0.0
    %4082 = vmatpush1.msra.mxu0 0.0
    %4083 = vmatprep.subr.mxu0 0.0
    %4084 = vmatpush1.msra.mxu0 0.0
    %4085 = vmatprep.subr.mxu0 0.0
    %4086 = vmatpush1.msra.mxu0 0.0
    %4087 = vmatprep.subr.mxu0 0.0
    %4088 = vmatpush1.msra.mxu0 0.0
    %4089 = vmatprep.subr.mxu0 0.0
    %4090 = vmatpush1.msra.mxu0 0.0
    %4091 = vmatprep.subr.mxu0 0.0
    %4092 = vmatpush1.msra.mxu0 0.0
    %4093 = vmatprep.subr.mxu0 0.0
    %4094 = vmatpush1.msra.mxu0 0.0
    %4095 = vmatprep.subr.mxu0 0.0
    %4096 = vmatpush1.msra.mxu0 0.0
    %4097 = vmatprep.subr.mxu0 0.0
    %4098 = vmatpush1.msra.mxu0 0.0
    %4099 = vmatprep.subr.mxu0 0.0
    %4100 = vmatpush1.msra.mxu0 0.0
    %4101 = vmatprep.subr.mxu0 0.0
    %4102 = vmatpush1.msra.mxu0 0.0
    %4103 = vmatprep.mubr.f32.mxu0 0.0
    %4104 = vmatmul.mubr.f32.gmra.mrb[0].mxu0 %v3454
    %v4105 = vpop.f32.mrb[0].mxu0
    %v4106 = vadd.f32 0.0, %v4105
    %v4107 = vpop.f32.mrb[0].mxu0
    %4108 = vdwg.mxu0
    %4109 = vmatprep.subr.mxu0 0.0
    %4110 = vmatpush1.msra.mxu0 %v3894
    %4111 = vmatprep.subr.mxu0 0.0
    %4112 = vmatpush1.msra.mxu0 0.0
    %4113 = vmatprep.subr.mxu0 0.0
    %4114 = vmatpush1.msra.mxu0 0.0
    %4115 = vmatprep.subr.mxu0 0.0
    %4116 = vmatpush1.msra.mxu0 0.0
    %4117 = vmatprep.subr.mxu0 0.0
    %4118 = vmatpush1.msra.mxu0 0.0
    %4119 = vmatprep.subr.mxu0 0.0
    %4120 = vmatpush1.msra.mxu0 0.0
    %4121 = vmatprep.subr.mxu0 0.0
    %4122 = vmatpush1.msra.mxu0 0.0
    %4123 = vmatprep.subr.mxu0 0.0
    %4124 = vmatpush1.msra.mxu0 0.0
    %4125 = vmatprep.subr.mxu0 0.0
    %4126 = vmatpush1.msra.mxu0 0.0
    %4127 = vmatprep.subr.mxu0 0.0
    %4128 = vmatpush1.msra.mxu0 0.0
    %4129 = vmatprep.subr.mxu0 0.0
    %4130 = vmatpush1.msra.mxu0 0.0
    %4131 = vmatprep.subr.mxu0 0.0
    %4132 = vmatpush1.msra.mxu0 0.0
    %4133 = vmatprep.subr.mxu0 0.0
    %4134 = vmatpush1.msra.mxu0 0.0
    %4135 = vmatprep.subr.mxu0 0.0
    %4136 = vmatpush1.msra.mxu0 0.0
    %4137 = vmatprep.subr.mxu0 0.0
    %4138 = vmatpush1.msra.mxu0 0.0
    %4139 = vmatprep.subr.mxu0 0.0
    %4140 = vmatpush1.msra.mxu0 0.0
    %4141 = vmatprep.subr.mxu0 0.0
    %4142 = vmatpush1.msra.mxu0 0.0
    %4143 = vmatprep.subr.mxu0 0.0
    %4144 = vmatpush1.msra.mxu0 0.0
    %4145 = vmatprep.subr.mxu0 0.0
    %4146 = vmatpush1.msra.mxu0 0.0
    %4147 = vmatprep.subr.mxu0 0.0
    %4148 = vmatpush1.msra.mxu0 0.0
    %4149 = vmatprep.subr.mxu0 0.0
    %4150 = vmatpush1.msra.mxu0 0.0
    %4151 = vmatprep.subr.mxu0 0.0
    %4152 = vmatpush1.msra.mxu0 0.0
    %4153 = vmatprep.subr.mxu0 0.0
    %4154 = vmatpush1.msra.mxu0 0.0
    %4155 = vmatprep.subr.mxu0 0.0
    %4156 = vmatpush1.msra.mxu0 0.0
    %4157 = vmatprep.subr.mxu0 0.0
    %4158 = vmatpush1.msra.mxu0 0.0
    %4159 = vmatprep.subr.mxu0 0.0
    %4160 = vmatpush1.msra.mxu0 0.0
    %4161 = vmatprep.subr.mxu0 0.0
    %4162 = vmatpush1.msra.mxu0 0.0
    %4163 = vmatprep.subr.mxu0 0.0
    %4164 = vmatpush1.msra.mxu0 0.0
    %4165 = vmatprep.subr.mxu0 0.0
    %4166 = vmatpush1.msra.mxu0 0.0
    %4167 = vmatprep.subr.mxu0 0.0
    %4168 = vmatpush1.msra.mxu0 0.0
    %4169 = vmatprep.subr.mxu0 0.0
    %4170 = vmatpush1.msra.mxu0 0.0
    %4171 = vmatprep.subr.mxu0 0.0
    %4172 = vmatpush1.msra.mxu0 0.0
    %4173 = vmatprep.mubr.f32.mxu0 0.0
    %4174 = vmatmul.mubr.f32.gmra.mrb[0].mxu0 %v3527
    %v4175 = vpop.f32.mrb[0].mxu0
    %v4176 = vadd.f32 0.0, %v4175
    %v4177 = vpop.f32.mrb[0].mxu0
    %4178 = vdwg.mxu0
    %4179 = vmatprep.subr.mxu0 0.0
    %4180 = vmatpush1.msra.mxu0 %v3895
    %4181 = vmatprep.subr.mxu0 0.0
    %4182 = vmatpush1.msra.mxu0 0.0
    %4183 = vmatprep.subr.mxu0 0.0
    %4184 = vmatpush1.msra.mxu0 0.0
    %4185 = vmatprep.subr.mxu0 0.0
    %4186 = vmatpush1.msra.mxu0 0.0
    %4187 = vmatprep.subr.mxu0 0.0
    %4188 = vmatpush1.msra.mxu0 0.0
    %4189 = vmatprep.subr.mxu0 0.0
    %4190 = vmatpush1.msra.mxu0 0.0
    %4191 = vmatprep.subr.mxu0 0.0
    %4192 = vmatpush1.msra.mxu0 0.0
    %4193 = vmatprep.subr.mxu0 0.0
    %4194 = vmatpush1.msra.mxu0 0.0
    %4195 = vmatprep.subr.mxu0 0.0
    %4196 = vmatpush1.msra.mxu0 0.0
    %4197 = vmatprep.subr.mxu0 0.0
    %4198 = vmatpush1.msra.mxu0 0.0
    %4199 = vmatprep.subr.mxu0 0.0
    %4200 = vmatpush1.msra.mxu0 0.0
    %4201 = vmatprep.subr.mxu0 0.0
    %4202 = vmatpush1.msra.mxu0 0.0
    %4203 = vmatprep.subr.mxu0 0.0
    %4204 = vmatpush1.msra.mxu0 0.0
    %4205 = vmatprep.subr.mxu0 0.0
    %4206 = vmatpush1.msra.mxu0 0.0
    %4207 = vmatprep.subr.mxu0 0.0
    %4208 = vmatpush1.msra.mxu0 0.0
    %4209 = vmatprep.subr.mxu0 0.0
    %4210 = vmatpush1.msra.mxu0 0.0
    %4211 = vmatprep.subr.mxu0 0.0
    %4212 = vmatpush1.msra.mxu0 0.0
    %4213 = vmatprep.subr.mxu0 0.0
    %4214 = vmatpush1.msra.mxu0 0.0
    %4215 = vmatprep.subr.mxu0 0.0
    %4216 = vmatpush1.msra.mxu0 0.0
    %4217 = vmatprep.subr.mxu0 0.0
    %4218 = vmatpush1.msra.mxu0 0.0
    %4219 = vmatprep.subr.mxu0 0.0
    %4220 = vmatpush1.msra.mxu0 0.0
    %4221 = vmatprep.subr.mxu0 0.0
    %4222 = vmatpush1.msra.mxu0 0.0
    %4223 = vmatprep.subr.mxu0 0.0
    %4224 = vmatpush1.msra.mxu0 0.0
    %4225 = vmatprep.subr.mxu0 0.0
    %4226 = vmatpush1.msra.mxu0 0.0
    %4227 = vmatprep.subr.mxu0 0.0
    %4228 = vmatpush1.msra.mxu0 0.0
    %4229 = vmatprep.subr.mxu0 0.0
    %4230 = vmatpush1.msra.mxu0 0.0
    %4231 = vmatprep.subr.mxu0 0.0
    %4232 = vmatpush1.msra.mxu0 0.0
    %4233 = vmatprep.subr.mxu0 0.0
    %4234 = vmatpush1.msra.mxu0 0.0
    %4235 = vmatprep.subr.mxu0 0.0
    %4236 = vmatpush1.msra.mxu0 0.0
    %4237 = vmatprep.subr.mxu0 0.0
    %4238 = vmatpush1.msra.mxu0 0.0
    %4239 = vmatprep.subr.mxu0 0.0
    %4240 = vmatpush1.msra.mxu0 0.0
    %4241 = vmatprep.subr.mxu0 0.0
    %4242 = vmatpush1.msra.mxu0 0.0
    %4243 = vmatprep.mubr.f32.mxu0 0.0
    %4244 = vmatmul.mubr.f32.gmra.mrb[0].mxu0 %v3600
    %v4245 = vpop.f32.mrb[0].mxu0
    %v4246 = vadd.f32 0.0, %v4245
    %v4247 = vpop.f32.mrb[0].mxu0
    %4248 = vdwg.mxu0
    %4249 = vmatprep.subr.mxu0 0.0
    %4250 = vmatpush1.msra.mxu0 %v3896
    %4251 = vmatprep.subr.mxu0 0.0
    %4252 = vmatpush1.msra.mxu0 0.0
    %4253 = vmatprep.subr.mxu0 0.0
    %4254 = vmatpush1.msra.mxu0 0.0
    %4255 = vmatprep.subr.mxu0 0.0
    %4256 = vmatpush1.msra.mxu0 0.0
    %4257 = vmatprep.subr.mxu0 0.0
    %4258 = vmatpush1.msra.mxu0 0.0
    %4259 = vmatprep.subr.mxu0 0.0
    %4260 = vmatpush1.msra.mxu0 0.0
    %4261 = vmatprep.subr.mxu0 0.0
    %4262 = vmatpush1.msra.mxu0 0.0
    %4263 = vmatprep.subr.mxu0 0.0
    %4264 = vmatpush1.msra.mxu0 0.0
    %4265 = vmatprep.subr.mxu0 0.0
    %4266 = vmatpush1.msra.mxu0 0.0
    %4267 = vmatprep.subr.mxu0 0.0
    %4268 = vmatpush1.msra.mxu0 0.0
    %4269 = vmatprep.subr.mxu0 0.0
    %4270 = vmatpush1.msra.mxu0 0.0
    %4271 = vmatprep.subr.mxu0 0.0
    %4272 = vmatpush1.msra.mxu0 0.0
    %4273 = vmatprep.subr.mxu0 0.0
    %4274 = vmatpush1.msra.mxu0 0.0
    %4275 = vmatprep.subr.mxu0 0.0
    %4276 = vmatpush1.msra.mxu0 0.0
    %4277 = vmatprep.subr.mxu0 0.0
    %4278 = vmatpush1.msra.mxu0 0.0
    %4279 = vmatprep.subr.mxu0 0.0
    %4280 = vmatpush1.msra.mxu0 0.0
    %4281 = vmatprep.subr.mxu0 0.0
    %4282 = vmatpush1.msra.mxu0 0.0
    %4283 = vmatprep.subr.mxu0 0.0
    %4284 = vmatpush1.msra.mxu0 0.0
    %4285 = vmatprep.subr.mxu0 0.0
    %4286 = vmatpush1.msra.mxu0 0.0
    %4287 = vmatprep.subr.mxu0 0.0
    %4288 = vmatpush1.msra.mxu0 0.0
    %4289 = vmatprep.subr.mxu0 0.0
    %4290 = vmatpush1.msra.mxu0 0.0
    %4291 = vmatprep.subr.mxu0 0.0
    %4292 = vmatpush1.msra.mxu0 0.0
    %4293 = vmatprep.subr.mxu0 0.0
    %4294 = vmatpush1.msra.mxu0 0.0
    %4295 = vmatprep.subr.mxu0 0.0
    %4296 = vmatpush1.msra.mxu0 0.0
    %4297 = vmatprep.subr.mxu0 0.0
    %4298 = vmatpush1.msra.mxu0 0.0
    %4299 = vmatprep.subr.mxu0 0.0
    %4300 = vmatpush1.msra.mxu0 0.0
    %4301 = vmatprep.subr.mxu0 0.0
    %4302 = vmatpush1.msra.mxu0 0.0
    %4303 = vmatprep.subr.mxu0 0.0
    %4304 = vmatpush1.msra.mxu0 0.0
    %4305 = vmatprep.subr.mxu0 0.0
    %4306 = vmatpush1.msra.mxu0 0.0
    %4307 = vmatprep.subr.mxu0 0.0
    %4308 = vmatpush1.msra.mxu0 0.0
    %4309 = vmatprep.subr.mxu0 0.0
    %4310 = vmatpush1.msra.mxu0 0.0
    %4311 = vmatprep.subr.mxu0 0.0
    %4312 = vmatpush1.msra.mxu0 0.0
    %4313 = vmatprep.mubr.f32.mxu0 0.0
    %4314 = vmatmul.mubr.f32.gmra.mrb[0].mxu0 %v3673
    %v4315 = vpop.f32.mrb[0].mxu0
    %v4316 = vadd.f32 0.0, %v4315
    %v4317 = vpop.f32.mrb[0].mxu0
    %4318 = vdwg.mxu0
    %4319 = vmatprep.subr.mxu0 0.0
    %4320 = vmatpush1.msra.mxu0 %v3897
    %4321 = vmatprep.subr.mxu0 0.0
    %4322 = vmatpush1.msra.mxu0 0.0
    %4323 = vmatprep.subr.mxu0 0.0
    %4324 = vmatpush1.msra.mxu0 0.0
    %4325 = vmatprep.subr.mxu0 0.0
    %4326 = vmatpush1.msra.mxu0 0.0
    %4327 = vmatprep.subr.mxu0 0.0
    %4328 = vmatpush1.msra.mxu0 0.0
    %4329 = vmatprep.subr.mxu0 0.0
    %4330 = vmatpush1.msra.mxu0 0.0
    %4331 = vmatprep.subr.mxu0 0.0
    %4332 = vmatpush1.msra.mxu0 0.0
    %4333 = vmatprep.subr.mxu0 0.0
    %4334 = vmatpush1.msra.mxu0 0.0
    %4335 = vmatprep.subr.mxu0 0.0
    %4336 = vmatpush1.msra.mxu0 0.0
    %4337 = vmatprep.subr.mxu0 0.0
    %4338 = vmatpush1.msra.mxu0 0.0
    %4339 = vmatprep.subr.mxu0 0.0
    %4340 = vmatpush1.msra.mxu0 0.0
    %4341 = vmatprep.subr.mxu0 0.0
    %4342 = vmatpush1.msra.mxu0 0.0
    %4343 = vmatprep.subr.mxu0 0.0
    %4344 = vmatpush1.msra.mxu0 0.0
    %4345 = vmatprep.subr.mxu0 0.0
    %4346 = vmatpush1.msra.mxu0 0.0
    %4347 = vmatprep.subr.mxu0 0.0
    %4348 = vmatpush1.msra.mxu0 0.0
    %4349 = vmatprep.subr.mxu0 0.0
    %4350 = vmatpush1.msra.mxu0 0.0
    %4351 = vmatprep.subr.mxu0 0.0
    %4352 = vmatpush1.msra.mxu0 0.0
    %4353 = vmatprep.subr.mxu0 0.0
    %4354 = vmatpush1.msra.mxu0 0.0
    %4355 = vmatprep.subr.mxu0 0.0
    %4356 = vmatpush1.msra.mxu0 0.0
    %4357 = vmatprep.subr.mxu0 0.0
    %4358 = vmatpush1.msra.mxu0 0.0
    %4359 = vmatprep.subr.mxu0 0.0
    %4360 = vmatpush1.msra.mxu0 0.0
    %4361 = vmatprep.subr.mxu0 0.0
    %4362 = vmatpush1.msra.mxu0 0.0
    %4363 = vmatprep.subr.mxu0 0.0
    %4364 = vmatpush1.msra.mxu0 0.0
    %4365 = vmatprep.subr.mxu0 0.0
    %4366 = vmatpush1.msra.mxu0 0.0
    %4367 = vmatprep.subr.mxu0 0.0
    %4368 = vmatpush1.msra.mxu0 0.0
    %4369 = vmatprep.subr.mxu0 0.0
    %4370 = vmatpush1.msra.mxu0 0.0
    %4371 = vmatprep.subr.mxu0 0.0
    %4372 = vmatpush1.msra.mxu0 0.0
    %4373 = vmatprep.subr.mxu0 0.0
    %4374 = vmatpush1.msra.mxu0 0.0
    %4375 = vmatprep.subr.mxu0 0.0
    %4376 = vmatpush1.msra.mxu0 0.0
    %4377 = vmatprep.subr.mxu0 0.0
    %4378 = vmatpush1.msra.mxu0 0.0
    %4379 = vmatprep.subr.mxu0 0.0
    %4380 = vmatpush1.msra.mxu0 0.0
    %4381 = vmatprep.subr.mxu0 0.0
    %4382 = vmatpush1.msra.mxu0 0.0
    %4383 = vmatprep.mubr.f32.mxu0 0.0
    %4384 = vmatmul.mubr.f32.gmra.mrb[0].mxu0 %v3746
    %v4385 = vpop.f32.mrb[0].mxu0
    %v4386 = vadd.f32 0.0, %v4385
    %v4387 = vpop.f32.mrb[0].mxu0
    %4388 = vdwg.mxu0
    %4389 = vmatprep.subr.mxu0 0.0
    %4390 = vmatpush1.msra.mxu0 %v3898
    %4391 = vmatprep.subr.mxu0 0.0
    %4392 = vmatpush1.msra.mxu0 0.0
    %4393 = vmatprep.subr.mxu0 0.0
    %4394 = vmatpush1.msra.mxu0 0.0
    %4395 = vmatprep.subr.mxu0 0.0
    %4396 = vmatpush1.msra.mxu0 0.0
    %4397 = vmatprep.subr.mxu0 0.0
    %4398 = vmatpush1.msra.mxu0 0.0
    %4399 = vmatprep.subr.mxu0 0.0
    %4400 = vmatpush1.msra.mxu0 0.0
    %4401 = vmatprep.subr.mxu0 0.0
    %4402 = vmatpush1.msra.mxu0 0.0
    %4403 = vmatprep.subr.mxu0 0.0
    %4404 = vmatpush1.msra.mxu0 0.0
    %4405 = vmatprep.subr.mxu0 0.0
    %4406 = vmatpush1.msra.mxu0 0.0
    %4407 = vmatprep.subr.mxu0 0.0
    %4408 = vmatpush1.msra.mxu0 0.0
    %4409 = vmatprep.subr.mxu0 0.0
    %4410 = vmatpush1.msra.mxu0 0.0
    %4411 = vmatprep.subr.mxu0 0.0
    %4412 = vmatpush1.msra.mxu0 0.0
    %4413 = vmatprep.subr.mxu0 0.0
    %4414 = vmatpush1.msra.mxu0 0.0
    %4415 = vmatprep.subr.mxu0 0.0
    %4416 = vmatpush1.msra.mxu0 0.0
    %4417 = vmatprep.subr.mxu0 0.0
    %4418 = vmatpush1.msra.mxu0 0.0
    %4419 = vmatprep.subr.mxu0 0.0
    %4420 = vmatpush1.msra.mxu0 0.0
    %4421 = vmatprep.subr.mxu0 0.0
    %4422 = vmatpush1.msra.mxu0 0.0
    %4423 = vmatprep.subr.mxu0 0.0
    %4424 = vmatpush1.msra.mxu0 0.0
    %4425 = vmatprep.subr.mxu0 0.0
    %4426 = vmatpush1.msra.mxu0 0.0
    %4427 = vmatprep.subr.mxu0 0.0
    %4428 = vmatpush1.msra.mxu0 0.0
    %4429 = vmatprep.subr.mxu0 0.0
    %4430 = vmatpush1.msra.mxu0 0.0
    %4431 = vmatprep.subr.mxu0 0.0
    %4432 = vmatpush1.msra.mxu0 0.0
    %4433 = vmatprep.subr.mxu0 0.0
    %4434 = vmatpush1.msra.mxu0 0.0
    %4435 = vmatprep.subr.mxu0 0.0
    %4436 = vmatpush1.msra.mxu0 0.0
    %4437 = vmatprep.subr.mxu0 0.0
    %4438 = vmatpush1.msra.mxu0 0.0
    %4439 = vmatprep.subr.mxu0 0.0
    %4440 = vmatpush1.msra.mxu0 0.0
    %4441 = vmatprep.subr.mxu0 0.0
    %4442 = vmatpush1.msra.mxu0 0.0
    %4443 = vmatprep.subr.mxu0 0.0
    %4444 = vmatpush1.msra.mxu0 0.0
    %4445 = vmatprep.subr.mxu0 0.0
    %4446 = vmatpush1.msra.mxu0 0.0
    %4447 = vmatprep.subr.mxu0 0.0
    %4448 = vmatpush1.msra.mxu0 0.0
    %4449 = vmatprep.subr.mxu0 0.0
    %4450 = vmatpush1.msra.mxu0 0.0
    %4451 = vmatprep.subr.mxu0 0.0
    %4452 = vmatpush1.msra.mxu0 0.0
    %4453 = vmatprep.mubr.f32.mxu0 0.0
    %4454 = vmatmul.mubr.f32.gmra.mrb[0].mxu0 %v3819
    %v4455 = vpop.f32.mrb[0].mxu0
    %v4456 = vadd.f32 0.0, %v4455
    %v4457 = vpop.f32.mrb[0].mxu0
    %4458 = vdwg.mxu0
    %v4459 = vsel %vm147, %v3377, 0.0
    %v4460 = vsel %vm147, %v3450, 0.0
    %v4461 = vadd.f32 %v4459, %v4460
    %v4462 = vsel %vm147, %v3523, 0.0
    %v4463 = vadd.f32 %v4461, %v4462
    %v4464 = vsel %vm147, %v3596, 0.0
    %v4465 = vadd.f32 %v4463, %v4464
    %v4466 = vsel %vm147, %v3669, 0.0
    %v4467 = vsel %vm147, %v3742, 0.0
    %v4468 = vadd.f32 %v4466, %v4467
    %v4469 = vsel %vm147, %v3815, 0.0
    %v4470 = vadd.f32 %v4468, %v4469
    %v4471 = vsel %vm147, %v3888, 0.0
    %v4472 = vadd.f32 %v4470, %v4471
    %v4473 = vsel %vm147, %v3966, 0.0
    %v4474 = vsel %vm147, %v4036, 0.0
    %v4475 = vadd.f32 %v4473, %v4474
    %v4476 = vsel %vm147, %v4106, 0.0
    %v4477 = vadd.f32 %v4475, %v4476
    %v4478 = vsel %vm147, %v4176, 0.0
    %v4479 = vadd.f32 %v4477, %v4478
    %v4480 = vsel %vm147, %v4246, 0.0
    %v4481 = vsel %vm147, %v4316, 0.0
    %v4482 = vadd.f32 %v4480, %v4481
    %v4483 = vsel %vm147, %v4386, 0.0
    %v4484 = vadd.f32 %v4482, %v4483
    %v4485 = vsel %vm147, %v4456, 0.0
    %v4486 = vadd.f32 %v4484, %v4485
    %v4487 = vld [vmem:[%s9] sm:$0xff]
    %v4488 = vld [vmem:[%s9 + $0x8] sm:$0xff]
    %v4489 = vld [vmem:[%s9 + $0x10] sm:$0xff]
    %v4490 = vld [vmem:[%s9 + $0x18] sm:$0xff]
    %4491 = vmatprep.subr.mxu0 0.0
    %4492 = vmatpush1.msra.mxu0 %v4487
    %4493 = vmatprep.subr.mxu0 0.0
    %4494 = vmatpush1.msra.mxu0 %v4488
    %4495 = vmatprep.subr.mxu0 0.0
    %4496 = vmatpush1.msra.mxu0 %v4489
    %4497 = vmatprep.subr.mxu0 0.0
    %4498 = vmatpush1.msra.mxu0 %v4490
    %4499 = vmatprep.subr.mxu0 0.0
    %4500 = vmatpush1.msra.mxu0 0.0
    %4501 = vmatprep.subr.mxu0 0.0
    %4502 = vmatpush1.msra.mxu0 0.0
    %4503 = vmatprep.subr.mxu0 0.0
    %4504 = vmatpush1.msra.mxu0 0.0
    %4505 = vmatprep.subr.mxu0 0.0
    %4506 = vmatpush1.msra.mxu0 0.0
    %4507 = vmatprep.subr.mxu0 0.0
    %4508 = vmatpush1.msra.mxu0 0.0
    %4509 = vmatprep.subr.mxu0 0.0
    %4510 = vmatpush1.msra.mxu0 0.0
    %4511 = vmatprep.subr.mxu0 0.0
    %4512 = vmatpush1.msra.mxu0 0.0
    %4513 = vmatprep.subr.mxu0 0.0
    %4514 = vmatpush1.msra.mxu0 0.0
    %4515 = vmatprep.subr.mxu0 0.0
    %4516 = vmatpush1.msra.mxu0 0.0
    %4517 = vmatprep.subr.mxu0 0.0
    %4518 = vmatpush1.msra.mxu0 0.0
    %4519 = vmatprep.subr.mxu0 0.0
    %4520 = vmatpush1.msra.mxu0 0.0
    %4521 = vmatprep.subr.mxu0 0.0
    %4522 = vmatpush1.msra.mxu0 0.0
    %4523 = vmatprep.subr.mxu0 0.0
    %4524 = vmatpush1.msra.mxu0 0.0
    %4525 = vmatprep.subr.mxu0 0.0
    %4526 = vmatpush1.msra.mxu0 0.0
    %4527 = vmatprep.subr.mxu0 0.0
    %4528 = vmatpush1.msra.mxu0 0.0
    %4529 = vmatprep.subr.mxu0 0.0
    %4530 = vmatpush1.msra.mxu0 0.0
    %4531 = vmatprep.subr.mxu0 0.0
    %4532 = vmatpush1.msra.mxu0 0.0
    %4533 = vmatprep.subr.mxu0 0.0
    %4534 = vmatpush1.msra.mxu0 0.0
    %4535 = vmatprep.subr.mxu0 0.0
    %4536 = vmatpush1.msra.mxu0 0.0
    %4537 = vmatprep.subr.mxu0 0.0
    %4538 = vmatpush1.msra.mxu0 0.0
    %4539 = vmatprep.subr.mxu0 0.0
    %4540 = vmatpush1.msra.mxu0 0.0
    %4541 = vmatprep.subr.mxu0 0.0
    %4542 = vmatpush1.msra.mxu0 0.0
    %4543 = vmatprep.subr.mxu0 0.0
    %4544 = vmatpush1.msra.mxu0 0.0
    %4545 = vmatprep.subr.mxu0 0.0
    %4546 = vmatpush1.msra.mxu0 0.0
    %4547 = vmatprep.subr.mxu0 0.0
    %4548 = vmatpush1.msra.mxu0 0.0
    %4549 = vmatprep.subr.mxu0 0.0
    %4550 = vmatpush1.msra.mxu0 0.0
    %4551 = vmatprep.subr.mxu0 0.0
    %4552 = vmatpush1.msra.mxu0 0.0
    %4553 = vmatprep.subr.mxu0 0.0
    %4554 = vmatpush1.msra.mxu0 0.0
    %4555 = vmatprep.mubr.f32.mxu0 0.0
    %4556 = vmatmul.mubr.f32.gmra.mrb[0].mxu0 %v149
    %v4557 = vpop.f32.mrb[0].mxu0
    %v4558 = vadd.f32 0.0, %v4557
    %v4559 = vpop.f32.mrb[0].mxu0
    %4560 = vmatprep.mubr.f32.mxu0 0.0
    %4561 = vmatmul.mubr.f32.gmra.mrb[0].mxu0 %v432
    %v4562 = vpop.f32.mrb[0].mxu0
    %v4563 = vadd.f32 0.0, %v4562
    %v4564 = vpop.f32.mrb[0].mxu0
    %4565 = vdwg.mxu0
    %v4566 = vadd.f32 %v4465, %v4558
    %v4567 = vadd.f32 %v4472, %v4563
    %v4568 = vld [vmem:[%s11] sm:$0x1]
    %v4570 = vlaneseq
    %v4571 = vshrl.u32 %v4570, 7
    %v4572 = vsub.s32 0, %v4571
    %v4573 = vrot.slane %v4568, %v4572
    %v4575 = vadd.f32 %v4566, %v4573
    %v4576 = vadd.f32 %v4567, %v4573
    %v4577 = vld [vmem:[%s10] sm:$0xff]
    %v4578 = vld [vmem:[%s10 + $0x8] sm:$0xff]
    %v4579 = vld [vmem:[%s10 + $0x10] sm:$0xff]
    %v4580 = vld [vmem:[%s10 + $0x18] sm:$0xff]
    %4581 = vmatprep.subr.mxu0 0.0
    %4582 = vmatpush1.msra.mxu0 %v4577
    %4583 = vmatprep.subr.mxu0 0.0
    %4584 = vmatpush1.msra.mxu0 %v4578
    %4585 = vmatprep.subr.mxu0 0.0
    %4586 = vmatpush1.msra.mxu0 %v4579
    %4587 = vmatprep.subr.mxu0 0.0
    %4588 = vmatpush1.msra.mxu0 %v4580
    %4589 = vmatprep.subr.mxu0 0.0
    %4590 = vmatpush1.msra.mxu0 0.0
    %4591 = vmatprep.subr.mxu0 0.0
    %4592 = vmatpush1.msra.mxu0 0.0
    %4593 = vmatprep.subr.mxu0 0.0
    %4594 = vmatpush1.msra.mxu0 0.0
    %4595 = vmatprep.subr.mxu0 0.0
    %4596 = vmatpush1.msra.mxu0 0.0
    %4597 = vmatprep.subr.mxu0 0.0
    %4598 = vmatpush1.msra.mxu0 0.0
    %4599 = vmatprep.subr.mxu0 0.0
    %4600 = vmatpush1.msra.mxu0 0.0
    %4601 = vmatprep.subr.mxu0 0.0
    %4602 = vmatpush1.msra.mxu0 0.0
    %4603 = vmatprep.subr.mxu0 0.0
    %4604 = vmatpush1.msra.mxu0 0.0
    %4605 = vmatprep.subr.mxu0 0.0
    %4606 = vmatpush1.msra.mxu0 0.0
    %4607 = vmatprep.subr.mxu0 0.0
    %4608 = vmatpush1.msra.mxu0 0.0
    %4609 = vmatprep.subr.mxu0 0.0
    %4610 = vmatpush1.msra.mxu0 0.0
    %4611 = vmatprep.subr.mxu0 0.0
    %4612 = vmatpush1.msra.mxu0 0.0
    %4613 = vmatprep.subr.mxu0 0.0
    %4614 = vmatpush1.msra.mxu0 0.0
    %4615 = vmatprep.subr.mxu0 0.0
    %4616 = vmatpush1.msra.mxu0 0.0
    %4617 = vmatprep.subr.mxu0 0.0
    %4618 = vmatpush1.msra.mxu0 0.0
    %4619 = vmatprep.subr.mxu0 0.0
    %4620 = vmatpush1.msra.mxu0 0.0
    %4621 = vmatprep.subr.mxu0 0.0
    %4622 = vmatpush1.msra.mxu0 0.0
    %4623 = vmatprep.subr.mxu0 0.0
    %4624 = vmatpush1.msra.mxu0 0.0
    %4625 = vmatprep.subr.mxu0 0.0
    %4626 = vmatpush1.msra.mxu0 0.0
    %4627 = vmatprep.subr.mxu0 0.0
    %4628 = vmatpush1.msra.mxu0 0.0
    %4629 = vmatprep.subr.mxu0 0.0
    %4630 = vmatpush1.msra.mxu0 0.0
    %4631 = vmatprep.subr.mxu0 0.0
    %4632 = vmatpush1.msra.mxu0 0.0
    %4633 = vmatprep.subr.mxu0 0.0
    %4634 = vmatpush1.msra.mxu0 0.0
    %4635 = vmatprep.subr.mxu0 0.0
    %4636 = vmatpush1.msra.mxu0 0.0
    %4637 = vmatprep.subr.mxu0 0.0
    %4638 = vmatpush1.msra.mxu0 0.0
    %4639 = vmatprep.subr.mxu0 0.0
    %4640 = vmatpush1.msra.mxu0 0.0
    %4641 = vmatprep.subr.mxu0 0.0
    %4642 = vmatpush1.msra.mxu0 0.0
    %4643 = vmatprep.subr.mxu0 0.0
    %4644 = vmatpush1.msra.mxu0 0.0
    %4645 = vmatprep.mubr.f32.mxu0 0.0
    %4646 = vmatmul.mubr.f32.gmra.mrb[0].mxu0 %v149
    %v4647 = vpop.f32.mrb[0].mxu0
    %v4648 = vadd.f32 0.0, %v4647
    %v4649 = vpop.f32.mrb[0].mxu0
    %4650 = vmatprep.mubr.f32.mxu0 0.0
    %4651 = vmatmul.mubr.f32.gmra.mrb[0].mxu0 %v432
    %v4652 = vpop.f32.mrb[0].mxu0
    %v4653 = vadd.f32 0.0, %v4652
    %v4654 = vpop.f32.mrb[0].mxu0
    %4655 = vdwg.mxu0
    %v4656 = vadd.f32 %v4479, %v4648
    %v4657 = vadd.f32 %v4486, %v4653
    %v4658 = vld [vmem:[%s12] sm:$0x1]
    %v4660 = vlaneseq
    %v4661 = vshrl.u32 %v4660, 7
    %v4662 = vsub.s32 0, %v4661
    %v4663 = vrot.slane %v4658, %v4662
    %v4665 = vadd.f32 %v4656, %v4663
    %v4666 = vadd.f32 %v4657, %v4663
    %v4667 = vxor.u32 %v4665, 2147483648
    %v4668 = vxor.u32 %v4666, 2147483648
    %v4669 = vmul.f32 %v4667, 1.442695
    %v4670 = vpow.pop %v4669
    %v4671 = vmul.f32 %v4668, 1.442695
    %v4672 = vpow.pop %v4671
    %v4673 = vadd.f32 %v4670, 1.0
    %v4674 = vadd.f32 %v4672, 1.0
    %v4675 = vrcp.pop %v4673
    %v4676 = vmul.f32 1.0, %v4675
    %v4677 = vrcp.pop %v4674
    %v4678 = vmul.f32 1.0, %v4677
    %v4679 = vmul.f32 %v4575, %v4676
    %v4680 = vmul.f32 %v4576, %v4678
    %v4681 = vld [vmem:[%s13] sm:$0xff]
    %v4682 = vld [vmem:[%s13 + $0x8] sm:$0xff]
    %v4683 = vld [vmem:[%s13 + $0x10] sm:$0xff]
    %v4684 = vld [vmem:[%s13 + $0x18] sm:$0xff]
    %v4685 = vld [vmem:[%s14] sm:$0x1]
    %v4687 = vlaneseq
    %v4688 = vshrl.u32 %v4687, 7
    %v4689 = vsub.s32 0, %v4688
    %v4690 = vrot.slane %v4685, %v4689
    %v4693 = vsel %vm147, %v4679, 0
    %v4696 = vsel %vm147, %v4680, 0
    %4698 = vmatprep.subr.mxu0 0.0
    %4699 = vmatpush1.msra.mxu0 %v4681
    %4700 = vmatprep.subr.mxu0 0.0
    %4701 = vmatpush1.msra.mxu0 %v4682
    %4702 = vmatprep.subr.mxu0 0.0
    %4703 = vmatpush1.msra.mxu0 %v4683
    %4704 = vmatprep.subr.mxu0 0.0
    %4705 = vmatpush1.msra.mxu0 %v4684
    %4706 = vmatprep.subr.mxu0 0.0
    %4707 = vmatpush1.msra.mxu0 0.0
    %4708 = vmatprep.subr.mxu0 0.0
    %4709 = vmatpush1.msra.mxu0 0.0
    %4710 = vmatprep.subr.mxu0 0.0
    %4711 = vmatpush1.msra.mxu0 0.0
    %4712 = vmatprep.subr.mxu0 0.0
    %4713 = vmatpush1.msra.mxu0 0.0
    %4714 = vmatprep.subr.mxu0 0.0
    %4715 = vmatpush1.msra.mxu0 0.0
    %4716 = vmatprep.subr.mxu0 0.0
    %4717 = vmatpush1.msra.mxu0 0.0
    %4718 = vmatprep.subr.mxu0 0.0
    %4719 = vmatpush1.msra.mxu0 0.0
    %4720 = vmatprep.subr.mxu0 0.0
    %4721 = vmatpush1.msra.mxu0 0.0
    %4722 = vmatprep.subr.mxu0 0.0
    %4723 = vmatpush1.msra.mxu0 0.0
    %4724 = vmatprep.subr.mxu0 0.0
    %4725 = vmatpush1.msra.mxu0 0.0
    %4726 = vmatprep.subr.mxu0 0.0
    %4727 = vmatpush1.msra.mxu0 0.0
    %4728 = vmatprep.subr.mxu0 0.0
    %4729 = vmatpush1.msra.mxu0 0.0
    %4730 = vmatprep.subr.mxu0 0.0
    %4731 = vmatpush1.msra.mxu0 0.0
    %4732 = vmatprep.subr.mxu0 0.0
    %4733 = vmatpush1.msra.mxu0 0.0
    %4734 = vmatprep.subr.mxu0 0.0
    %4735 = vmatpush1.msra.mxu0 0.0
    %4736 = vmatprep.subr.mxu0 0.0
    %4737 = vmatpush1.msra.mxu0 0.0
    %4738 = vmatprep.subr.mxu0 0.0
    %4739 = vmatpush1.msra.mxu0 0.0
    %4740 = vmatprep.subr.mxu0 0.0
    %4741 = vmatpush1.msra.mxu0 0.0
    %4742 = vmatprep.subr.mxu0 0.0
    %4743 = vmatpush1.msra.mxu0 0.0
    %4744 = vmatprep.subr.mxu0 0.0
    %4745 = vmatpush1.msra.mxu0 0.0
    %4746 = vmatprep.subr.mxu0 0.0
    %4747 = vmatpush1.msra.mxu0 0.0
    %4748 = vmatprep.subr.mxu0 0.0
    %4749 = vmatpush1.msra.mxu0 0.0
    %4750 = vmatprep.subr.mxu0 0.0
    %4751 = vmatpush1.msra.mxu0 0.0
    %4752 = vmatprep.subr.mxu0 0.0
    %4753 = vmatpush1.msra.mxu0 0.0
    %4754 = vmatprep.subr.mxu0 0.0
    %4755 = vmatpush1.msra.mxu0 0.0
    %4756 = vmatprep.subr.mxu0 0.0
    %4757 = vmatpush1.msra.mxu0 0.0
    %4758 = vmatprep.subr.mxu0 0.0
    %4759 = vmatpush1.msra.mxu0 0.0
    %4760 = vmatprep.subr.mxu0 0.0
    %4761 = vmatpush1.msra.mxu0 0.0
    %4762 = vmatprep.mubr.f32.mxu0 0.0
    %4763 = vmatmul.mubr.f32.gmra.mrb[0].mxu0 %v4693
    %v4764 = vpop.f32.mrb[0].mxu0
    %v4765 = vadd.f32 %v4690, %v4764
    %v4766 = vpop.f32.mrb[0].mxu0
    %4767 = vmatprep.mubr.f32.mxu0 0.0
    %4768 = vmatmul.mubr.f32.gmra.mrb[0].mxu0 %v4696
    %v4769 = vpop.f32.mrb[0].mxu0
    %v4770 = vadd.f32 %v4690, %v4769
    %v4771 = vpop.f32.mrb[0].mxu0
    %4772 = vdwg.mxu0
    %v4773 = vsel %vm147, %v4765, 0.0
    %4774 = vadd.xlane.f32.xlu0 %v4773
    %v4775 = vpop.xlane.xlu0 %4774
    %v4776 = vsel %vm147, %v4770, 0.0
    %4777 = vadd.xlane.f32.xlu0 %v4776
    %v4778 = vpop.xlane.xlu0 %4777
    %v4779 = vrcp.pop 32.0
    %v4780 = vmul.f32 %v4775, %v4779
    %v4781 = vmul.f32 %v4778, %v4779
    %v4782 = vsub.f32 %v4765, %v4780
    %v4783 = vsub.f32 %v4770, %v4781
    %v4784 = vmul.f32 %v4782, %v4782
    %v4785 = vmul.f32 %v4783, %v4783
    %v4786 = vsel %vm147, %v4784, 0.0
    %4787 = vadd.xlane.f32.xlu0 %v4786
    %v4788 = vpop.xlane.xlu0 %4787
    %v4789 = vsel %vm147, %v4785, 0.0
    %4790 = vadd.xlane.f32.xlu0 %v4789
    %v4791 = vpop.xlane.xlu0 %4790
    %v4792 = vmul.f32 %v4788, 0.032258064
    %v4793 = vmul.f32 %v4791, 0.032258064
    %v4794 = vrsqrt.pop %v4792
    %v4795 = vmul.f32 %v4792, %v4794
    %vm4796 = vcmp.eq.f32.partialorder %v4792, inf
    %v4797 = vsel %vm4796, %v4792, %v4795
    %vm4798 = vcmp.eq.f32.partialorder %v4792, 0.0
    %v4799 = vand.u32 %v4792, 2147483648
    %v4800 = vsel %vm4798, %v4799, %v4797
    %v4801 = vrsqrt.pop %v4793
    %v4802 = vmul.f32 %v4793, %v4801
    %vm4803 = vcmp.eq.f32.partialorder %v4793, inf
    %v4804 = vsel %vm4803, %v4793, %v4802
    %vm4805 = vcmp.eq.f32.partialorder %v4793, 0.0
    %v4806 = vand.u32 %v4793, 2147483648
    %v4807 = vsel %vm4805, %v4806, %v4804
    %v4808 = vadd.f32 %v4800, 1e-06
    %v4809 = vadd.f32 %v4807, 1e-06
    %v4810 = vrcp.pop %v4808
    %v4811 = vrcp.pop %v4809
    %v4812 = vld [vmem:[%s15] sm:$0x1]
    %v4814 = vlaneseq
    %v4815 = vshrl.u32 %v4814, 7
    %v4816 = vsub.s32 0, %v4815
    %v4817 = vrot.slane %v4812, %v4816
    %v4819 = vmul.f32 %v4817, %v4782
    %v4820 = vmul.f32 %v4817, %v4783
    %v4821 = vmul.f32 %v4819, %v4810
    %v4822 = vmul.f32 %v4820, %v4811
    %v4823 = vld [vmem:[%s16] sm:$0x1]
    %v4825 = vlaneseq
    %v4826 = vshrl.u32 %v4825, 7
    %v4827 = vsub.s32 0, %v4826
    %v4828 = vrot.slane %v4823, %v4827
    %v4830 = vadd.f32 %v4821, %v4828
    %v4831 = vadd.f32 %v4822, %v4828
    %v4832 = vadd.f32 %v57, %v4830
    %v4833 = vadd.f32 %v58, %v4831
    %4834 = vst.msk [vmem:[#allocation2] sm:$0xff] %vm147, %v4832
    %4835 = vst.msk [vmem:[#allocation2 + $0x8] sm:$0xff] %vm147, %v4833
    // Predicated region
    $region70: #{tpu_custom_call.1} parent=1 // pred_check
      _
    $region71: #{tpu_custom_call.1} parent=1 // pred_check_branch
      %4837 = sbr.rel (0) target = $region73
    $region72: #{tpu_custom_call.1} parent=1 // pred_region
      %s4839 = ssub.s32 256, 256
      %4840 = vsyncadd [#allocation3], %s4839
      %s4841 = sshll.u32 [#allocation2], 4
      %s4842 = int_to_ptr.vmem [resolvable:$true] %s4841
      %4847 = dma.vmem_to_hbm [thread:$0]  %s4842, 256, %s17, [#allocation3], 128, 128, 8
    $region73: #{tpu_custom_call.1} parent=1 // pred_fallthru
      _
    // Predicated region
    $region74: #{tpu_custom_call.1} parent=1 // pred_check
      _
    $region75: #{tpu_custom_call.1} parent=1 // pred_check_branch
      %4849 = sbr.rel (0) target = $region77
    $region76: #{tpu_custom_call.1} parent=1 // pred_region
      %4850 = dma.done [#allocation3], 256
    $region77: #{tpu_custom_call.1} parent=1 // pred_fallthru
      _
    %4851 = vsyncpa [#allocation3], 1

</llo_original>
